<compile_context>
chip_gen: v5e
topology: v5e:2x2
jax: 0.10.0
libtpu: 0.0.40
codegen_flags: <defaults>
</compile_context>

<pallas_src>
import functools

import jax
import jax.numpy as jnp
from jax.experimental import pallas as pl
from jax.experimental.pallas import tpu as pltpu

N_RES = 5          # fc2 .. fc6 are ResLinear blocks
BN_EPS = 1e-5
VMEM = pltpu.MemorySpace.VMEM


def _bn_train(x, gamma, beta):
    # BatchNorm1d, training mode: biased batch statistics over rows (f32).
    mean = jnp.mean(x, axis=0, keepdims=True)
    var = jnp.mean(jnp.square(x - mean), axis=0, keepdims=True)
    return (x - mean) * jax.lax.rsqrt(var + BN_EPS) * gamma + beta


# ------------------------------- Pallas kernel -------------------------------

def _respair_kernel(x_ref,
                    w1t_ref, b1_ref, g1_ref, be1_ref,
                    wrt_ref, br_ref, gr_ref, ber_ref,
                    w7t_ref, b7_ref, g7_ref, be7_ref,
                    w8_ref, b8_ref,
                    o_ref):
    def matmul(h, wt, b):
        # bf16 operands on the MXU, f32 accumulation.
        return jnp.dot(h.astype(jnp.bfloat16), wt,
                       preferred_element_type=jnp.float32) + b

    # fc1 -> bn1 -> relu                                    (dim -> 256)
    h = jnp.maximum(
        _bn_train(matmul(x_ref[...], w1t_ref[...], b1_ref[...]),
                  g1_ref[...], be1_ref[...]), 0.0)

    # fc2..fc6: ResLinear blocks, relu(bn(fc(h)) + h)       (256 -> 256)
    for i in range(N_RES):                                  # static unroll
        y = _bn_train(matmul(h, wrt_ref[i], br_ref[i]), gr_ref[i], ber_ref[i])
        h = jnp.maximum(y + h, 0.0)

    # fc7 -> bn7 -> relu                                    (256 -> 32)
    h = jnp.maximum(
        _bn_train(matmul(h, w7t_ref[...], b7_ref[...]),
                  g7_ref[...], be7_ref[...]), 0.0)

    # fc8 -> relu (32 -> 1): VPU multiply + lane reduction, written once.
    y = jnp.sum(h * w8_ref[...], axis=1, keepdims=True) + b8_ref[...]
    o_ref[...] = jnp.maximum(y, 0.0)


# ------------------------------ wrapper / params ------------------------------

def init_params(dim, key):
    """PyTorch-layout parameters (W: [out, in], b: [out]) for ResPair_Distance2(dim)."""
    keys = iter(jax.random.split(key, 64))

    def w(shape):
        return jax.random.normal(next(keys), shape, jnp.float32) * 0.1

    def bn(c):
        return dict(gamma=jnp.ones((c,), jnp.float32),
                    beta=jnp.zeros((c,), jnp.float32))

    def res():
        return dict(w=w((256, 256)), b=w((256,)), bn=bn(256))

    return dict(
        fc1_w=w((256, dim)), fc1_b=w((256,)), bn1=bn(256),
        res=[res() for _ in range(N_RES)],          # fc2 .. fc6
        fc7_w=w((32, 256)), fc7_b=w((32,)), bn7=bn(32),
        fc8_w=w((1, 32)), fc8_b=w((1,)),
    )


def pack_params(p):
    """One-time host-side packing: transpose weights to [in, out], cast matmul
    weights to bf16, stack the 5 ResLinear blocks behind a static leading axis."""
    def row(v):
        return v.reshape(1, -1).astype(jnp.float32)

    return dict(
        w1t=p['fc1_w'].T.astype(jnp.bfloat16), b1=row(p['fc1_b']),
        g1=row(p['bn1']['gamma']), be1=row(p['bn1']['beta']),
        wrt=jnp.stack([q['w'].T for q in p['res']]).astype(jnp.bfloat16),  # [5,256,256]
        br=jnp.stack([row(q['b']) for q in p['res']]),                     # [5,1,256]
        gr=jnp.stack([row(q['bn']['gamma']) for q in p['res']]),           # [5,1,256]
        ber=jnp.stack([row(q['bn']['beta']) for q in p['res']]),           # [5,1,256]
        w7t=p['fc7_w'].T.astype(jnp.bfloat16), b7=row(p['fc7_b']),
        g7=row(p['bn7']['gamma']), be7=row(p['bn7']['beta']),
        w8=p['fc8_w'].reshape(1, -1).astype(jnp.float32),                  # [1,32]
        b8=p['fc8_b'].reshape(1, 1).astype(jnp.float32),                   # [1,1]
    )


@jax.jit
def respair_distance2(packed, x):
    B = x.shape[0]
    inputs = (x,
              packed['w1t'], packed['b1'], packed['g1'], packed['be1'],
              packed['wrt'], packed['br'], packed['gr'], packed['ber'],
              packed['w7t'], packed['b7'], packed['g7'], packed['be7'],
              packed['w8'], packed['b8'])
    return pl.pallas_call(
        _respair_kernel,
        out_shape=jax.ShapeDtypeStruct((B, 1), jnp.float32),
        in_specs=[pl.BlockSpec(memory_space=VMEM)] * len(inputs),
        out_specs=pl.BlockSpec(memory_space=VMEM),
        compiler_params=pltpu.CompilerParams(vmem_limit_bytes=64 * 1024 * 1024),
    )(*inputs)


# -------------------------------- JAX reference --------------------------------

def reference(packed, x):
    # Same mixed precision as the kernel (bf16 matmul operands, f32 elsewhere).
    def matmul(h, wt, b):
        return jnp.dot(h.astype(jnp.bfloat16), wt,
                       preferred_element_type=jnp.float32) + b

    h = jax.nn.relu(_bn_train(matmul(x, packed['w1t'], packed['b1']),
                              packed['g1'], packed['be1']))
    for i in range(N_RES):
        y = _bn_train(matmul(h, packed['wrt'][i], packed['br'][i]),
                      packed['gr'][i], packed['ber'][i])
        h = jax.nn.relu(y + h)
    h = jax.nn.relu(_bn_train(matmul(h, packed['w7t'], packed['b7']),
                              packed['g7'], packed['be7']))
    y = jnp.sum(h * packed['w8'], axis=1, keepdims=True) + packed['b8']
    return jax.nn.relu(y)


# ------------------------------------ main ------------------------------------

if __name__ == "__main__":
    dim, batch = 64, 64

    key = jax.random.PRNGKey(0)
    kx, kp = jax.random.split(key)
    x = jax.random.normal(kx, (batch, dim), jnp.float32)

    params = init_params(dim, kp)
    packed = pack_params(params)      # hoisted one-time packing (not per call)

    out = jax.block_until_ready(respair_distance2(packed, x))
    ref = reference(packed, x)

    assert out.shape == (batch, 1)
    assert bool(jnp.all(jnp.isfinite(out)))
    assert bool(jnp.allclose(out, ref, atol=3e-2, rtol=3e-2)), \
        float(jnp.max(jnp.abs(out - ref)))
    print("KERNEL_OK")
</pallas_src>

<mosaic_0001>
module attributes {stable_mosaic.version = 11 : i64} {
  func.func @_respair_kernel(%arg0: memref<64x64xf32, #tpu.memory_space<vmem>>, %arg1: memref<64x256xbf16, #tpu.memory_space<vmem>>, %arg2: memref<1x256xf32, #tpu.memory_space<vmem>>, %arg3: memref<1x256xf32, #tpu.memory_space<vmem>>, %arg4: memref<1x256xf32, #tpu.memory_space<vmem>>, %arg5: memref<5x256x256xbf16, #tpu.memory_space<vmem>>, %arg6: memref<5x1x256xf32, #tpu.memory_space<vmem>>, %arg7: memref<5x1x256xf32, #tpu.memory_space<vmem>>, %arg8: memref<5x1x256xf32, #tpu.memory_space<vmem>>, %arg9: memref<256x32xbf16, #tpu.memory_space<vmem>>, %arg10: memref<1x32xf32, #tpu.memory_space<vmem>>, %arg11: memref<1x32xf32, #tpu.memory_space<vmem>>, %arg12: memref<1x32xf32, #tpu.memory_space<vmem>>, %arg13: memref<1x32xf32, #tpu.memory_space<vmem>>, %arg14: memref<1x1xf32, #tpu.memory_space<vmem>>, %arg15: memref<64x1xf32, #tpu.memory_space<vmem>>) attributes {dimension_semantics = [], scalar_prefetch = 0 : i64, scratch_operands = 0 : i64, tpu.core_type = #tpu.core_type<tc>} {
    %c0 = arith.constant 0 : index
    %c0_0 = arith.constant 0 : index
    %0 = vector.load %arg0[%c0, %c0_0] : memref<64x64xf32, #tpu.memory_space<vmem>>, vector<64x64xf32>
    %c0_1 = arith.constant 0 : index
    %c0_2 = arith.constant 0 : index
    %1 = vector.load %arg1[%c0_1, %c0_2] : memref<64x256xbf16, #tpu.memory_space<vmem>>, vector<64x256xbf16>
    %c0_3 = arith.constant 0 : index
    %c0_4 = arith.constant 0 : index
    %2 = vector.load %arg2[%c0_3, %c0_4] : memref<1x256xf32, #tpu.memory_space<vmem>>, vector<1x256xf32>
    %3 = arith.truncf %0 : vector<64x64xf32> to vector<64x64xbf16>
    %cst = arith.constant dense<0.000000e+00> : vector<64x256xf32>
    %4 = tpu.matmul %3, %1, %cst {dimension_numbers = #tpu.dot_dimension_numbers<[1], [0], [0], [1], [0, 0, 1, 1], [], []>} : vector<64x64xbf16>, vector<64x256xbf16>, vector<64x256xf32> -> vector<64x256xf32>
    %5 = vector.broadcast %2 : vector<1x256xf32> to vector<64x256xf32>
    %6 = arith.addf %4, %5 : vector<64x256xf32>
    %c0_5 = arith.constant 0 : index
    %c0_6 = arith.constant 0 : index
    %7 = vector.load %arg3[%c0_5, %c0_6] : memref<1x256xf32, #tpu.memory_space<vmem>>, vector<1x256xf32>
    %c0_7 = arith.constant 0 : index
    %c0_8 = arith.constant 0 : index
    %8 = vector.load %arg4[%c0_7, %c0_8] : memref<1x256xf32, #tpu.memory_space<vmem>>, vector<1x256xf32>
    %cst_9 = arith.constant dense<0.000000e+00> : vector<256xf32>
    %9 = vector.multi_reduction <add>, %6, %cst_9 [0] : vector<64x256xf32> to vector<256xf32>
    %10 = vector.shape_cast %9 : vector<256xf32> to vector<1x256xf32>
    %cst_10 = arith.constant 6.400000e+01 : f32
    %11 = vector.broadcast %cst_10 : f32 to vector<1x256xf32>
    %12 = arith.divf %10, %11 : vector<1x256xf32>
    %13 = vector.broadcast %12 : vector<1x256xf32> to vector<64x256xf32>
    %14 = arith.subf %6, %13 : vector<64x256xf32>
    %15 = arith.mulf %14, %14 : vector<64x256xf32>
    %cst_11 = arith.constant dense<0.000000e+00> : vector<256xf32>
    %16 = vector.multi_reduction <add>, %15, %cst_11 [0] : vector<64x256xf32> to vector<256xf32>
    %17 = vector.shape_cast %16 : vector<256xf32> to vector<1x256xf32>
    %cst_12 = arith.constant 6.400000e+01 : f32
    %18 = vector.broadcast %cst_12 : f32 to vector<1x256xf32>
    %19 = arith.divf %17, %18 : vector<1x256xf32>
    %20 = vector.broadcast %12 : vector<1x256xf32> to vector<64x256xf32>
    %21 = arith.subf %6, %20 : vector<64x256xf32>
    %cst_13 = arith.constant 9.99999974E-6 : f32
    %22 = vector.broadcast %cst_13 : f32 to vector<1x256xf32>
    %23 = arith.addf %19, %22 : vector<1x256xf32>
    %24 = math.rsqrt %23 : vector<1x256xf32>
    %25 = vector.broadcast %24 : vector<1x256xf32> to vector<64x256xf32>
    %26 = arith.mulf %21, %25 : vector<64x256xf32>
    %27 = vector.broadcast %7 : vector<1x256xf32> to vector<64x256xf32>
    %28 = arith.mulf %26, %27 : vector<64x256xf32>
    %29 = vector.broadcast %8 : vector<1x256xf32> to vector<64x256xf32>
    %30 = arith.addf %28, %29 : vector<64x256xf32>
    %cst_14 = arith.constant 0.000000e+00 : f32
    %31 = vector.broadcast %cst_14 : f32 to vector<64x256xf32>
    %32 = arith.maximumf %30, %31 : vector<64x256xf32>
    %c0_15 = arith.constant 0 : index
    %c0_16 = arith.constant 0 : index
    %c0_17 = arith.constant 0 : index
    %33 = vector.load %arg5[%c0_15, %c0_16, %c0_17] : memref<5x256x256xbf16, #tpu.memory_space<vmem>>, vector<1x256x256xbf16>
    %34 = vector.shape_cast %33 : vector<1x256x256xbf16> to vector<256x256xbf16>
    %c0_18 = arith.constant 0 : index
    %c0_19 = arith.constant 0 : index
    %c0_20 = arith.constant 0 : index
    %35 = vector.load %arg6[%c0_18, %c0_19, %c0_20] : memref<5x1x256xf32, #tpu.memory_space<vmem>>, vector<1x1x256xf32>
    %36 = vector.shape_cast %35 : vector<1x1x256xf32> to vector<1x256xf32>
    %37 = arith.truncf %32 : vector<64x256xf32> to vector<64x256xbf16>
    %cst_21 = arith.constant dense<0.000000e+00> : vector<64x256xf32>
    %38 = tpu.matmul %37, %34, %cst_21 {dimension_numbers = #tpu.dot_dimension_numbers<[1], [0], [0], [1], [0, 0, 1, 1], [], []>} : vector<64x256xbf16>, vector<256x256xbf16>, vector<64x256xf32> -> vector<64x256xf32>
    %39 = vector.broadcast %36 : vector<1x256xf32> to vector<64x256xf32>
    %40 = arith.addf %38, %39 : vector<64x256xf32>
    %c0_22 = arith.constant 0 : index
    %c0_23 = arith.constant 0 : index
    %c0_24 = arith.constant 0 : index
    %41 = vector.load %arg7[%c0_22, %c0_23, %c0_24] : memref<5x1x256xf32, #tpu.memory_space<vmem>>, vector<1x1x256xf32>
    %42 = vector.shape_cast %41 : vector<1x1x256xf32> to vector<1x256xf32>
    %c0_25 = arith.constant 0 : index
    %c0_26 = arith.constant 0 : index
    %c0_27 = arith.constant 0 : index
    %43 = vector.load %arg8[%c0_25, %c0_26, %c0_27] : memref<5x1x256xf32, #tpu.memory_space<vmem>>, vector<1x1x256xf32>
    %44 = vector.shape_cast %43 : vector<1x1x256xf32> to vector<1x256xf32>
    %cst_28 = arith.constant dense<0.000000e+00> : vector<256xf32>
    %45 = vector.multi_reduction <add>, %40, %cst_28 [0] : vector<64x256xf32> to vector<256xf32>
    %46 = vector.shape_cast %45 : vector<256xf32> to vector<1x256xf32>
    %cst_29 = arith.constant 6.400000e+01 : f32
    %47 = vector.broadcast %cst_29 : f32 to vector<1x256xf32>
    %48 = arith.divf %46, %47 : vector<1x256xf32>
    %49 = vector.broadcast %48 : vector<1x256xf32> to vector<64x256xf32>
    %50 = arith.subf %40, %49 : vector<64x256xf32>
    %51 = arith.mulf %50, %50 : vector<64x256xf32>
    %cst_30 = arith.constant dense<0.000000e+00> : vector<256xf32>
    %52 = vector.multi_reduction <add>, %51, %cst_30 [0] : vector<64x256xf32> to vector<256xf32>
    %53 = vector.shape_cast %52 : vector<256xf32> to vector<1x256xf32>
    %cst_31 = arith.constant 6.400000e+01 : f32
    %54 = vector.broadcast %cst_31 : f32 to vector<1x256xf32>
    %55 = arith.divf %53, %54 : vector<1x256xf32>
    %56 = vector.broadcast %48 : vector<1x256xf32> to vector<64x256xf32>
    %57 = arith.subf %40, %56 : vector<64x256xf32>
    %cst_32 = arith.constant 9.99999974E-6 : f32
    %58 = vector.broadcast %cst_32 : f32 to vector<1x256xf32>
    %59 = arith.addf %55, %58 : vector<1x256xf32>
    %60 = math.rsqrt %59 : vector<1x256xf32>
    %61 = vector.broadcast %60 : vector<1x256xf32> to vector<64x256xf32>
    %62 = arith.mulf %57, %61 : vector<64x256xf32>
    %63 = vector.broadcast %42 : vector<1x256xf32> to vector<64x256xf32>
    %64 = arith.mulf %62, %63 : vector<64x256xf32>
    %65 = vector.broadcast %44 : vector<1x256xf32> to vector<64x256xf32>
    %66 = arith.addf %64, %65 : vector<64x256xf32>
    %67 = arith.addf %66, %32 : vector<64x256xf32>
    %cst_33 = arith.constant 0.000000e+00 : f32
    %68 = vector.broadcast %cst_33 : f32 to vector<64x256xf32>
    %69 = arith.maximumf %67, %68 : vector<64x256xf32>
    %c1 = arith.constant 1 : index
    %c0_34 = arith.constant 0 : index
    %c0_35 = arith.constant 0 : index
    %70 = vector.load %arg5[%c1, %c0_34, %c0_35] : memref<5x256x256xbf16, #tpu.memory_space<vmem>>, vector<1x256x256xbf16>
    %71 = vector.shape_cast %70 : vector<1x256x256xbf16> to vector<256x256xbf16>
    %c1_36 = arith.constant 1 : index
    %c0_37 = arith.constant 0 : index
    %c0_38 = arith.constant 0 : index
    %72 = vector.load %arg6[%c1_36, %c0_37, %c0_38] : memref<5x1x256xf32, #tpu.memory_space<vmem>>, vector<1x1x256xf32>
    %73 = vector.shape_cast %72 : vector<1x1x256xf32> to vector<1x256xf32>
    %74 = arith.truncf %69 : vector<64x256xf32> to vector<64x256xbf16>
    %cst_39 = arith.constant dense<0.000000e+00> : vector<64x256xf32>
    %75 = tpu.matmul %74, %71, %cst_39 {dimension_numbers = #tpu.dot_dimension_numbers<[1], [0], [0], [1], [0, 0, 1, 1], [], []>} : vector<64x256xbf16>, vector<256x256xbf16>, vector<64x256xf32> -> vector<64x256xf32>
    %76 = vector.broadcast %73 : vector<1x256xf32> to vector<64x256xf32>
    %77 = arith.addf %75, %76 : vector<64x256xf32>
    %c1_40 = arith.constant 1 : index
    %c0_41 = arith.constant 0 : index
    %c0_42 = arith.constant 0 : index
    %78 = vector.load %arg7[%c1_40, %c0_41, %c0_42] : memref<5x1x256xf32, #tpu.memory_space<vmem>>, vector<1x1x256xf32>
    %79 = vector.shape_cast %78 : vector<1x1x256xf32> to vector<1x256xf32>
    %c1_43 = arith.constant 1 : index
    %c0_44 = arith.constant 0 : index
    %c0_45 = arith.constant 0 : index
    %80 = vector.load %arg8[%c1_43, %c0_44, %c0_45] : memref<5x1x256xf32, #tpu.memory_space<vmem>>, vector<1x1x256xf32>
    %81 = vector.shape_cast %80 : vector<1x1x256xf32> to vector<1x256xf32>
    %cst_46 = arith.constant dense<0.000000e+00> : vector<256xf32>
    %82 = vector.multi_reduction <add>, %77, %cst_46 [0] : vector<64x256xf32> to vector<256xf32>
    %83 = vector.shape_cast %82 : vector<256xf32> to vector<1x256xf32>
    %cst_47 = arith.constant 6.400000e+01 : f32
    %84 = vector.broadcast %cst_47 : f32 to vector<1x256xf32>
    %85 = arith.divf %83, %84 : vector<1x256xf32>
    %86 = vector.broadcast %85 : vector<1x256xf32> to vector<64x256xf32>
    %87 = arith.subf %77, %86 : vector<64x256xf32>
    %88 = arith.mulf %87, %87 : vector<64x256xf32>
    %cst_48 = arith.constant dense<0.000000e+00> : vector<256xf32>
    %89 = vector.multi_reduction <add>, %88, %cst_48 [0] : vector<64x256xf32> to vector<256xf32>
    %90 = vector.shape_cast %89 : vector<256xf32> to vector<1x256xf32>
    %cst_49 = arith.constant 6.400000e+01 : f32
    %91 = vector.broadcast %cst_49 : f32 to vector<1x256xf32>
    %92 = arith.divf %90, %91 : vector<1x256xf32>
    %93 = vector.broadcast %85 : vector<1x256xf32> to vector<64x256xf32>
    %94 = arith.subf %77, %93 : vector<64x256xf32>
    %cst_50 = arith.constant 9.99999974E-6 : f32
    %95 = vector.broadcast %cst_50 : f32 to vector<1x256xf32>
    %96 = arith.addf %92, %95 : vector<1x256xf32>
    %97 = math.rsqrt %96 : vector<1x256xf32>
    %98 = vector.broadcast %97 : vector<1x256xf32> to vector<64x256xf32>
    %99 = arith.mulf %94, %98 : vector<64x256xf32>
    %100 = vector.broadcast %79 : vector<1x256xf32> to vector<64x256xf32>
    %101 = arith.mulf %99, %100 : vector<64x256xf32>
    %102 = vector.broadcast %81 : vector<1x256xf32> to vector<64x256xf32>
    %103 = arith.addf %101, %102 : vector<64x256xf32>
    %104 = arith.addf %103, %69 : vector<64x256xf32>
    %cst_51 = arith.constant 0.000000e+00 : f32
    %105 = vector.broadcast %cst_51 : f32 to vector<64x256xf32>
    %106 = arith.maximumf %104, %105 : vector<64x256xf32>
    %c2 = arith.constant 2 : index
    %c0_52 = arith.constant 0 : index
    %c0_53 = arith.constant 0 : index
    %107 = vector.load %arg5[%c2, %c0_52, %c0_53] : memref<5x256x256xbf16, #tpu.memory_space<vmem>>, vector<1x256x256xbf16>
    %108 = vector.shape_cast %107 : vector<1x256x256xbf16> to vector<256x256xbf16>
    %c2_54 = arith.constant 2 : index
    %c0_55 = arith.constant 0 : index
    %c0_56 = arith.constant 0 : index
    %109 = vector.load %arg6[%c2_54, %c0_55, %c0_56] : memref<5x1x256xf32, #tpu.memory_space<vmem>>, vector<1x1x256xf32>
    %110 = vector.shape_cast %109 : vector<1x1x256xf32> to vector<1x256xf32>
    %111 = arith.truncf %106 : vector<64x256xf32> to vector<64x256xbf16>
    %cst_57 = arith.constant dense<0.000000e+00> : vector<64x256xf32>
    %112 = tpu.matmul %111, %108, %cst_57 {dimension_numbers = #tpu.dot_dimension_numbers<[1], [0], [0], [1], [0, 0, 1, 1], [], []>} : vector<64x256xbf16>, vector<256x256xbf16>, vector<64x256xf32> -> vector<64x256xf32>
    %113 = vector.broadcast %110 : vector<1x256xf32> to vector<64x256xf32>
    %114 = arith.addf %112, %113 : vector<64x256xf32>
    %c2_58 = arith.constant 2 : index
    %c0_59 = arith.constant 0 : index
    %c0_60 = arith.constant 0 : index
    %115 = vector.load %arg7[%c2_58, %c0_59, %c0_60] : memref<5x1x256xf32, #tpu.memory_space<vmem>>, vector<1x1x256xf32>
    %116 = vector.shape_cast %115 : vector<1x1x256xf32> to vector<1x256xf32>
    %c2_61 = arith.constant 2 : index
    %c0_62 = arith.constant 0 : index
    %c0_63 = arith.constant 0 : index
    %117 = vector.load %arg8[%c2_61, %c0_62, %c0_63] : memref<5x1x256xf32, #tpu.memory_space<vmem>>, vector<1x1x256xf32>
    %118 = vector.shape_cast %117 : vector<1x1x256xf32> to vector<1x256xf32>
    %cst_64 = arith.constant dense<0.000000e+00> : vector<256xf32>
    %119 = vector.multi_reduction <add>, %114, %cst_64 [0] : vector<64x256xf32> to vector<256xf32>
    %120 = vector.shape_cast %119 : vector<256xf32> to vector<1x256xf32>
    %cst_65 = arith.constant 6.400000e+01 : f32
    %121 = vector.broadcast %cst_65 : f32 to vector<1x256xf32>
    %122 = arith.divf %120, %121 : vector<1x256xf32>
    %123 = vector.broadcast %122 : vector<1x256xf32> to vector<64x256xf32>
    %124 = arith.subf %114, %123 : vector<64x256xf32>
    %125 = arith.mulf %124, %124 : vector<64x256xf32>
    %cst_66 = arith.constant dense<0.000000e+00> : vector<256xf32>
    %126 = vector.multi_reduction <add>, %125, %cst_66 [0] : vector<64x256xf32> to vector<256xf32>
    %127 = vector.shape_cast %126 : vector<256xf32> to vector<1x256xf32>
    %cst_67 = arith.constant 6.400000e+01 : f32
    %128 = vector.broadcast %cst_67 : f32 to vector<1x256xf32>
    %129 = arith.divf %127, %128 : vector<1x256xf32>
    %130 = vector.broadcast %122 : vector<1x256xf32> to vector<64x256xf32>
    %131 = arith.subf %114, %130 : vector<64x256xf32>
    %cst_68 = arith.constant 9.99999974E-6 : f32
    %132 = vector.broadcast %cst_68 : f32 to vector<1x256xf32>
    %133 = arith.addf %129, %132 : vector<1x256xf32>
    %134 = math.rsqrt %133 : vector<1x256xf32>
    %135 = vector.broadcast %134 : vector<1x256xf32> to vector<64x256xf32>
    %136 = arith.mulf %131, %135 : vector<64x256xf32>
    %137 = vector.broadcast %116 : vector<1x256xf32> to vector<64x256xf32>
    %138 = arith.mulf %136, %137 : vector<64x256xf32>
    %139 = vector.broadcast %118 : vector<1x256xf32> to vector<64x256xf32>
    %140 = arith.addf %138, %139 : vector<64x256xf32>
    %141 = arith.addf %140, %106 : vector<64x256xf32>
    %cst_69 = arith.constant 0.000000e+00 : f32
    %142 = vector.broadcast %cst_69 : f32 to vector<64x256xf32>
    %143 = arith.maximumf %141, %142 : vector<64x256xf32>
    %c3 = arith.constant 3 : index
    %c0_70 = arith.constant 0 : index
    %c0_71 = arith.constant 0 : index
    %144 = vector.load %arg5[%c3, %c0_70, %c0_71] : memref<5x256x256xbf16, #tpu.memory_space<vmem>>, vector<1x256x256xbf16>
    %145 = vector.shape_cast %144 : vector<1x256x256xbf16> to vector<256x256xbf16>
    %c3_72 = arith.constant 3 : index
    %c0_73 = arith.constant 0 : index
    %c0_74 = arith.constant 0 : index
    %146 = vector.load %arg6[%c3_72, %c0_73, %c0_74] : memref<5x1x256xf32, #tpu.memory_space<vmem>>, vector<1x1x256xf32>
    %147 = vector.shape_cast %146 : vector<1x1x256xf32> to vector<1x256xf32>
    %148 = arith.truncf %143 : vector<64x256xf32> to vector<64x256xbf16>
    %cst_75 = arith.constant dense<0.000000e+00> : vector<64x256xf32>
    %149 = tpu.matmul %148, %145, %cst_75 {dimension_numbers = #tpu.dot_dimension_numbers<[1], [0], [0], [1], [0, 0, 1, 1], [], []>} : vector<64x256xbf16>, vector<256x256xbf16>, vector<64x256xf32> -> vector<64x256xf32>
    %150 = vector.broadcast %147 : vector<1x256xf32> to vector<64x256xf32>
    %151 = arith.addf %149, %150 : vector<64x256xf32>
    %c3_76 = arith.constant 3 : index
    %c0_77 = arith.constant 0 : index
    %c0_78 = arith.constant 0 : index
    %152 = vector.load %arg7[%c3_76, %c0_77, %c0_78] : memref<5x1x256xf32, #tpu.memory_space<vmem>>, vector<1x1x256xf32>
    %153 = vector.shape_cast %152 : vector<1x1x256xf32> to vector<1x256xf32>
    %c3_79 = arith.constant 3 : index
    %c0_80 = arith.constant 0 : index
    %c0_81 = arith.constant 0 : index
    %154 = vector.load %arg8[%c3_79, %c0_80, %c0_81] : memref<5x1x256xf32, #tpu.memory_space<vmem>>, vector<1x1x256xf32>
    %155 = vector.shape_cast %154 : vector<1x1x256xf32> to vector<1x256xf32>
    %cst_82 = arith.constant dense<0.000000e+00> : vector<256xf32>
    %156 = vector.multi_reduction <add>, %151, %cst_82 [0] : vector<64x256xf32> to vector<256xf32>
    %157 = vector.shape_cast %156 : vector<256xf32> to vector<1x256xf32>
    %cst_83 = arith.constant 6.400000e+01 : f32
    %158 = vector.broadcast %cst_83 : f32 to vector<1x256xf32>
    %159 = arith.divf %157, %158 : vector<1x256xf32>
    %160 = vector.broadcast %159 : vector<1x256xf32> to vector<64x256xf32>
    %161 = arith.subf %151, %160 : vector<64x256xf32>
    %162 = arith.mulf %161, %161 : vector<64x256xf32>
    %cst_84 = arith.constant dense<0.000000e+00> : vector<256xf32>
    %163 = vector.multi_reduction <add>, %162, %cst_84 [0] : vector<64x256xf32> to vector<256xf32>
    %164 = vector.shape_cast %163 : vector<256xf32> to vector<1x256xf32>
    %cst_85 = arith.constant 6.400000e+01 : f32
    %165 = vector.broadcast %cst_85 : f32 to vector<1x256xf32>
    %166 = arith.divf %164, %165 : vector<1x256xf32>
    %167 = vector.broadcast %159 : vector<1x256xf32> to vector<64x256xf32>
    %168 = arith.subf %151, %167 : vector<64x256xf32>
    %cst_86 = arith.constant 9.99999974E-6 : f32
    %169 = vector.broadcast %cst_86 : f32 to vector<1x256xf32>
    %170 = arith.addf %166, %169 : vector<1x256xf32>
    %171 = math.rsqrt %170 : vector<1x256xf32>
    %172 = vector.broadcast %171 : vector<1x256xf32> to vector<64x256xf32>
    %173 = arith.mulf %168, %172 : vector<64x256xf32>
    %174 = vector.broadcast %153 : vector<1x256xf32> to vector<64x256xf32>
    %175 = arith.mulf %173, %174 : vector<64x256xf32>
    %176 = vector.broadcast %155 : vector<1x256xf32> to vector<64x256xf32>
    %177 = arith.addf %175, %176 : vector<64x256xf32>
    %178 = arith.addf %177, %143 : vector<64x256xf32>
    %cst_87 = arith.constant 0.000000e+00 : f32
    %179 = vector.broadcast %cst_87 : f32 to vector<64x256xf32>
    %180 = arith.maximumf %178, %179 : vector<64x256xf32>
    %c4 = arith.constant 4 : index
    %c0_88 = arith.constant 0 : index
    %c0_89 = arith.constant 0 : index
    %181 = vector.load %arg5[%c4, %c0_88, %c0_89] : memref<5x256x256xbf16, #tpu.memory_space<vmem>>, vector<1x256x256xbf16>
    %182 = vector.shape_cast %181 : vector<1x256x256xbf16> to vector<256x256xbf16>
    %c4_90 = arith.constant 4 : index
    %c0_91 = arith.constant 0 : index
    %c0_92 = arith.constant 0 : index
    %183 = vector.load %arg6[%c4_90, %c0_91, %c0_92] : memref<5x1x256xf32, #tpu.memory_space<vmem>>, vector<1x1x256xf32>
    %184 = vector.shape_cast %183 : vector<1x1x256xf32> to vector<1x256xf32>
    %185 = arith.truncf %180 : vector<64x256xf32> to vector<64x256xbf16>
    %cst_93 = arith.constant dense<0.000000e+00> : vector<64x256xf32>
    %186 = tpu.matmul %185, %182, %cst_93 {dimension_numbers = #tpu.dot_dimension_numbers<[1], [0], [0], [1], [0, 0, 1, 1], [], []>} : vector<64x256xbf16>, vector<256x256xbf16>, vector<64x256xf32> -> vector<64x256xf32>
    %187 = vector.broadcast %184 : vector<1x256xf32> to vector<64x256xf32>
    %188 = arith.addf %186, %187 : vector<64x256xf32>
    %c4_94 = arith.constant 4 : index
    %c0_95 = arith.constant 0 : index
    %c0_96 = arith.constant 0 : index
    %189 = vector.load %arg7[%c4_94, %c0_95, %c0_96] : memref<5x1x256xf32, #tpu.memory_space<vmem>>, vector<1x1x256xf32>
    %190 = vector.shape_cast %189 : vector<1x1x256xf32> to vector<1x256xf32>
    %c4_97 = arith.constant 4 : index
    %c0_98 = arith.constant 0 : index
    %c0_99 = arith.constant 0 : index
    %191 = vector.load %arg8[%c4_97, %c0_98, %c0_99] : memref<5x1x256xf32, #tpu.memory_space<vmem>>, vector<1x1x256xf32>
    %192 = vector.shape_cast %191 : vector<1x1x256xf32> to vector<1x256xf32>
    %cst_100 = arith.constant dense<0.000000e+00> : vector<256xf32>
    %193 = vector.multi_reduction <add>, %188, %cst_100 [0] : vector<64x256xf32> to vector<256xf32>
    %194 = vector.shape_cast %193 : vector<256xf32> to vector<1x256xf32>
    %cst_101 = arith.constant 6.400000e+01 : f32
    %195 = vector.broadcast %cst_101 : f32 to vector<1x256xf32>
    %196 = arith.divf %194, %195 : vector<1x256xf32>
    %197 = vector.broadcast %196 : vector<1x256xf32> to vector<64x256xf32>
    %198 = arith.subf %188, %197 : vector<64x256xf32>
    %199 = arith.mulf %198, %198 : vector<64x256xf32>
    %cst_102 = arith.constant dense<0.000000e+00> : vector<256xf32>
    %200 = vector.multi_reduction <add>, %199, %cst_102 [0] : vector<64x256xf32> to vector<256xf32>
    %201 = vector.shape_cast %200 : vector<256xf32> to vector<1x256xf32>
    %cst_103 = arith.constant 6.400000e+01 : f32
    %202 = vector.broadcast %cst_103 : f32 to vector<1x256xf32>
    %203 = arith.divf %201, %202 : vector<1x256xf32>
    %204 = vector.broadcast %196 : vector<1x256xf32> to vector<64x256xf32>
    %205 = arith.subf %188, %204 : vector<64x256xf32>
    %cst_104 = arith.constant 9.99999974E-6 : f32
    %206 = vector.broadcast %cst_104 : f32 to vector<1x256xf32>
    %207 = arith.addf %203, %206 : vector<1x256xf32>
    %208 = math.rsqrt %207 : vector<1x256xf32>
    %209 = vector.broadcast %208 : vector<1x256xf32> to vector<64x256xf32>
    %210 = arith.mulf %205, %209 : vector<64x256xf32>
    %211 = vector.broadcast %190 : vector<1x256xf32> to vector<64x256xf32>
    %212 = arith.mulf %210, %211 : vector<64x256xf32>
    %213 = vector.broadcast %192 : vector<1x256xf32> to vector<64x256xf32>
    %214 = arith.addf %212, %213 : vector<64x256xf32>
    %215 = arith.addf %214, %180 : vector<64x256xf32>
    %cst_105 = arith.constant 0.000000e+00 : f32
    %216 = vector.broadcast %cst_105 : f32 to vector<64x256xf32>
    %217 = arith.maximumf %215, %216 : vector<64x256xf32>
    %c0_106 = arith.constant 0 : index
    %c0_107 = arith.constant 0 : index
    %218 = vector.load %arg9[%c0_106, %c0_107] : memref<256x32xbf16, #tpu.memory_space<vmem>>, vector<256x32xbf16>
    %c0_108 = arith.constant 0 : index
    %c0_109 = arith.constant 0 : index
    %219 = vector.load %arg10[%c0_108, %c0_109] : memref<1x32xf32, #tpu.memory_space<vmem>>, vector<1x32xf32>
    %220 = arith.truncf %217 : vector<64x256xf32> to vector<64x256xbf16>
    %cst_110 = arith.constant dense<0.000000e+00> : vector<64x32xf32>
    %221 = tpu.matmul %220, %218, %cst_110 {dimension_numbers = #tpu.dot_dimension_numbers<[1], [0], [0], [1], [0, 0, 1, 1], [], []>} : vector<64x256xbf16>, vector<256x32xbf16>, vector<64x32xf32> -> vector<64x32xf32>
    %222 = vector.broadcast %219 : vector<1x32xf32> to vector<64x32xf32>
    %223 = arith.addf %221, %222 : vector<64x32xf32>
    %c0_111 = arith.constant 0 : index
    %c0_112 = arith.constant 0 : index
    %224 = vector.load %arg11[%c0_111, %c0_112] : memref<1x32xf32, #tpu.memory_space<vmem>>, vector<1x32xf32>
    %c0_113 = arith.constant 0 : index
    %c0_114 = arith.constant 0 : index
    %225 = vector.load %arg12[%c0_113, %c0_114] : memref<1x32xf32, #tpu.memory_space<vmem>>, vector<1x32xf32>
    %cst_115 = arith.constant dense<0.000000e+00> : vector<32xf32>
    %226 = vector.multi_reduction <add>, %223, %cst_115 [0] : vector<64x32xf32> to vector<32xf32>
    %227 = vector.shape_cast %226 : vector<32xf32> to vector<1x32xf32>
    %cst_116 = arith.constant 6.400000e+01 : f32
    %228 = vector.broadcast %cst_116 : f32 to vector<1x32xf32>
    %229 = arith.divf %227, %228 : vector<1x32xf32>
    %230 = vector.broadcast %229 : vector<1x32xf32> to vector<64x32xf32>
    %231 = arith.subf %223, %230 : vector<64x32xf32>
    %232 = arith.mulf %231, %231 : vector<64x32xf32>
    %cst_117 = arith.constant dense<0.000000e+00> : vector<32xf32>
    %233 = vector.multi_reduction <add>, %232, %cst_117 [0] : vector<64x32xf32> to vector<32xf32>
    %234 = vector.shape_cast %233 : vector<32xf32> to vector<1x32xf32>
    %cst_118 = arith.constant 6.400000e+01 : f32
    %235 = vector.broadcast %cst_118 : f32 to vector<1x32xf32>
    %236 = arith.divf %234, %235 : vector<1x32xf32>
    %237 = vector.broadcast %229 : vector<1x32xf32> to vector<64x32xf32>
    %238 = arith.subf %223, %237 : vector<64x32xf32>
    %cst_119 = arith.constant 9.99999974E-6 : f32
    %239 = vector.broadcast %cst_119 : f32 to vector<1x32xf32>
    %240 = arith.addf %236, %239 : vector<1x32xf32>
    %241 = math.rsqrt %240 : vector<1x32xf32>
    %242 = vector.broadcast %241 : vector<1x32xf32> to vector<64x32xf32>
    %243 = arith.mulf %238, %242 : vector<64x32xf32>
    %244 = vector.broadcast %224 : vector<1x32xf32> to vector<64x32xf32>
    %245 = arith.mulf %243, %244 : vector<64x32xf32>
    %246 = vector.broadcast %225 : vector<1x32xf32> to vector<64x32xf32>
    %247 = arith.addf %245, %246 : vector<64x32xf32>
    %cst_120 = arith.constant 0.000000e+00 : f32
    %248 = vector.broadcast %cst_120 : f32 to vector<64x32xf32>
    %249 = arith.maximumf %247, %248 : vector<64x32xf32>
    %c0_121 = arith.constant 0 : index
    %c0_122 = arith.constant 0 : index
    %250 = vector.load %arg13[%c0_121, %c0_122] : memref<1x32xf32, #tpu.memory_space<vmem>>, vector<1x32xf32>
    %251 = vector.broadcast %250 : vector<1x32xf32> to vector<64x32xf32>
    %252 = arith.mulf %249, %251 : vector<64x32xf32>
    %cst_123 = arith.constant dense<0.000000e+00> : vector<64xf32>
    %253 = vector.multi_reduction <add>, %252, %cst_123 [1] : vector<64x32xf32> to vector<64xf32>
    %254 = vector.shape_cast %253 : vector<64xf32> to vector<64x1xf32>
    %c0_124 = arith.constant 0 : index
    %c0_125 = arith.constant 0 : index
    %255 = vector.load %arg14[%c0_124, %c0_125] : memref<1x1xf32, #tpu.memory_space<vmem>>, vector<1x1xf32>
    %256 = vector.broadcast %255 : vector<1x1xf32> to vector<64x1xf32>
    %257 = arith.addf %254, %256 : vector<64x1xf32>
    %cst_126 = arith.constant 0.000000e+00 : f32
    %258 = vector.broadcast %cst_126 : f32 to vector<64x1xf32>
    %259 = arith.maximumf %257, %258 : vector<64x1xf32>
    %c0_127 = arith.constant 0 : index
    %c0_128 = arith.constant 0 : index
    %260 = vector.load %arg15[%c0_127, %c0_128] : memref<64x1xf32, #tpu.memory_space<vmem>>, vector<64x1xf32>
    tpu.vector_store %arg15[%c0_127, %c0_128], %259 {strides = array<i32>} : memref<64x1xf32, #tpu.memory_space<vmem>>, vector<64x1xf32>,
    return
  }
}

</mosaic_0001>

<llo_original>
// kernel: respair_distance2.1
$region0: #{respair_distance2.1}
  #allocation0 [shape = 'u32[]', space=smem, size = 0x4, offset = 0x4, fixed_abs, tag = 'smem constant byte address 0x4 - core index']
  #allocation1 [shape = 'u32[72,128]{1,0:T(1,128)}', space=vmem, size = 0x9000, scoped, tag = 'internal scratch']
  #allocation2 [shape = 'f32[1,1]{1,0:T(1,128)S(1)}', space=vmem, size = 0x200, scoped, tag = 'scoped memory for respair_distance2.1']
  %s0 = inlined_call_operand.vmem [shape: f32[64,64], index: 0, kind: input, shape index: {}]
  %s1 = inlined_call_operand.vmem [shape: bf16[64,256], index: 1, kind: input, shape index: {}]
  %s2 = inlined_call_operand.vmem [shape: f32[1,256], index: 2, kind: input, shape index: {}]
  %s3 = inlined_call_operand.vmem [shape: f32[1,256], index: 3, kind: input, shape index: {}]
  %s4 = inlined_call_operand.hbm [shape: f32[1,256], index: 4, kind: input, shape index: {}]
  %s5 = inlined_call_operand.hbm [shape: bf16[5,256,256], index: 5, kind: input, shape index: {}]
  %s6 = inlined_call_operand.vmem [shape: f32[5,1,256], index: 6, kind: input, shape index: {}]
  %s7 = inlined_call_operand.vmem [shape: f32[5,1,256], index: 7, kind: input, shape index: {}]
  %s8 = inlined_call_operand.vmem [shape: f32[5,1,256], index: 8, kind: input, shape index: {}]
  %s9 = inlined_call_operand.vmem [shape: bf16[256,32], index: 9, kind: input, shape index: {}]
  %s10 = inlined_call_operand.hbm [shape: f32[1,32], index: 10, kind: input, shape index: {}]
  %s11 = inlined_call_operand.vmem [shape: f32[1,32], index: 11, kind: input, shape index: {}]
  %s12 = inlined_call_operand.hbm [shape: f32[1,32], index: 12, kind: input, shape index: {}]
  %s13 = inlined_call_operand.vmem [shape: f32[1,32], index: 13, kind: input, shape index: {}]
  %s14 = inlined_call_operand.<no memory space> [shape: f32[1,1], index: 14, kind: input, shape index: {}]
  %s15 = inlined_call_operand.vmem [shape: f32[64,1], index: 15, kind: output, shape index: {}]
  %s16 = sld [smem:[#allocation0]]
  $region86: #{respair_distance2.1} parent=0
    _
  %s18 = ssub.s32 1, %s16
  %s19 = scalar_select 0, %s18, %s16
  %v20 = vstv %s14
  %21 = vst [vmem:[#allocation2] sm:$0x1] %v20
  $region1: #{respair_distance2.1} parent=0
    #allocation3 [shape = 'u8[1024]{0}', space=vmem, size = 0x400, scoped, tag = 'input window, operand 4, single buffered']
    #allocation4 [shape = 's32[1]{0}', space=sflag, size = 0x4, scoped, tag = 'scoped memory for respair_distance2.1']
    #allocation5 [shape = 'u8[655360]{0}', space=vmem, size = 0xa0000, scoped, tag = 'input window, operand 5, single buffered']
    #allocation6 [shape = 's32[1]{0}', space=sflag, size = 0x4, scoped, tag = 'scoped memory for respair_distance2.1']
    #allocation7 [shape = 'u8[512]{0}', space=vmem, size = 0x400, scoped, tag = 'input window, operand 10, single buffered']
    #allocation8 [shape = 'u8[512]{0}', space=vmem, size = 0x400, scoped, tag = 'input window, operand 12, single buffered']
    #allocation9 [shape = 's32[1]{0}', space=sflag, size = 0x4, scoped, tag = 'scoped memory for respair_distance2.1']
    %22 = vsyncpa [#allocation4], 0
    %23 = vsyncpa [#allocation6], 0
    %24 = vsyncpa [#allocation9], 0
    // Predicated region
    $region2: #{respair_distance2.1} parent=1 // pred_check
      _
    $region3: #{respair_distance2.1} parent=1 // pred_check_branch
      %26 = sbr.rel (0) target = $region5
    $region4: #{respair_distance2.1} parent=1 // pred_region
      _
    $region5: #{respair_distance2.1} parent=1 // pred_fallthru
      _
    // Predicated region
    $region6: #{respair_distance2.1} parent=1 // pred_check
      _
    $region7: #{respair_distance2.1} parent=1 // pred_check_branch
      %28 = sbr.rel (0) target = $region9
    $region8: #{respair_distance2.1} parent=1 // pred_region
      _
    $region9: #{respair_distance2.1} parent=1 // pred_fallthru
      _
    // Predicated region
    $region10: #{respair_distance2.1} parent=1 // pred_check
      _
    $region11: #{respair_distance2.1} parent=1 // pred_check_branch
      %30 = sbr.rel (0) target = $region13
    $region12: #{respair_distance2.1} parent=1 // pred_region
      _
    $region13: #{respair_distance2.1} parent=1 // pred_fallthru
      _
    // Predicated region
    $region14: #{respair_distance2.1} parent=1 // pred_check
      _
    $region15: #{respair_distance2.1} parent=1 // pred_check_branch
      %32 = sbr.rel (0) target = $region17
    $region16: #{respair_distance2.1} parent=1 // pred_region
      _
    $region17: #{respair_distance2.1} parent=1 // pred_fallthru
      _
    // Predicated region
    $region18: #{respair_distance2.1} parent=1 // pred_check
      _
    $region19: #{respair_distance2.1} parent=1 // pred_check_branch
      %34 = sbr.rel (0) target = $region21
    $region20: #{respair_distance2.1} parent=1 // pred_region
      %36 = vsyncadd [#allocation4], 0
      %s38 = sshll.u32 %s4, 4
      %s39 = int_to_ptr.hbm [resolvable:$true] %s38
      %s40 = sshll.u32 [#allocation3], 4
      %s41 = int_to_ptr.vmem [resolvable:$true] %s40
      %43 = dma.hbm_to_vmem [thread:$0]  %s39, 32, %s41, [#allocation4]
    $region21: #{respair_distance2.1} parent=1 // pred_fallthru
      _
    // Predicated region
    $region22: #{respair_distance2.1} parent=1 // pred_check
      _
    $region23: #{respair_distance2.1} parent=1 // pred_check_branch
      %45 = sbr.rel (0) target = $region25
    $region24: #{respair_distance2.1} parent=1 // pred_region
      %47 = vsyncadd [#allocation6], 0
      %s48 = sshll.u32 %s5, 4
      %s49 = int_to_ptr.hbm [resolvable:$true] %s48
      %s50 = sshll.u32 [#allocation5], 4
      %s51 = int_to_ptr.vmem [resolvable:$true] %s50
      %56 = dma.hbm_to_vmem [thread:$0]  %s49, 20480, %s51, [#allocation6], 128, 128, 8
    $region25: #{respair_distance2.1} parent=1 // pred_fallthru
      _
    // Predicated region
    $region26: #{respair_distance2.1} parent=1 // pred_check
      _
    $region27: #{respair_distance2.1} parent=1 // pred_check_branch
      %58 = sbr.rel (0) target = $region29
    $region28: #{respair_distance2.1} parent=1 // pred_region
      _
    $region29: #{respair_distance2.1} parent=1 // pred_fallthru
      _
    // Predicated region
    $region30: #{respair_distance2.1} parent=1 // pred_check
      _
    $region31: #{respair_distance2.1} parent=1 // pred_check_branch
      %60 = sbr.rel (0) target = $region33
    $region32: #{respair_distance2.1} parent=1 // pred_region
      _
    $region33: #{respair_distance2.1} parent=1 // pred_fallthru
      _
    // Predicated region
    $region34: #{respair_distance2.1} parent=1 // pred_check
      _
    $region35: #{respair_distance2.1} parent=1 // pred_check_branch
      %62 = sbr.rel (0) target = $region37
    $region36: #{respair_distance2.1} parent=1 // pred_region
      _
    $region37: #{respair_distance2.1} parent=1 // pred_fallthru
      _
    // Predicated region
    $region38: #{respair_distance2.1} parent=1 // pred_check
      _
    $region39: #{respair_distance2.1} parent=1 // pred_check_branch
      %64 = sbr.rel (0) target = $region41
    $region40: #{respair_distance2.1} parent=1 // pred_region
      _
    $region41: #{respair_distance2.1} parent=1 // pred_fallthru
      _
    // Predicated region
    $region42: #{respair_distance2.1} parent=1 // pred_check
      _
    $region43: #{respair_distance2.1} parent=1 // pred_check_branch
      %66 = sbr.rel (0) target = $region45
    $region44: #{respair_distance2.1} parent=1 // pred_region
      %68 = vsyncadd [#allocation6], 0
      %s70 = sshll.u32 %s10, 4
      %s71 = int_to_ptr.hbm [resolvable:$true] %s70
      %s72 = sshll.u32 [#allocation7], 4
      %s73 = int_to_ptr.vmem [resolvable:$true] %s72
      %75 = dma.hbm_to_vmem [thread:$0]  %s71, 16, %s73, [#allocation6]
    $region45: #{respair_distance2.1} parent=1 // pred_fallthru
      _
    // Predicated region
    $region46: #{respair_distance2.1} parent=1 // pred_check
      _
    $region47: #{respair_distance2.1} parent=1 // pred_check_branch
      %77 = sbr.rel (0) target = $region49
    $region48: #{respair_distance2.1} parent=1 // pred_region
      _
    $region49: #{respair_distance2.1} parent=1 // pred_fallthru
      _
    // Predicated region
    $region50: #{respair_distance2.1} parent=1 // pred_check
      _
    $region51: #{respair_distance2.1} parent=1 // pred_check_branch
      %79 = sbr.rel (0) target = $region53
    $region52: #{respair_distance2.1} parent=1 // pred_region
      %81 = vsyncadd [#allocation9], 0
      %s83 = sshll.u32 %s12, 4
      %s84 = int_to_ptr.hbm [resolvable:$true] %s83
      %s85 = sshll.u32 [#allocation8], 4
      %s86 = int_to_ptr.vmem [resolvable:$true] %s85
      %88 = dma.hbm_to_vmem [thread:$0]  %s84, 16, %s86, [#allocation9]
    $region53: #{respair_distance2.1} parent=1 // pred_fallthru
      _
    // Predicated region
    $region54: #{respair_distance2.1} parent=1 // pred_check
      _
    $region55: #{respair_distance2.1} parent=1 // pred_check_branch
      %90 = sbr.rel (0) target = $region57
    $region56: #{respair_distance2.1} parent=1 // pred_region
      _
    $region57: #{respair_distance2.1} parent=1 // pred_fallthru
      _
    // Predicated region
    $region58: #{respair_distance2.1} parent=1 // pred_check
      _
    $region59: #{respair_distance2.1} parent=1 // pred_check_branch
      %92 = sbr.rel (0) target = $region61
    $region60: #{respair_distance2.1} parent=1 // pred_region
      _
    $region61: #{respair_distance2.1} parent=1 // pred_fallthru
      _
    // Predicated region
    $region62: #{respair_distance2.1} parent=1 // pred_check
      _
    $region63: #{respair_distance2.1} parent=1 // pred_check_branch
      %94 = sbr.rel (0) target = $region65
    $region64: #{respair_distance2.1} parent=1 // pred_region
      %96 = dma.done [#allocation4], 32
    $region65: #{respair_distance2.1} parent=1 // pred_fallthru
      _
    // Predicated region
    $region66: #{respair_distance2.1} parent=1 // pred_check
      _
    $region67: #{respair_distance2.1} parent=1 // pred_check_branch
      %98 = sbr.rel (0) target = $region69
    $region68: #{respair_distance2.1} parent=1 // pred_region
      %100 = dma.done [#allocation6], 20480
    $region69: #{respair_distance2.1} parent=1 // pred_fallthru
      _
    // Predicated region
    $region70: #{respair_distance2.1} parent=1 // pred_check
      _
    $region71: #{respair_distance2.1} parent=1 // pred_check_branch
      %102 = sbr.rel (0) target = $region73
    $region72: #{respair_distance2.1} parent=1 // pred_region
      %104 = dma.done [#allocation6], 16
    $region73: #{respair_distance2.1} parent=1 // pred_fallthru
      _
    // Predicated region
    $region74: #{respair_distance2.1} parent=1 // pred_check
      _
    $region75: #{respair_distance2.1} parent=1 // pred_check_branch
      %106 = sbr.rel (0) target = $region77
    $region76: #{respair_distance2.1} parent=1 // pred_region
      %108 = dma.done [#allocation9], 16
    $region77: #{respair_distance2.1} parent=1 // pred_fallthru
      _
    %v110 = vld [vmem:[%s0] sm:$0xff]
    %v111 = vld [vmem:[%s0 + $0x8] sm:$0xff]
    %v112 = vld [vmem:[%s0 + $0x10] sm:$0xff]
    %v113 = vld [vmem:[%s0 + $0x18] sm:$0xff]
    %v114 = vld [vmem:[%s0 + $0x20] sm:$0xff]
    %v115 = vld [vmem:[%s0 + $0x28] sm:$0xff]
    %v116 = vld [vmem:[%s0 + $0x30] sm:$0xff]
    %v117 = vld [vmem:[%s0 + $0x38] sm:$0xff]
    %v118 = vld [vmem:[%s1] sm:$0xff]
    %v119 = vld [vmem:[%s1 + $0x8] sm:$0xff]
    %v120 = vld [vmem:[%s1 + $0x10] sm:$0xff]
    %v121 = vld [vmem:[%s1 + $0x18] sm:$0xff]
    %v122 = vld [vmem:[%s1 + $0x20] sm:$0xff]
    %v123 = vld [vmem:[%s1 + $0x28] sm:$0xff]
    %v124 = vld [vmem:[%s1 + $0x30] sm:$0xff]
    %v125 = vld [vmem:[%s1 + $0x38] sm:$0xff]
    %v126 = vld [vmem:[%s2] sm:$0x3]
    %v127 = vpack.c.bf16 %v111, %v110
    %v128 = vpack.c.bf16 %v113, %v112
    %v129 = vpack.c.bf16 %v115, %v114
    %v130 = vpack.c.bf16 %v117, %v116
    %v132 = vperm.slane %v126, 0
    %v133 = vperm.slane %v126, 1
    %v144 = vunpack.c.l.b16 %v118
    %v145 = vunpack.c.h.b16 %v118
    %v146 = vunpack.c.l.b16 %v119
    %v147 = vunpack.c.h.b16 %v119
    %v148 = vunpack.c.l.b16 %v120
    %v149 = vunpack.c.h.b16 %v120
    %v150 = vunpack.c.l.b16 %v121
    %v151 = vunpack.c.h.b16 %v121
    %v152 = vunpack.c.l.b16 %v122
    %v153 = vunpack.c.h.b16 %v122
    %v154 = vunpack.c.l.b16 %v123
    %v155 = vunpack.c.h.b16 %v123
    %v156 = vunpack.c.l.b16 %v124
    %v157 = vunpack.c.h.b16 %v124
    %v158 = vunpack.c.l.b16 %v125
    %v159 = vunpack.c.h.b16 %v125
    %v160 = vpack.c.b16 %v146, %v144
    %v161 = vpack.c.b16 %v147, %v145
    %v162 = vpack.c.b16 %v150, %v148
    %v163 = vpack.c.b16 %v151, %v149
    %v164 = vpack.c.b16 %v154, %v152
    %v165 = vpack.c.b16 %v155, %v153
    %v166 = vpack.c.b16 %v158, %v156
    %v167 = vpack.c.b16 %v159, %v157
    %vm176 = vcmask 523264
    %v178 = vsel %vm176, %v127, 0
    %v181 = vsel %vm176, %v128, 0
    %v184 = vsel %vm176, %v129, 0
    %v187 = vsel %vm176, %v130, 0
    %189 = vmatpush.bf16.msra.mxu0 0
    %190 = vmatpush.bf16.msra.mxu0 0
    %191 = vmatpush.bf16.msra.mxu0 0
    %192 = vmatpush.bf16.msra.mxu0 0
    %193 = vmatpush.bf16.msra.mxu0 %v166
    %194 = vmatpush.bf16.msra.mxu0 %v164
    %195 = vmatpush.bf16.msra.mxu0 %v162
    %196 = vmatpush.bf16.msra.mxu0 %v160
    %197 = vmatmul.bf16.gmra.mxu0 %v178
    %v198 = vpop.f32.mrf.mxu0
    %v199 = vadd.f32 %v132, %v198
    %v200 = vpop.f32.mrf.mxu0
    %v201 = vadd.f32 %v132, %v200
    %202 = vmatmul.bf16.gmra.mxu0 %v181
    %v203 = vpop.f32.mrf.mxu0
    %v204 = vadd.f32 %v132, %v203
    %v205 = vpop.f32.mrf.mxu0
    %v206 = vadd.f32 %v132, %v205
    %207 = vmatmul.bf16.gmra.mxu0 %v184
    %v208 = vpop.f32.mrf.mxu0
    %v209 = vadd.f32 %v132, %v208
    %v210 = vpop.f32.mrf.mxu0
    %v211 = vadd.f32 %v132, %v210
    %212 = vmatmul.bf16.gmra.mxu0 %v187
    %v213 = vpop.f32.mrf.mxu0
    %v214 = vadd.f32 %v132, %v213
    %v215 = vpop.f32.mrf.mxu0
    %v216 = vadd.f32 %v132, %v215
    %217 = vdwg.mxu0
    %218 = vmatpush.bf16.msra.mxu0 0
    %219 = vmatpush.bf16.msra.mxu0 0
    %220 = vmatpush.bf16.msra.mxu0 0
    %221 = vmatpush.bf16.msra.mxu0 0
    %222 = vmatpush.bf16.msra.mxu0 %v167
    %223 = vmatpush.bf16.msra.mxu0 %v165
    %224 = vmatpush.bf16.msra.mxu0 %v163
    %225 = vmatpush.bf16.msra.mxu0 %v161
    %226 = vmatmul.bf16.gmra.mxu0 %v178
    %v227 = vpop.f32.mrf.mxu0
    %v228 = vadd.f32 %v133, %v227
    %v229 = vpop.f32.mrf.mxu0
    %v230 = vadd.f32 %v133, %v229
    %231 = vmatmul.bf16.gmra.mxu0 %v181
    %v232 = vpop.f32.mrf.mxu0
    %v233 = vadd.f32 %v133, %v232
    %v234 = vpop.f32.mrf.mxu0
    %v235 = vadd.f32 %v133, %v234
    %236 = vmatmul.bf16.gmra.mxu0 %v184
    %v237 = vpop.f32.mrf.mxu0
    %v238 = vadd.f32 %v133, %v237
    %v239 = vpop.f32.mrf.mxu0
    %v240 = vadd.f32 %v133, %v239
    %241 = vmatmul.bf16.gmra.mxu0 %v187
    %v242 = vpop.f32.mrf.mxu0
    %v243 = vadd.f32 %v133, %v242
    %v244 = vpop.f32.mrf.mxu0
    %v245 = vadd.f32 %v133, %v244
    %246 = vdwg.mxu0
    %v247 = vld [vmem:[%s3] sm:$0x3]
    %v248 = vld [vmem:[#allocation3] sm:$0x3]
    %v249 = vadd.f32 %v199, %v201
    %v250 = vadd.f32 %v249, %v204
    %v251 = vadd.f32 %v250, %v206
    %v252 = vadd.f32 %v251, %v209
    %v253 = vadd.f32 %v252, %v211
    %v254 = vadd.f32 %v253, %v214
    %v255 = vadd.f32 %v254, %v216
    %v256 = vrot.slane %v255, 4
    %v257 = vadd.f32 %v255, %v256
    %v258 = vrot.slane %v257, 2
    %v259 = vadd.f32 %v257, %v258
    %v260 = vrot.slane %v259, 1
    %v261 = vadd.f32 %v259, %v260
    %v262 = vadd.f32 %v228, %v230
    %v263 = vadd.f32 %v262, %v233
    %v264 = vadd.f32 %v263, %v235
    %v265 = vadd.f32 %v264, %v238
    %v266 = vadd.f32 %v265, %v240
    %v267 = vadd.f32 %v266, %v243
    %v268 = vadd.f32 %v267, %v245
    %v269 = vrot.slane %v268, 4
    %v270 = vadd.f32 %v268, %v269
    %v271 = vrot.slane %v270, 2
    %v272 = vadd.f32 %v270, %v271
    %v273 = vrot.slane %v272, 1
    %v274 = vadd.f32 %v272, %v273
    %v275 = vrcp.pop 64.0
    %v276 = vmul.f32 64.0, %v275
    %v277 = vsub.f32 1.0, %v276
    %v278 = vmul.f32 %v275, %v277
    %v279 = vadd.f32 %v275, %v278
    %vm280 = vweird.f32 %v275
    %v281 = vsel %vm280, %v275, %v279
    %v282 = vmul.f32 %v261, %v281
    %v283 = vmul.f32 %v274, %v281
    %v284 = vsub.f32 %v199, %v282
    %v285 = vsub.f32 %v228, %v283
    %v286 = vsub.f32 %v201, %v282
    %v287 = vsub.f32 %v230, %v283
    %v288 = vsub.f32 %v204, %v282
    %v289 = vsub.f32 %v233, %v283
    %v290 = vsub.f32 %v206, %v282
    %v291 = vsub.f32 %v235, %v283
    %v292 = vsub.f32 %v209, %v282
    %v293 = vsub.f32 %v238, %v283
    %v294 = vsub.f32 %v211, %v282
    %v295 = vsub.f32 %v240, %v283
    %v296 = vsub.f32 %v214, %v282
    %v297 = vsub.f32 %v243, %v283
    %v298 = vsub.f32 %v216, %v282
    %v299 = vsub.f32 %v245, %v283
    %v300 = vmul.f32 %v284, %v284
    %v301 = vmul.f32 %v285, %v285
    %v302 = vmul.f32 %v286, %v286
    %v303 = vmul.f32 %v287, %v287
    %v304 = vmul.f32 %v288, %v288
    %v305 = vmul.f32 %v289, %v289
    %v306 = vmul.f32 %v290, %v290
    %v307 = vmul.f32 %v291, %v291
    %v308 = vmul.f32 %v292, %v292
    %v309 = vmul.f32 %v293, %v293
    %v310 = vmul.f32 %v294, %v294
    %v311 = vmul.f32 %v295, %v295
    %v312 = vmul.f32 %v296, %v296
    %v313 = vmul.f32 %v297, %v297
    %v314 = vmul.f32 %v298, %v298
    %v315 = vmul.f32 %v299, %v299
    %v316 = vadd.f32 %v300, %v302
    %v317 = vadd.f32 %v316, %v304
    %v318 = vadd.f32 %v317, %v306
    %v319 = vadd.f32 %v318, %v308
    %v320 = vadd.f32 %v319, %v310
    %v321 = vadd.f32 %v320, %v312
    %v322 = vadd.f32 %v321, %v314
    %v323 = vrot.slane %v322, 4
    %v324 = vadd.f32 %v322, %v323
    %v325 = vrot.slane %v324, 2
    %v326 = vadd.f32 %v324, %v325
    %v327 = vrot.slane %v326, 1
    %v328 = vadd.f32 %v326, %v327
    %v329 = vadd.f32 %v301, %v303
    %v330 = vadd.f32 %v329, %v305
    %v331 = vadd.f32 %v330, %v307
    %v332 = vadd.f32 %v331, %v309
    %v333 = vadd.f32 %v332, %v311
    %v334 = vadd.f32 %v333, %v313
    %v335 = vadd.f32 %v334, %v315
    %v336 = vrot.slane %v335, 4
    %v337 = vadd.f32 %v335, %v336
    %v338 = vrot.slane %v337, 2
    %v339 = vadd.f32 %v337, %v338
    %v340 = vrot.slane %v339, 1
    %v341 = vadd.f32 %v339, %v340
    %v342 = vmul.f32 %v328, %v281
    %v343 = vmul.f32 %v341, %v281
    %v344 = vadd.f32 %v342, 1e-05
    %v345 = vadd.f32 %v343, 1e-05
    %v346 = vrsqrt.pop %v344
    %v347 = vmul.f32 %v346, %v344
    %v348 = vmul.f32 %v347, %v346
    %v349 = vmul.f32 0.5, %v348
    %v350 = vsub.f32 1.5, %v349
    %v351 = vmul.f32 %v346, %v350
    %vm352 = vweird.f32 %v344
    %vm353 = vweird.f32 %v346
    %vm354 = vmor %vm352, %vm353
    %v355 = vsel %vm354, %v346, %v351
    %v356 = vrsqrt.pop %v345
    %v357 = vmul.f32 %v356, %v345
    %v358 = vmul.f32 %v357, %v356
    %v359 = vmul.f32 0.5, %v358
    %v360 = vsub.f32 1.5, %v359
    %v361 = vmul.f32 %v356, %v360
    %vm362 = vweird.f32 %v345
    %vm363 = vweird.f32 %v356
    %vm364 = vmor %vm362, %vm363
    %v365 = vsel %vm364, %v356, %v361
    %v366 = vmul.f32 %v284, %v355
    %v367 = vmul.f32 %v285, %v365
    %v368 = vmul.f32 %v286, %v355
    %v369 = vmul.f32 %v287, %v365
    %v370 = vmul.f32 %v288, %v355
    %v371 = vmul.f32 %v289, %v365
    %v372 = vmul.f32 %v290, %v355
    %v373 = vmul.f32 %v291, %v365
    %v374 = vmul.f32 %v292, %v355
    %v375 = vmul.f32 %v293, %v365
    %v376 = vmul.f32 %v294, %v355
    %v377 = vmul.f32 %v295, %v365
    %v378 = vmul.f32 %v296, %v355
    %v379 = vmul.f32 %v297, %v365
    %v380 = vmul.f32 %v298, %v355
    %v381 = vmul.f32 %v299, %v365
    %v383 = vperm.slane %v247, 0
    %v384 = vperm.slane %v247, 1
    %v387 = vmul.f32 %v366, %v383
    %v388 = vmul.f32 %v367, %v384
    %v389 = vmul.f32 %v368, %v383
    %v390 = vmul.f32 %v369, %v384
    %v391 = vmul.f32 %v370, %v383
    %v392 = vmul.f32 %v371, %v384
    %v393 = vmul.f32 %v372, %v383
    %v394 = vmul.f32 %v373, %v384
    %v395 = vmul.f32 %v374, %v383
    %v396 = vmul.f32 %v375, %v384
    %v397 = vmul.f32 %v376, %v383
    %v398 = vmul.f32 %v377, %v384
    %v399 = vmul.f32 %v378, %v383
    %v400 = vmul.f32 %v379, %v384
    %v401 = vmul.f32 %v380, %v383
    %v402 = vmul.f32 %v381, %v384
    %v404 = vperm.slane %v248, 0
    %v405 = vperm.slane %v248, 1
    %v408 = vadd.f32 %v387, %v404
    %v409 = vadd.f32 %v388, %v405
    %v410 = vadd.f32 %v389, %v404
    %v411 = vadd.f32 %v390, %v405
    %v412 = vadd.f32 %v391, %v404
    %v413 = vadd.f32 %v392, %v405
    %v414 = vadd.f32 %v393, %v404
    %v415 = vadd.f32 %v394, %v405
    %v416 = vadd.f32 %v395, %v404
    %v417 = vadd.f32 %v396, %v405
    %v418 = vadd.f32 %v397, %v404
    %v419 = vadd.f32 %v398, %v405
    %v420 = vadd.f32 %v399, %v404
    %v421 = vadd.f32 %v400, %v405
    %v422 = vadd.f32 %v401, %v404
    %v423 = vadd.f32 %v402, %v405
    %v424 = vmax.f32 %v408, 0.0
    %v425 = vmax.f32 %v409, 0.0
    %v426 = vmax.f32 %v410, 0.0
    %v427 = vmax.f32 %v411, 0.0
    %v428 = vmax.f32 %v412, 0.0
    %v429 = vmax.f32 %v413, 0.0
    %v430 = vmax.f32 %v414, 0.0
    %v431 = vmax.f32 %v415, 0.0
    %v432 = vmax.f32 %v416, 0.0
    %v433 = vmax.f32 %v417, 0.0
    %v434 = vmax.f32 %v418, 0.0
    %v435 = vmax.f32 %v419, 0.0
    %v436 = vmax.f32 %v420, 0.0
    %v437 = vmax.f32 %v421, 0.0
    %v438 = vmax.f32 %v422, 0.0
    %v439 = vmax.f32 %v423, 0.0
    %v440 = vld [vmem:[#allocation5] sm:$0xff]
    %v441 = vld [vmem:[#allocation5 + $0x8] sm:$0xff]
    %v442 = vld [vmem:[#allocation5 + $0x10] sm:$0xff]
    %v443 = vld [vmem:[#allocation5 + $0x18] sm:$0xff]
    %v444 = vld [vmem:[#allocation5 + $0x20] sm:$0xff]
    %v445 = vld [vmem:[#allocation5 + $0x28] sm:$0xff]
    %v446 = vld [vmem:[#allocation5 + $0x30] sm:$0xff]
    %v447 = vld [vmem:[#allocation5 + $0x38] sm:$0xff]
    %v448 = vld [vmem:[#allocation5 + $0x40] sm:$0xff]
    %v449 = vld [vmem:[#allocation5 + $0x48] sm:$0xff]
    %v450 = vld [vmem:[#allocation5 + $0x50] sm:$0xff]
    %v451 = vld [vmem:[#allocation5 + $0x58] sm:$0xff]
    %v452 = vld [vmem:[#allocation5 + $0x60] sm:$0xff]
    %v453 = vld [vmem:[#allocation5 + $0x68] sm:$0xff]
    %v454 = vld [vmem:[#allocation5 + $0x70] sm:$0xff]
    %v455 = vld [vmem:[#allocation5 + $0x78] sm:$0xff]
    %v456 = vld [vmem:[#allocation5 + $0x80] sm:$0xff]
    %v457 = vld [vmem:[#allocation5 + $0x88] sm:$0xff]
    %v458 = vld [vmem:[#allocation5 + $0x90] sm:$0xff]
    %v459 = vld [vmem:[#allocation5 + $0x98] sm:$0xff]
    %v460 = vld [vmem:[#allocation5 + $0xa0] sm:$0xff]
    %v461 = vld [vmem:[#allocation5 + $0xa8] sm:$0xff]
    %v462 = vld [vmem:[#allocation5 + $0xb0] sm:$0xff]
    %v463 = vld [vmem:[#allocation5 + $0xb8] sm:$0xff]
    %v464 = vld [vmem:[#allocation5 + $0xc0] sm:$0xff]
    %v465 = vld [vmem:[#allocation5 + $0xc8] sm:$0xff]
    %v466 = vld [vmem:[#allocation5 + $0xd0] sm:$0xff]
    %v467 = vld [vmem:[#allocation5 + $0xd8] sm:$0xff]
    %v468 = vld [vmem:[#allocation5 + $0xe0] sm:$0xff]
    %v469 = vld [vmem:[#allocation5 + $0xe8] sm:$0xff]
    %v470 = vld [vmem:[#allocation5 + $0xf0] sm:$0xff]
    %v471 = vld [vmem:[#allocation5 + $0xf8] sm:$0xff]
    %v472 = vld [vmem:[%s6] sm:$0x3]
    %v473 = vpack.c.bf16 %v426, %v424
    %v474 = vpack.c.bf16 %v427, %v425
    %v475 = vpack.c.bf16 %v430, %v428
    %v476 = vpack.c.bf16 %v431, %v429
    %v477 = vpack.c.bf16 %v434, %v432
    %v478 = vpack.c.bf16 %v435, %v433
    %v479 = vpack.c.bf16 %v438, %v436
    %v480 = vpack.c.bf16 %v439, %v437
    %v482 = vperm.slane %v472, 0
    %v483 = vperm.slane %v472, 1
    %v518 = vunpack.c.l.b16 %v440
    %v519 = vunpack.c.h.b16 %v440
    %v520 = vunpack.c.l.b16 %v441
    %v521 = vunpack.c.h.b16 %v441
    %v522 = vunpack.c.l.b16 %v442
    %v523 = vunpack.c.h.b16 %v442
    %v524 = vunpack.c.l.b16 %v443
    %v525 = vunpack.c.h.b16 %v443
    %v526 = vunpack.c.l.b16 %v444
    %v527 = vunpack.c.h.b16 %v444
    %v528 = vunpack.c.l.b16 %v445
    %v529 = vunpack.c.h.b16 %v445
    %v530 = vunpack.c.l.b16 %v446
    %v531 = vunpack.c.h.b16 %v446
    %v532 = vunpack.c.l.b16 %v447
    %v533 = vunpack.c.h.b16 %v447
    %v534 = vunpack.c.l.b16 %v448
    %v535 = vunpack.c.h.b16 %v448
    %v536 = vunpack.c.l.b16 %v449
    %v537 = vunpack.c.h.b16 %v449
    %v538 = vunpack.c.l.b16 %v450
    %v539 = vunpack.c.h.b16 %v450
    %v540 = vunpack.c.l.b16 %v451
    %v541 = vunpack.c.h.b16 %v451
    %v542 = vunpack.c.l.b16 %v452
    %v543 = vunpack.c.h.b16 %v452
    %v544 = vunpack.c.l.b16 %v453
    %v545 = vunpack.c.h.b16 %v453
    %v546 = vunpack.c.l.b16 %v454
    %v547 = vunpack.c.h.b16 %v454
    %v548 = vunpack.c.l.b16 %v455
    %v549 = vunpack.c.h.b16 %v455
    %v550 = vunpack.c.l.b16 %v456
    %v551 = vunpack.c.h.b16 %v456
    %v552 = vunpack.c.l.b16 %v457
    %v553 = vunpack.c.h.b16 %v457
    %v554 = vunpack.c.l.b16 %v458
    %v555 = vunpack.c.h.b16 %v458
    %v556 = vunpack.c.l.b16 %v459
    %v557 = vunpack.c.h.b16 %v459
    %v558 = vunpack.c.l.b16 %v460
    %v559 = vunpack.c.h.b16 %v460
    %v560 = vunpack.c.l.b16 %v461
    %v561 = vunpack.c.h.b16 %v461
    %v562 = vunpack.c.l.b16 %v462
    %v563 = vunpack.c.h.b16 %v462
    %v564 = vunpack.c.l.b16 %v463
    %v565 = vunpack.c.h.b16 %v463
    %v566 = vunpack.c.l.b16 %v464
    %v567 = vunpack.c.h.b16 %v464
    %v568 = vunpack.c.l.b16 %v465
    %v569 = vunpack.c.h.b16 %v465
    %v570 = vunpack.c.l.b16 %v466
    %v571 = vunpack.c.h.b16 %v466
    %v572 = vunpack.c.l.b16 %v467
    %v573 = vunpack.c.h.b16 %v467
    %v574 = vunpack.c.l.b16 %v468
    %v575 = vunpack.c.h.b16 %v468
    %v576 = vunpack.c.l.b16 %v469
    %v577 = vunpack.c.h.b16 %v469
    %v578 = vunpack.c.l.b16 %v470
    %v579 = vunpack.c.h.b16 %v470
    %v580 = vunpack.c.l.b16 %v471
    %v581 = vunpack.c.h.b16 %v471
    %v582 = vpack.c.b16 %v520, %v518
    %v583 = vpack.c.b16 %v521, %v519
    %v584 = vpack.c.b16 %v524, %v522
    %v585 = vpack.c.b16 %v525, %v523
    %v586 = vpack.c.b16 %v528, %v526
    %v587 = vpack.c.b16 %v529, %v527
    %v588 = vpack.c.b16 %v532, %v530
    %v589 = vpack.c.b16 %v533, %v531
    %v590 = vpack.c.b16 %v536, %v534
    %v591 = vpack.c.b16 %v537, %v535
    %v592 = vpack.c.b16 %v540, %v538
    %v593 = vpack.c.b16 %v541, %v539
    %v594 = vpack.c.b16 %v544, %v542
    %v595 = vpack.c.b16 %v545, %v543
    %v596 = vpack.c.b16 %v548, %v546
    %v597 = vpack.c.b16 %v549, %v547
    %v598 = vpack.c.b16 %v552, %v550
    %v599 = vpack.c.b16 %v553, %v551
    %v600 = vpack.c.b16 %v556, %v554
    %v601 = vpack.c.b16 %v557, %v555
    %v602 = vpack.c.b16 %v560, %v558
    %v603 = vpack.c.b16 %v561, %v559
    %v604 = vpack.c.b16 %v564, %v562
    %v605 = vpack.c.b16 %v565, %v563
    %v606 = vpack.c.b16 %v568, %v566
    %v607 = vpack.c.b16 %v569, %v567
    %v608 = vpack.c.b16 %v572, %v570
    %v609 = vpack.c.b16 %v573, %v571
    %v610 = vpack.c.b16 %v576, %v574
    %v611 = vpack.c.b16 %v577, %v575
    %v612 = vpack.c.b16 %v580, %v578
    %v613 = vpack.c.b16 %v581, %v579
    %646 = vmatpush.bf16.msra.mxu0 %v596
    %647 = vmatpush.bf16.msra.mxu0 %v594
    %648 = vmatpush.bf16.msra.mxu0 %v592
    %649 = vmatpush.bf16.msra.mxu0 %v590
    %650 = vmatpush.bf16.msra.mxu0 %v588
    %651 = vmatpush.bf16.msra.mxu0 %v586
    %652 = vmatpush.bf16.msra.mxu0 %v584
    %653 = vmatpush.bf16.msra.mxu0 %v582
    %654 = vmatmul.bf16.gmra.mxu0 %v473
    %v655 = vpop.f32.mrf.mxu0
    %v656 = vadd.f32 %v482, %v655
    %v657 = vpop.f32.mrf.mxu0
    %v658 = vadd.f32 %v482, %v657
    %659 = vmatmul.bf16.gmra.mxu0 %v475
    %v660 = vpop.f32.mrf.mxu0
    %v661 = vadd.f32 %v482, %v660
    %v662 = vpop.f32.mrf.mxu0
    %v663 = vadd.f32 %v482, %v662
    %664 = vmatmul.bf16.gmra.mxu0 %v477
    %v665 = vpop.f32.mrf.mxu0
    %v666 = vadd.f32 %v482, %v665
    %v667 = vpop.f32.mrf.mxu0
    %v668 = vadd.f32 %v482, %v667
    %669 = vmatmul.bf16.gmra.mxu0 %v479
    %v670 = vpop.f32.mrf.mxu0
    %v671 = vadd.f32 %v482, %v670
    %v672 = vpop.f32.mrf.mxu0
    %v673 = vadd.f32 %v482, %v672
    %674 = vdwg.mxu0
    %675 = vmatpush.bf16.msra.mxu0 %v612
    %676 = vmatpush.bf16.msra.mxu0 %v610
    %677 = vmatpush.bf16.msra.mxu0 %v608
    %678 = vmatpush.bf16.msra.mxu0 %v606
    %679 = vmatpush.bf16.msra.mxu0 %v604
    %680 = vmatpush.bf16.msra.mxu0 %v602
    %681 = vmatpush.bf16.msra.mxu0 %v600
    %682 = vmatpush.bf16.msra.mxu0 %v598
    %683 = vmatmul.bf16.gmra.mxu0 %v474
    %v684 = vpop.f32.mrf.mxu0
    %v685 = vadd.f32 %v656, %v684
    %v686 = vpop.f32.mrf.mxu0
    %v687 = vadd.f32 %v658, %v686
    %688 = vmatmul.bf16.gmra.mxu0 %v476
    %v689 = vpop.f32.mrf.mxu0
    %v690 = vadd.f32 %v661, %v689
    %v691 = vpop.f32.mrf.mxu0
    %v692 = vadd.f32 %v663, %v691
    %693 = vmatmul.bf16.gmra.mxu0 %v478
    %v694 = vpop.f32.mrf.mxu0
    %v695 = vadd.f32 %v666, %v694
    %v696 = vpop.f32.mrf.mxu0
    %v697 = vadd.f32 %v668, %v696
    %698 = vmatmul.bf16.gmra.mxu0 %v480
    %v699 = vpop.f32.mrf.mxu0
    %v700 = vadd.f32 %v671, %v699
    %v701 = vpop.f32.mrf.mxu0
    %v702 = vadd.f32 %v673, %v701
    %703 = vdwg.mxu0
    %704 = vmatpush.bf16.msra.mxu0 %v597
    %705 = vmatpush.bf16.msra.mxu0 %v595
    %706 = vmatpush.bf16.msra.mxu0 %v593
    %707 = vmatpush.bf16.msra.mxu0 %v591
    %708 = vmatpush.bf16.msra.mxu0 %v589
    %709 = vmatpush.bf16.msra.mxu0 %v587
    %710 = vmatpush.bf16.msra.mxu0 %v585
    %711 = vmatpush.bf16.msra.mxu0 %v583
    %712 = vmatmul.bf16.gmra.mxu0 %v473
    %v713 = vpop.f32.mrf.mxu0
    %v714 = vadd.f32 %v483, %v713
    %v715 = vpop.f32.mrf.mxu0
    %v716 = vadd.f32 %v483, %v715
    %717 = vmatmul.bf16.gmra.mxu0 %v475
    %v718 = vpop.f32.mrf.mxu0
    %v719 = vadd.f32 %v483, %v718
    %v720 = vpop.f32.mrf.mxu0
    %v721 = vadd.f32 %v483, %v720
    %722 = vmatmul.bf16.gmra.mxu0 %v477
    %v723 = vpop.f32.mrf.mxu0
    %v724 = vadd.f32 %v483, %v723
    %v725 = vpop.f32.mrf.mxu0
    %v726 = vadd.f32 %v483, %v725
    %727 = vmatmul.bf16.gmra.mxu0 %v479
    %v728 = vpop.f32.mrf.mxu0
    %v729 = vadd.f32 %v483, %v728
    %v730 = vpop.f32.mrf.mxu0
    %v731 = vadd.f32 %v483, %v730
    %732 = vdwg.mxu0
    %733 = vmatpush.bf16.msra.mxu0 %v613
    %734 = vmatpush.bf16.msra.mxu0 %v611
    %735 = vmatpush.bf16.msra.mxu0 %v609
    %736 = vmatpush.bf16.msra.mxu0 %v607
    %737 = vmatpush.bf16.msra.mxu0 %v605
    %738 = vmatpush.bf16.msra.mxu0 %v603
    %739 = vmatpush.bf16.msra.mxu0 %v601
    %740 = vmatpush.bf16.msra.mxu0 %v599
    %741 = vmatmul.bf16.gmra.mxu0 %v474
    %v742 = vpop.f32.mrf.mxu0
    %v743 = vadd.f32 %v714, %v742
    %v744 = vpop.f32.mrf.mxu0
    %v745 = vadd.f32 %v716, %v744
    %746 = vmatmul.bf16.gmra.mxu0 %v476
    %v747 = vpop.f32.mrf.mxu0
    %v748 = vadd.f32 %v719, %v747
    %v749 = vpop.f32.mrf.mxu0
    %v750 = vadd.f32 %v721, %v749
    %751 = vmatmul.bf16.gmra.mxu0 %v478
    %v752 = vpop.f32.mrf.mxu0
    %v753 = vadd.f32 %v724, %v752
    %v754 = vpop.f32.mrf.mxu0
    %v755 = vadd.f32 %v726, %v754
    %756 = vmatmul.bf16.gmra.mxu0 %v480
    %v757 = vpop.f32.mrf.mxu0
    %v758 = vadd.f32 %v729, %v757
    %v759 = vpop.f32.mrf.mxu0
    %v760 = vadd.f32 %v731, %v759
    %761 = vdwg.mxu0
    %v762 = vld [vmem:[%s7] sm:$0x3]
    %v763 = vld [vmem:[%s8] sm:$0x3]
    %v764 = vadd.f32 %v685, %v687
    %v765 = vadd.f32 %v764, %v690
    %v766 = vadd.f32 %v765, %v692
    %v767 = vadd.f32 %v766, %v695
    %v768 = vadd.f32 %v767, %v697
    %v769 = vadd.f32 %v768, %v700
    %v770 = vadd.f32 %v769, %v702
    %v771 = vrot.slane %v770, 4
    %v772 = vadd.f32 %v770, %v771
    %v773 = vrot.slane %v772, 2
    %v774 = vadd.f32 %v772, %v773
    %v775 = vrot.slane %v774, 1
    %v776 = vadd.f32 %v774, %v775
    %v777 = vadd.f32 %v743, %v745
    %v778 = vadd.f32 %v777, %v748
    %v779 = vadd.f32 %v778, %v750
    %v780 = vadd.f32 %v779, %v753
    %v781 = vadd.f32 %v780, %v755
    %v782 = vadd.f32 %v781, %v758
    %v783 = vadd.f32 %v782, %v760
    %v784 = vrot.slane %v783, 4
    %v785 = vadd.f32 %v783, %v784
    %v786 = vrot.slane %v785, 2
    %v787 = vadd.f32 %v785, %v786
    %v788 = vrot.slane %v787, 1
    %v789 = vadd.f32 %v787, %v788
    %v790 = vmul.f32 %v776, %v281
    %v791 = vmul.f32 %v789, %v281
    %v792 = vsub.f32 %v685, %v790
    %v793 = vsub.f32 %v743, %v791
    %v794 = vsub.f32 %v687, %v790
    %v795 = vsub.f32 %v745, %v791
    %v796 = vsub.f32 %v690, %v790
    %v797 = vsub.f32 %v748, %v791
    %v798 = vsub.f32 %v692, %v790
    %v799 = vsub.f32 %v750, %v791
    %v800 = vsub.f32 %v695, %v790
    %v801 = vsub.f32 %v753, %v791
    %v802 = vsub.f32 %v697, %v790
    %v803 = vsub.f32 %v755, %v791
    %v804 = vsub.f32 %v700, %v790
    %v805 = vsub.f32 %v758, %v791
    %v806 = vsub.f32 %v702, %v790
    %v807 = vsub.f32 %v760, %v791
    %v808 = vmul.f32 %v792, %v792
    %v809 = vmul.f32 %v793, %v793
    %v810 = vmul.f32 %v794, %v794
    %v811 = vmul.f32 %v795, %v795
    %v812 = vmul.f32 %v796, %v796
    %v813 = vmul.f32 %v797, %v797
    %v814 = vmul.f32 %v798, %v798
    %v815 = vmul.f32 %v799, %v799
    %v816 = vmul.f32 %v800, %v800
    %v817 = vmul.f32 %v801, %v801
    %v818 = vmul.f32 %v802, %v802
    %v819 = vmul.f32 %v803, %v803
    %v820 = vmul.f32 %v804, %v804
    %v821 = vmul.f32 %v805, %v805
    %v822 = vmul.f32 %v806, %v806
    %v823 = vmul.f32 %v807, %v807
    %v824 = vadd.f32 %v808, %v810
    %v825 = vadd.f32 %v824, %v812
    %v826 = vadd.f32 %v825, %v814
    %v827 = vadd.f32 %v826, %v816
    %v828 = vadd.f32 %v827, %v818
    %v829 = vadd.f32 %v828, %v820
    %v830 = vadd.f32 %v829, %v822
    %v831 = vrot.slane %v830, 4
    %v832 = vadd.f32 %v830, %v831
    %v833 = vrot.slane %v832, 2
    %v834 = vadd.f32 %v832, %v833
    %v835 = vrot.slane %v834, 1
    %v836 = vadd.f32 %v834, %v835
    %v837 = vadd.f32 %v809, %v811
    %v838 = vadd.f32 %v837, %v813
    %v839 = vadd.f32 %v838, %v815
    %v840 = vadd.f32 %v839, %v817
    %v841 = vadd.f32 %v840, %v819
    %v842 = vadd.f32 %v841, %v821
    %v843 = vadd.f32 %v842, %v823
    %v844 = vrot.slane %v843, 4
    %v845 = vadd.f32 %v843, %v844
    %v846 = vrot.slane %v845, 2
    %v847 = vadd.f32 %v845, %v846
    %v848 = vrot.slane %v847, 1
    %v849 = vadd.f32 %v847, %v848
    %v850 = vmul.f32 %v836, %v281
    %v851 = vmul.f32 %v849, %v281
    %v852 = vadd.f32 %v850, 1e-05
    %v853 = vadd.f32 %v851, 1e-05
    %v854 = vrsqrt.pop %v852
    %v855 = vmul.f32 %v854, %v852
    %v856 = vmul.f32 %v855, %v854
    %v857 = vmul.f32 0.5, %v856
    %v858 = vsub.f32 1.5, %v857
    %v859 = vmul.f32 %v854, %v858
    %vm860 = vweird.f32 %v852
    %vm861 = vweird.f32 %v854
    %vm862 = vmor %vm860, %vm861
    %v863 = vsel %vm862, %v854, %v859
    %v864 = vrsqrt.pop %v853
    %v865 = vmul.f32 %v864, %v853
    %v866 = vmul.f32 %v865, %v864
    %v867 = vmul.f32 0.5, %v866
    %v868 = vsub.f32 1.5, %v867
    %v869 = vmul.f32 %v864, %v868
    %vm870 = vweird.f32 %v853
    %vm871 = vweird.f32 %v864
    %vm872 = vmor %vm870, %vm871
    %v873 = vsel %vm872, %v864, %v869
    %v874 = vmul.f32 %v792, %v863
    %v875 = vmul.f32 %v793, %v873
    %v876 = vmul.f32 %v794, %v863
    %v877 = vmul.f32 %v795, %v873
    %v878 = vmul.f32 %v796, %v863
    %v879 = vmul.f32 %v797, %v873
    %v880 = vmul.f32 %v798, %v863
    %v881 = vmul.f32 %v799, %v873
    %v882 = vmul.f32 %v800, %v863
    %v883 = vmul.f32 %v801, %v873
    %v884 = vmul.f32 %v802, %v863
    %v885 = vmul.f32 %v803, %v873
    %v886 = vmul.f32 %v804, %v863
    %v887 = vmul.f32 %v805, %v873
    %v888 = vmul.f32 %v806, %v863
    %v889 = vmul.f32 %v807, %v873
    %v891 = vperm.slane %v762, 0
    %v892 = vperm.slane %v762, 1
    %v895 = vmul.f32 %v874, %v891
    %v896 = vmul.f32 %v875, %v892
    %v897 = vmul.f32 %v876, %v891
    %v898 = vmul.f32 %v877, %v892
    %v899 = vmul.f32 %v878, %v891
    %v900 = vmul.f32 %v879, %v892
    %v901 = vmul.f32 %v880, %v891
    %v902 = vmul.f32 %v881, %v892
    %v903 = vmul.f32 %v882, %v891
    %v904 = vmul.f32 %v883, %v892
    %v905 = vmul.f32 %v884, %v891
    %v906 = vmul.f32 %v885, %v892
    %v907 = vmul.f32 %v886, %v891
    %v908 = vmul.f32 %v887, %v892
    %v909 = vmul.f32 %v888, %v891
    %v910 = vmul.f32 %v889, %v892
    %v912 = vperm.slane %v763, 0
    %v913 = vperm.slane %v763, 1
    %v916 = vadd.f32 %v895, %v912
    %v917 = vadd.f32 %v896, %v913
    %v918 = vadd.f32 %v897, %v912
    %v919 = vadd.f32 %v898, %v913
    %v920 = vadd.f32 %v899, %v912
    %v921 = vadd.f32 %v900, %v913
    %v922 = vadd.f32 %v901, %v912
    %v923 = vadd.f32 %v902, %v913
    %v924 = vadd.f32 %v903, %v912
    %v925 = vadd.f32 %v904, %v913
    %v926 = vadd.f32 %v905, %v912
    %v927 = vadd.f32 %v906, %v913
    %v928 = vadd.f32 %v907, %v912
    %v929 = vadd.f32 %v908, %v913
    %v930 = vadd.f32 %v909, %v912
    %v931 = vadd.f32 %v910, %v913
    %v932 = vadd.f32 %v916, %v424
    %v933 = vadd.f32 %v917, %v425
    %v934 = vadd.f32 %v918, %v426
    %v935 = vadd.f32 %v919, %v427
    %v936 = vadd.f32 %v920, %v428
    %v937 = vadd.f32 %v921, %v429
    %v938 = vadd.f32 %v922, %v430
    %v939 = vadd.f32 %v923, %v431
    %v940 = vadd.f32 %v924, %v432
    %v941 = vadd.f32 %v925, %v433
    %v942 = vadd.f32 %v926, %v434
    %v943 = vadd.f32 %v927, %v435
    %v944 = vadd.f32 %v928, %v436
    %v945 = vadd.f32 %v929, %v437
    %v946 = vadd.f32 %v930, %v438
    %v947 = vadd.f32 %v931, %v439
    %v948 = vmax.f32 %v932, 0.0
    %v949 = vmax.f32 %v933, 0.0
    %v950 = vmax.f32 %v934, 0.0
    %v951 = vmax.f32 %v935, 0.0
    %v952 = vmax.f32 %v936, 0.0
    %v953 = vmax.f32 %v937, 0.0
    %v954 = vmax.f32 %v938, 0.0
    %v955 = vmax.f32 %v939, 0.0
    %v956 = vmax.f32 %v940, 0.0
    %v957 = vmax.f32 %v941, 0.0
    %v958 = vmax.f32 %v942, 0.0
    %v959 = vmax.f32 %v943, 0.0
    %v960 = vmax.f32 %v944, 0.0
    %v961 = vmax.f32 %v945, 0.0
    %v962 = vmax.f32 %v946, 0.0
    %v963 = vmax.f32 %v947, 0.0
    %s964 = scalar_lea.vmem [#allocation5], 256
    %v965 = vld [vmem:[%s964] sm:$0xff]
    %v966 = vld [vmem:[%s964 + $0x8] sm:$0xff]
    %v967 = vld [vmem:[%s964 + $0x10] sm:$0xff]
    %v968 = vld [vmem:[%s964 + $0x18] sm:$0xff]
    %v969 = vld [vmem:[%s964 + $0x20] sm:$0xff]
    %v970 = vld [vmem:[%s964 + $0x28] sm:$0xff]
    %v971 = vld [vmem:[%s964 + $0x30] sm:$0xff]
    %v972 = vld [vmem:[%s964 + $0x38] sm:$0xff]
    %v973 = vld [vmem:[%s964 + $0x40] sm:$0xff]
    %v974 = vld [vmem:[%s964 + $0x48] sm:$0xff]
    %v975 = vld [vmem:[%s964 + $0x50] sm:$0xff]
    %v976 = vld [vmem:[%s964 + $0x58] sm:$0xff]
    %v977 = vld [vmem:[%s964 + $0x60] sm:$0xff]
    %v978 = vld [vmem:[%s964 + $0x68] sm:$0xff]
    %v979 = vld [vmem:[%s964 + $0x70] sm:$0xff]
    %v980 = vld [vmem:[%s964 + $0x78] sm:$0xff]
    %v981 = vld [vmem:[%s964 + $0x80] sm:$0xff]
    %v982 = vld [vmem:[%s964 + $0x88] sm:$0xff]
    %v983 = vld [vmem:[%s964 + $0x90] sm:$0xff]
    %v984 = vld [vmem:[%s964 + $0x98] sm:$0xff]
    %v985 = vld [vmem:[%s964 + $0xa0] sm:$0xff]
    %v986 = vld [vmem:[%s964 + $0xa8] sm:$0xff]
    %v987 = vld [vmem:[%s964 + $0xb0] sm:$0xff]
    %v988 = vld [vmem:[%s964 + $0xb8] sm:$0xff]
    %v989 = vld [vmem:[%s964 + $0xc0] sm:$0xff]
    %v990 = vld [vmem:[%s964 + $0xc8] sm:$0xff]
    %v991 = vld [vmem:[%s964 + $0xd0] sm:$0xff]
    %v992 = vld [vmem:[%s964 + $0xd8] sm:$0xff]
    %v993 = vld [vmem:[%s964 + $0xe0] sm:$0xff]
    %v994 = vld [vmem:[%s964 + $0xe8] sm:$0xff]
    %v995 = vld [vmem:[%s964 + $0xf0] sm:$0xff]
    %v996 = vld [vmem:[%s964 + $0xf8] sm:$0xff]
    %s997 = scalar_lea.vmem %s6, 2
    %v998 = vld [vmem:[%s997] sm:$0x3]
    %v999 = vpack.c.bf16 %v950, %v948
    %v1000 = vpack.c.bf16 %v951, %v949
    %v1001 = vpack.c.bf16 %v954, %v952
    %v1002 = vpack.c.bf16 %v955, %v953
    %v1003 = vpack.c.bf16 %v958, %v956
    %v1004 = vpack.c.bf16 %v959, %v957
    %v1005 = vpack.c.bf16 %v962, %v960
    %v1006 = vpack.c.bf16 %v963, %v961
    %v1008 = vperm.slane %v998, 0
    %v1009 = vperm.slane %v998, 1
    %v1044 = vunpack.c.l.b16 %v965
    %v1045 = vunpack.c.h.b16 %v965
    %v1046 = vunpack.c.l.b16 %v966
    %v1047 = vunpack.c.h.b16 %v966
    %v1048 = vunpack.c.l.b16 %v967
    %v1049 = vunpack.c.h.b16 %v967
    %v1050 = vunpack.c.l.b16 %v968
    %v1051 = vunpack.c.h.b16 %v968
    %v1052 = vunpack.c.l.b16 %v969
    %v1053 = vunpack.c.h.b16 %v969
    %v1054 = vunpack.c.l.b16 %v970
    %v1055 = vunpack.c.h.b16 %v970
    %v1056 = vunpack.c.l.b16 %v971
    %v1057 = vunpack.c.h.b16 %v971
    %v1058 = vunpack.c.l.b16 %v972
    %v1059 = vunpack.c.h.b16 %v972
    %v1060 = vunpack.c.l.b16 %v973
    %v1061 = vunpack.c.h.b16 %v973
    %v1062 = vunpack.c.l.b16 %v974
    %v1063 = vunpack.c.h.b16 %v974
    %v1064 = vunpack.c.l.b16 %v975
    %v1065 = vunpack.c.h.b16 %v975
    %v1066 = vunpack.c.l.b16 %v976
    %v1067 = vunpack.c.h.b16 %v976
    %v1068 = vunpack.c.l.b16 %v977
    %v1069 = vunpack.c.h.b16 %v977
    %v1070 = vunpack.c.l.b16 %v978
    %v1071 = vunpack.c.h.b16 %v978
    %v1072 = vunpack.c.l.b16 %v979
    %v1073 = vunpack.c.h.b16 %v979
    %v1074 = vunpack.c.l.b16 %v980
    %v1075 = vunpack.c.h.b16 %v980
    %v1076 = vunpack.c.l.b16 %v981
    %v1077 = vunpack.c.h.b16 %v981
    %v1078 = vunpack.c.l.b16 %v982
    %v1079 = vunpack.c.h.b16 %v982
    %v1080 = vunpack.c.l.b16 %v983
    %v1081 = vunpack.c.h.b16 %v983
    %v1082 = vunpack.c.l.b16 %v984
    %v1083 = vunpack.c.h.b16 %v984
    %v1084 = vunpack.c.l.b16 %v985
    %v1085 = vunpack.c.h.b16 %v985
    %v1086 = vunpack.c.l.b16 %v986
    %v1087 = vunpack.c.h.b16 %v986
    %v1088 = vunpack.c.l.b16 %v987
    %v1089 = vunpack.c.h.b16 %v987
    %v1090 = vunpack.c.l.b16 %v988
    %v1091 = vunpack.c.h.b16 %v988
    %v1092 = vunpack.c.l.b16 %v989
    %v1093 = vunpack.c.h.b16 %v989
    %v1094 = vunpack.c.l.b16 %v990
    %v1095 = vunpack.c.h.b16 %v990
    %v1096 = vunpack.c.l.b16 %v991
    %v1097 = vunpack.c.h.b16 %v991
    %v1098 = vunpack.c.l.b16 %v992
    %v1099 = vunpack.c.h.b16 %v992
    %v1100 = vunpack.c.l.b16 %v993
    %v1101 = vunpack.c.h.b16 %v993
    %v1102 = vunpack.c.l.b16 %v994
    %v1103 = vunpack.c.h.b16 %v994
    %v1104 = vunpack.c.l.b16 %v995
    %v1105 = vunpack.c.h.b16 %v995
    %v1106 = vunpack.c.l.b16 %v996
    %v1107 = vunpack.c.h.b16 %v996
    %v1108 = vpack.c.b16 %v1046, %v1044
    %v1109 = vpack.c.b16 %v1047, %v1045
    %v1110 = vpack.c.b16 %v1050, %v1048
    %v1111 = vpack.c.b16 %v1051, %v1049
    %v1112 = vpack.c.b16 %v1054, %v1052
    %v1113 = vpack.c.b16 %v1055, %v1053
    %v1114 = vpack.c.b16 %v1058, %v1056
    %v1115 = vpack.c.b16 %v1059, %v1057
    %v1116 = vpack.c.b16 %v1062, %v1060
    %v1117 = vpack.c.b16 %v1063, %v1061
    %v1118 = vpack.c.b16 %v1066, %v1064
    %v1119 = vpack.c.b16 %v1067, %v1065
    %v1120 = vpack.c.b16 %v1070, %v1068
    %v1121 = vpack.c.b16 %v1071, %v1069
    %v1122 = vpack.c.b16 %v1074, %v1072
    %v1123 = vpack.c.b16 %v1075, %v1073
    %v1124 = vpack.c.b16 %v1078, %v1076
    %v1125 = vpack.c.b16 %v1079, %v1077
    %v1126 = vpack.c.b16 %v1082, %v1080
    %v1127 = vpack.c.b16 %v1083, %v1081
    %v1128 = vpack.c.b16 %v1086, %v1084
    %v1129 = vpack.c.b16 %v1087, %v1085
    %v1130 = vpack.c.b16 %v1090, %v1088
    %v1131 = vpack.c.b16 %v1091, %v1089
    %v1132 = vpack.c.b16 %v1094, %v1092
    %v1133 = vpack.c.b16 %v1095, %v1093
    %v1134 = vpack.c.b16 %v1098, %v1096
    %v1135 = vpack.c.b16 %v1099, %v1097
    %v1136 = vpack.c.b16 %v1102, %v1100
    %v1137 = vpack.c.b16 %v1103, %v1101
    %v1138 = vpack.c.b16 %v1106, %v1104
    %v1139 = vpack.c.b16 %v1107, %v1105
    %1172 = vmatpush.bf16.msra.mxu0 %v1122
    %1173 = vmatpush.bf16.msra.mxu0 %v1120
    %1174 = vmatpush.bf16.msra.mxu0 %v1118
    %1175 = vmatpush.bf16.msra.mxu0 %v1116
    %1176 = vmatpush.bf16.msra.mxu0 %v1114
    %1177 = vmatpush.bf16.msra.mxu0 %v1112
    %1178 = vmatpush.bf16.msra.mxu0 %v1110
    %1179 = vmatpush.bf16.msra.mxu0 %v1108
    %1180 = vmatmul.bf16.gmra.mxu0 %v999
    %v1181 = vpop.f32.mrf.mxu0
    %v1182 = vadd.f32 %v1008, %v1181
    %v1183 = vpop.f32.mrf.mxu0
    %v1184 = vadd.f32 %v1008, %v1183
    %1185 = vmatmul.bf16.gmra.mxu0 %v1001
    %v1186 = vpop.f32.mrf.mxu0
    %v1187 = vadd.f32 %v1008, %v1186
    %v1188 = vpop.f32.mrf.mxu0
    %v1189 = vadd.f32 %v1008, %v1188
    %1190 = vmatmul.bf16.gmra.mxu0 %v1003
    %v1191 = vpop.f32.mrf.mxu0
    %v1192 = vadd.f32 %v1008, %v1191
    %v1193 = vpop.f32.mrf.mxu0
    %v1194 = vadd.f32 %v1008, %v1193
    %1195 = vmatmul.bf16.gmra.mxu0 %v1005
    %v1196 = vpop.f32.mrf.mxu0
    %v1197 = vadd.f32 %v1008, %v1196
    %v1198 = vpop.f32.mrf.mxu0
    %v1199 = vadd.f32 %v1008, %v1198
    %1200 = vdwg.mxu0
    %1201 = vmatpush.bf16.msra.mxu0 %v1138
    %1202 = vmatpush.bf16.msra.mxu0 %v1136
    %1203 = vmatpush.bf16.msra.mxu0 %v1134
    %1204 = vmatpush.bf16.msra.mxu0 %v1132
    %1205 = vmatpush.bf16.msra.mxu0 %v1130
    %1206 = vmatpush.bf16.msra.mxu0 %v1128
    %1207 = vmatpush.bf16.msra.mxu0 %v1126
    %1208 = vmatpush.bf16.msra.mxu0 %v1124
    %1209 = vmatmul.bf16.gmra.mxu0 %v1000
    %v1210 = vpop.f32.mrf.mxu0
    %v1211 = vadd.f32 %v1182, %v1210
    %v1212 = vpop.f32.mrf.mxu0
    %v1213 = vadd.f32 %v1184, %v1212
    %1214 = vmatmul.bf16.gmra.mxu0 %v1002
    %v1215 = vpop.f32.mrf.mxu0
    %v1216 = vadd.f32 %v1187, %v1215
    %v1217 = vpop.f32.mrf.mxu0
    %v1218 = vadd.f32 %v1189, %v1217
    %1219 = vmatmul.bf16.gmra.mxu0 %v1004
    %v1220 = vpop.f32.mrf.mxu0
    %v1221 = vadd.f32 %v1192, %v1220
    %v1222 = vpop.f32.mrf.mxu0
    %v1223 = vadd.f32 %v1194, %v1222
    %1224 = vmatmul.bf16.gmra.mxu0 %v1006
    %v1225 = vpop.f32.mrf.mxu0
    %v1226 = vadd.f32 %v1197, %v1225
    %v1227 = vpop.f32.mrf.mxu0
    %v1228 = vadd.f32 %v1199, %v1227
    %1229 = vdwg.mxu0
    %1230 = vmatpush.bf16.msra.mxu0 %v1123
    %1231 = vmatpush.bf16.msra.mxu0 %v1121
    %1232 = vmatpush.bf16.msra.mxu0 %v1119
    %1233 = vmatpush.bf16.msra.mxu0 %v1117
    %1234 = vmatpush.bf16.msra.mxu0 %v1115
    %1235 = vmatpush.bf16.msra.mxu0 %v1113
    %1236 = vmatpush.bf16.msra.mxu0 %v1111
    %1237 = vmatpush.bf16.msra.mxu0 %v1109
    %1238 = vmatmul.bf16.gmra.mxu0 %v999
    %v1239 = vpop.f32.mrf.mxu0
    %v1240 = vadd.f32 %v1009, %v1239
    %v1241 = vpop.f32.mrf.mxu0
    %v1242 = vadd.f32 %v1009, %v1241
    %1243 = vmatmul.bf16.gmra.mxu0 %v1001
    %v1244 = vpop.f32.mrf.mxu0
    %v1245 = vadd.f32 %v1009, %v1244
    %v1246 = vpop.f32.mrf.mxu0
    %v1247 = vadd.f32 %v1009, %v1246
    %1248 = vmatmul.bf16.gmra.mxu0 %v1003
    %v1249 = vpop.f32.mrf.mxu0
    %v1250 = vadd.f32 %v1009, %v1249
    %v1251 = vpop.f32.mrf.mxu0
    %v1252 = vadd.f32 %v1009, %v1251
    %1253 = vmatmul.bf16.gmra.mxu0 %v1005
    %v1254 = vpop.f32.mrf.mxu0
    %v1255 = vadd.f32 %v1009, %v1254
    %v1256 = vpop.f32.mrf.mxu0
    %v1257 = vadd.f32 %v1009, %v1256
    %1258 = vdwg.mxu0
    %1259 = vmatpush.bf16.msra.mxu0 %v1139
    %1260 = vmatpush.bf16.msra.mxu0 %v1137
    %1261 = vmatpush.bf16.msra.mxu0 %v1135
    %1262 = vmatpush.bf16.msra.mxu0 %v1133
    %1263 = vmatpush.bf16.msra.mxu0 %v1131
    %1264 = vmatpush.bf16.msra.mxu0 %v1129
    %1265 = vmatpush.bf16.msra.mxu0 %v1127
    %1266 = vmatpush.bf16.msra.mxu0 %v1125
    %1267 = vmatmul.bf16.gmra.mxu0 %v1000
    %v1268 = vpop.f32.mrf.mxu0
    %v1269 = vadd.f32 %v1240, %v1268
    %v1270 = vpop.f32.mrf.mxu0
    %v1271 = vadd.f32 %v1242, %v1270
    %1272 = vmatmul.bf16.gmra.mxu0 %v1002
    %v1273 = vpop.f32.mrf.mxu0
    %v1274 = vadd.f32 %v1245, %v1273
    %v1275 = vpop.f32.mrf.mxu0
    %v1276 = vadd.f32 %v1247, %v1275
    %1277 = vmatmul.bf16.gmra.mxu0 %v1004
    %v1278 = vpop.f32.mrf.mxu0
    %v1279 = vadd.f32 %v1250, %v1278
    %v1280 = vpop.f32.mrf.mxu0
    %v1281 = vadd.f32 %v1252, %v1280
    %1282 = vmatmul.bf16.gmra.mxu0 %v1006
    %v1283 = vpop.f32.mrf.mxu0
    %v1284 = vadd.f32 %v1255, %v1283
    %v1285 = vpop.f32.mrf.mxu0
    %v1286 = vadd.f32 %v1257, %v1285
    %1287 = vdwg.mxu0
    %s1288 = scalar_lea.vmem %s7, 2
    %v1289 = vld [vmem:[%s1288] sm:$0x3]
    %s1290 = scalar_lea.vmem %s8, 2
    %v1291 = vld [vmem:[%s1290] sm:$0x3]
    %v1292 = vadd.f32 %v1211, %v1213
    %v1293 = vadd.f32 %v1292, %v1216
    %v1294 = vadd.f32 %v1293, %v1218
    %v1295 = vadd.f32 %v1294, %v1221
    %v1296 = vadd.f32 %v1295, %v1223
    %v1297 = vadd.f32 %v1296, %v1226
    %v1298 = vadd.f32 %v1297, %v1228
    %v1299 = vrot.slane %v1298, 4
    %v1300 = vadd.f32 %v1298, %v1299
    %v1301 = vrot.slane %v1300, 2
    %v1302 = vadd.f32 %v1300, %v1301
    %v1303 = vrot.slane %v1302, 1
    %v1304 = vadd.f32 %v1302, %v1303
    %v1305 = vadd.f32 %v1269, %v1271
    %v1306 = vadd.f32 %v1305, %v1274
    %v1307 = vadd.f32 %v1306, %v1276
    %v1308 = vadd.f32 %v1307, %v1279
    %v1309 = vadd.f32 %v1308, %v1281
    %v1310 = vadd.f32 %v1309, %v1284
    %v1311 = vadd.f32 %v1310, %v1286
    %v1312 = vrot.slane %v1311, 4
    %v1313 = vadd.f32 %v1311, %v1312
    %v1314 = vrot.slane %v1313, 2
    %v1315 = vadd.f32 %v1313, %v1314
    %v1316 = vrot.slane %v1315, 1
    %v1317 = vadd.f32 %v1315, %v1316
    %v1318 = vmul.f32 %v1304, %v281
    %v1319 = vmul.f32 %v1317, %v281
    %v1320 = vsub.f32 %v1211, %v1318
    %v1321 = vsub.f32 %v1269, %v1319
    %v1322 = vsub.f32 %v1213, %v1318
    %v1323 = vsub.f32 %v1271, %v1319
    %v1324 = vsub.f32 %v1216, %v1318
    %v1325 = vsub.f32 %v1274, %v1319
    %v1326 = vsub.f32 %v1218, %v1318
    %v1327 = vsub.f32 %v1276, %v1319
    %v1328 = vsub.f32 %v1221, %v1318
    %v1329 = vsub.f32 %v1279, %v1319
    %v1330 = vsub.f32 %v1223, %v1318
    %v1331 = vsub.f32 %v1281, %v1319
    %v1332 = vsub.f32 %v1226, %v1318
    %v1333 = vsub.f32 %v1284, %v1319
    %v1334 = vsub.f32 %v1228, %v1318
    %v1335 = vsub.f32 %v1286, %v1319
    %v1336 = vmul.f32 %v1320, %v1320
    %v1337 = vmul.f32 %v1321, %v1321
    %v1338 = vmul.f32 %v1322, %v1322
    %v1339 = vmul.f32 %v1323, %v1323
    %v1340 = vmul.f32 %v1324, %v1324
    %v1341 = vmul.f32 %v1325, %v1325
    %v1342 = vmul.f32 %v1326, %v1326
    %v1343 = vmul.f32 %v1327, %v1327
    %v1344 = vmul.f32 %v1328, %v1328
    %v1345 = vmul.f32 %v1329, %v1329
    %v1346 = vmul.f32 %v1330, %v1330
    %v1347 = vmul.f32 %v1331, %v1331
    %v1348 = vmul.f32 %v1332, %v1332
    %v1349 = vmul.f32 %v1333, %v1333
    %v1350 = vmul.f32 %v1334, %v1334
    %v1351 = vmul.f32 %v1335, %v1335
    %v1352 = vadd.f32 %v1336, %v1338
    %v1353 = vadd.f32 %v1352, %v1340
    %v1354 = vadd.f32 %v1353, %v1342
    %v1355 = vadd.f32 %v1354, %v1344
    %v1356 = vadd.f32 %v1355, %v1346
    %v1357 = vadd.f32 %v1356, %v1348
    %v1358 = vadd.f32 %v1357, %v1350
    %v1359 = vrot.slane %v1358, 4
    %v1360 = vadd.f32 %v1358, %v1359
    %v1361 = vrot.slane %v1360, 2
    %v1362 = vadd.f32 %v1360, %v1361
    %v1363 = vrot.slane %v1362, 1
    %v1364 = vadd.f32 %v1362, %v1363
    %v1365 = vadd.f32 %v1337, %v1339
    %v1366 = vadd.f32 %v1365, %v1341
    %v1367 = vadd.f32 %v1366, %v1343
    %v1368 = vadd.f32 %v1367, %v1345
    %v1369 = vadd.f32 %v1368, %v1347
    %v1370 = vadd.f32 %v1369, %v1349
    %v1371 = vadd.f32 %v1370, %v1351
    %v1372 = vrot.slane %v1371, 4
    %v1373 = vadd.f32 %v1371, %v1372
    %v1374 = vrot.slane %v1373, 2
    %v1375 = vadd.f32 %v1373, %v1374
    %v1376 = vrot.slane %v1375, 1
    %v1377 = vadd.f32 %v1375, %v1376
    %v1378 = vmul.f32 %v1364, %v281
    %v1379 = vmul.f32 %v1377, %v281
    %v1380 = vadd.f32 %v1378, 1e-05
    %v1381 = vadd.f32 %v1379, 1e-05
    %v1382 = vrsqrt.pop %v1380
    %v1383 = vmul.f32 %v1382, %v1380
    %v1384 = vmul.f32 %v1383, %v1382
    %v1385 = vmul.f32 0.5, %v1384
    %v1386 = vsub.f32 1.5, %v1385
    %v1387 = vmul.f32 %v1382, %v1386
    %vm1388 = vweird.f32 %v1380
    %vm1389 = vweird.f32 %v1382
    %vm1390 = vmor %vm1388, %vm1389
    %v1391 = vsel %vm1390, %v1382, %v1387
    %v1392 = vrsqrt.pop %v1381
    %v1393 = vmul.f32 %v1392, %v1381
    %v1394 = vmul.f32 %v1393, %v1392
    %v1395 = vmul.f32 0.5, %v1394
    %v1396 = vsub.f32 1.5, %v1395
    %v1397 = vmul.f32 %v1392, %v1396
    %vm1398 = vweird.f32 %v1381
    %vm1399 = vweird.f32 %v1392
    %vm1400 = vmor %vm1398, %vm1399
    %v1401 = vsel %vm1400, %v1392, %v1397
    %v1402 = vmul.f32 %v1320, %v1391
    %v1403 = vmul.f32 %v1321, %v1401
    %v1404 = vmul.f32 %v1322, %v1391
    %v1405 = vmul.f32 %v1323, %v1401
    %v1406 = vmul.f32 %v1324, %v1391
    %v1407 = vmul.f32 %v1325, %v1401
    %v1408 = vmul.f32 %v1326, %v1391
    %v1409 = vmul.f32 %v1327, %v1401
    %v1410 = vmul.f32 %v1328, %v1391
    %v1411 = vmul.f32 %v1329, %v1401
    %v1412 = vmul.f32 %v1330, %v1391
    %v1413 = vmul.f32 %v1331, %v1401
    %v1414 = vmul.f32 %v1332, %v1391
    %v1415 = vmul.f32 %v1333, %v1401
    %v1416 = vmul.f32 %v1334, %v1391
    %v1417 = vmul.f32 %v1335, %v1401
    %v1419 = vperm.slane %v1289, 0
    %v1420 = vperm.slane %v1289, 1
    %v1423 = vmul.f32 %v1402, %v1419
    %v1424 = vmul.f32 %v1403, %v1420
    %v1425 = vmul.f32 %v1404, %v1419
    %v1426 = vmul.f32 %v1405, %v1420
    %v1427 = vmul.f32 %v1406, %v1419
    %v1428 = vmul.f32 %v1407, %v1420
    %v1429 = vmul.f32 %v1408, %v1419
    %v1430 = vmul.f32 %v1409, %v1420
    %v1431 = vmul.f32 %v1410, %v1419
    %v1432 = vmul.f32 %v1411, %v1420
    %v1433 = vmul.f32 %v1412, %v1419
    %v1434 = vmul.f32 %v1413, %v1420
    %v1435 = vmul.f32 %v1414, %v1419
    %v1436 = vmul.f32 %v1415, %v1420
    %v1437 = vmul.f32 %v1416, %v1419
    %v1438 = vmul.f32 %v1417, %v1420
    %v1440 = vperm.slane %v1291, 0
    %v1441 = vperm.slane %v1291, 1
    %v1444 = vadd.f32 %v1423, %v1440
    %v1445 = vadd.f32 %v1424, %v1441
    %v1446 = vadd.f32 %v1425, %v1440
    %v1447 = vadd.f32 %v1426, %v1441
    %v1448 = vadd.f32 %v1427, %v1440
    %v1449 = vadd.f32 %v1428, %v1441
    %v1450 = vadd.f32 %v1429, %v1440
    %v1451 = vadd.f32 %v1430, %v1441
    %v1452 = vadd.f32 %v1431, %v1440
    %v1453 = vadd.f32 %v1432, %v1441
    %v1454 = vadd.f32 %v1433, %v1440
    %v1455 = vadd.f32 %v1434, %v1441
    %v1456 = vadd.f32 %v1435, %v1440
    %v1457 = vadd.f32 %v1436, %v1441
    %v1458 = vadd.f32 %v1437, %v1440
    %v1459 = vadd.f32 %v1438, %v1441
    %v1460 = vadd.f32 %v1444, %v948
    %v1461 = vadd.f32 %v1445, %v949
    %v1462 = vadd.f32 %v1446, %v950
    %v1463 = vadd.f32 %v1447, %v951
    %v1464 = vadd.f32 %v1448, %v952
    %v1465 = vadd.f32 %v1449, %v953
    %v1466 = vadd.f32 %v1450, %v954
    %v1467 = vadd.f32 %v1451, %v955
    %v1468 = vadd.f32 %v1452, %v956
    %v1469 = vadd.f32 %v1453, %v957
    %v1470 = vadd.f32 %v1454, %v958
    %v1471 = vadd.f32 %v1455, %v959
    %v1472 = vadd.f32 %v1456, %v960
    %v1473 = vadd.f32 %v1457, %v961
    %v1474 = vadd.f32 %v1458, %v962
    %v1475 = vadd.f32 %v1459, %v963
    %v1476 = vmax.f32 %v1460, 0.0
    %v1477 = vmax.f32 %v1461, 0.0
    %v1478 = vmax.f32 %v1462, 0.0
    %v1479 = vmax.f32 %v1463, 0.0
    %v1480 = vmax.f32 %v1464, 0.0
    %v1481 = vmax.f32 %v1465, 0.0
    %v1482 = vmax.f32 %v1466, 0.0
    %v1483 = vmax.f32 %v1467, 0.0
    %v1484 = vmax.f32 %v1468, 0.0
    %v1485 = vmax.f32 %v1469, 0.0
    %v1486 = vmax.f32 %v1470, 0.0
    %v1487 = vmax.f32 %v1471, 0.0
    %v1488 = vmax.f32 %v1472, 0.0
    %v1489 = vmax.f32 %v1473, 0.0
    %v1490 = vmax.f32 %v1474, 0.0
    %v1491 = vmax.f32 %v1475, 0.0
    %s1492 = scalar_lea.vmem [#allocation5], 512
    %v1493 = vld [vmem:[%s1492] sm:$0xff]
    %v1494 = vld [vmem:[%s1492 + $0x8] sm:$0xff]
    %v1495 = vld [vmem:[%s1492 + $0x10] sm:$0xff]
    %v1496 = vld [vmem:[%s1492 + $0x18] sm:$0xff]
    %v1497 = vld [vmem:[%s1492 + $0x20] sm:$0xff]
    %v1498 = vld [vmem:[%s1492 + $0x28] sm:$0xff]
    %v1499 = vld [vmem:[%s1492 + $0x30] sm:$0xff]
    %v1500 = vld [vmem:[%s1492 + $0x38] sm:$0xff]
    %v1501 = vld [vmem:[%s1492 + $0x40] sm:$0xff]
    %v1502 = vld [vmem:[%s1492 + $0x48] sm:$0xff]
    %v1503 = vld [vmem:[%s1492 + $0x50] sm:$0xff]
    %v1504 = vld [vmem:[%s1492 + $0x58] sm:$0xff]
    %v1505 = vld [vmem:[%s1492 + $0x60] sm:$0xff]
    %v1506 = vld [vmem:[%s1492 + $0x68] sm:$0xff]
    %v1507 = vld [vmem:[%s1492 + $0x70] sm:$0xff]
    %v1508 = vld [vmem:[%s1492 + $0x78] sm:$0xff]
    %v1509 = vld [vmem:[%s1492 + $0x80] sm:$0xff]
    %v1510 = vld [vmem:[%s1492 + $0x88] sm:$0xff]
    %v1511 = vld [vmem:[%s1492 + $0x90] sm:$0xff]
    %v1512 = vld [vmem:[%s1492 + $0x98] sm:$0xff]
    %v1513 = vld [vmem:[%s1492 + $0xa0] sm:$0xff]
    %v1514 = vld [vmem:[%s1492 + $0xa8] sm:$0xff]
    %v1515 = vld [vmem:[%s1492 + $0xb0] sm:$0xff]
    %v1516 = vld [vmem:[%s1492 + $0xb8] sm:$0xff]
    %v1517 = vld [vmem:[%s1492 + $0xc0] sm:$0xff]
    %v1518 = vld [vmem:[%s1492 + $0xc8] sm:$0xff]
    %v1519 = vld [vmem:[%s1492 + $0xd0] sm:$0xff]
    %v1520 = vld [vmem:[%s1492 + $0xd8] sm:$0xff]
    %v1521 = vld [vmem:[%s1492 + $0xe0] sm:$0xff]
    %v1522 = vld [vmem:[%s1492 + $0xe8] sm:$0xff]
    %v1523 = vld [vmem:[%s1492 + $0xf0] sm:$0xff]
    %v1524 = vld [vmem:[%s1492 + $0xf8] sm:$0xff]
    %s1525 = scalar_lea.vmem %s6, 4
    %v1526 = vld [vmem:[%s1525] sm:$0x3]
    %v1527 = vpack.c.bf16 %v1478, %v1476
    %v1528 = vpack.c.bf16 %v1479, %v1477
    %v1529 = vpack.c.bf16 %v1482, %v1480
    %v1530 = vpack.c.bf16 %v1483, %v1481
    %v1531 = vpack.c.bf16 %v1486, %v1484
    %v1532 = vpack.c.bf16 %v1487, %v1485
    %v1533 = vpack.c.bf16 %v1490, %v1488
    %v1534 = vpack.c.bf16 %v1491, %v1489
    %v1536 = vperm.slane %v1526, 0
    %v1537 = vperm.slane %v1526, 1
    %v1572 = vunpack.c.l.b16 %v1493
    %v1573 = vunpack.c.h.b16 %v1493
    %v1574 = vunpack.c.l.b16 %v1494
    %v1575 = vunpack.c.h.b16 %v1494
    %v1576 = vunpack.c.l.b16 %v1495
    %v1577 = vunpack.c.h.b16 %v1495
    %v1578 = vunpack.c.l.b16 %v1496
    %v1579 = vunpack.c.h.b16 %v1496
    %v1580 = vunpack.c.l.b16 %v1497
    %v1581 = vunpack.c.h.b16 %v1497
    %v1582 = vunpack.c.l.b16 %v1498
    %v1583 = vunpack.c.h.b16 %v1498
    %v1584 = vunpack.c.l.b16 %v1499
    %v1585 = vunpack.c.h.b16 %v1499
    %v1586 = vunpack.c.l.b16 %v1500
    %v1587 = vunpack.c.h.b16 %v1500
    %v1588 = vunpack.c.l.b16 %v1501
    %v1589 = vunpack.c.h.b16 %v1501
    %v1590 = vunpack.c.l.b16 %v1502
    %v1591 = vunpack.c.h.b16 %v1502
    %v1592 = vunpack.c.l.b16 %v1503
    %v1593 = vunpack.c.h.b16 %v1503
    %v1594 = vunpack.c.l.b16 %v1504
    %v1595 = vunpack.c.h.b16 %v1504
    %v1596 = vunpack.c.l.b16 %v1505
    %v1597 = vunpack.c.h.b16 %v1505
    %v1598 = vunpack.c.l.b16 %v1506
    %v1599 = vunpack.c.h.b16 %v1506
    %v1600 = vunpack.c.l.b16 %v1507
    %v1601 = vunpack.c.h.b16 %v1507
    %v1602 = vunpack.c.l.b16 %v1508
    %v1603 = vunpack.c.h.b16 %v1508
    %v1604 = vunpack.c.l.b16 %v1509
    %v1605 = vunpack.c.h.b16 %v1509
    %v1606 = vunpack.c.l.b16 %v1510
    %v1607 = vunpack.c.h.b16 %v1510
    %v1608 = vunpack.c.l.b16 %v1511
    %v1609 = vunpack.c.h.b16 %v1511
    %v1610 = vunpack.c.l.b16 %v1512
    %v1611 = vunpack.c.h.b16 %v1512
    %v1612 = vunpack.c.l.b16 %v1513
    %v1613 = vunpack.c.h.b16 %v1513
    %v1614 = vunpack.c.l.b16 %v1514
    %v1615 = vunpack.c.h.b16 %v1514
    %v1616 = vunpack.c.l.b16 %v1515
    %v1617 = vunpack.c.h.b16 %v1515
    %v1618 = vunpack.c.l.b16 %v1516
    %v1619 = vunpack.c.h.b16 %v1516
    %v1620 = vunpack.c.l.b16 %v1517
    %v1621 = vunpack.c.h.b16 %v1517
    %v1622 = vunpack.c.l.b16 %v1518
    %v1623 = vunpack.c.h.b16 %v1518
    %v1624 = vunpack.c.l.b16 %v1519
    %v1625 = vunpack.c.h.b16 %v1519
    %v1626 = vunpack.c.l.b16 %v1520
    %v1627 = vunpack.c.h.b16 %v1520
    %v1628 = vunpack.c.l.b16 %v1521
    %v1629 = vunpack.c.h.b16 %v1521
    %v1630 = vunpack.c.l.b16 %v1522
    %v1631 = vunpack.c.h.b16 %v1522
    %v1632 = vunpack.c.l.b16 %v1523
    %v1633 = vunpack.c.h.b16 %v1523
    %v1634 = vunpack.c.l.b16 %v1524
    %v1635 = vunpack.c.h.b16 %v1524
    %v1636 = vpack.c.b16 %v1574, %v1572
    %v1637 = vpack.c.b16 %v1575, %v1573
    %v1638 = vpack.c.b16 %v1578, %v1576
    %v1639 = vpack.c.b16 %v1579, %v1577
    %v1640 = vpack.c.b16 %v1582, %v1580
    %v1641 = vpack.c.b16 %v1583, %v1581
    %v1642 = vpack.c.b16 %v1586, %v1584
    %v1643 = vpack.c.b16 %v1587, %v1585
    %v1644 = vpack.c.b16 %v1590, %v1588
    %v1645 = vpack.c.b16 %v1591, %v1589
    %v1646 = vpack.c.b16 %v1594, %v1592
    %v1647 = vpack.c.b16 %v1595, %v1593
    %v1648 = vpack.c.b16 %v1598, %v1596
    %v1649 = vpack.c.b16 %v1599, %v1597
    %v1650 = vpack.c.b16 %v1602, %v1600
    %v1651 = vpack.c.b16 %v1603, %v1601
    %v1652 = vpack.c.b16 %v1606, %v1604
    %v1653 = vpack.c.b16 %v1607, %v1605
    %v1654 = vpack.c.b16 %v1610, %v1608
    %v1655 = vpack.c.b16 %v1611, %v1609
    %v1656 = vpack.c.b16 %v1614, %v1612
    %v1657 = vpack.c.b16 %v1615, %v1613
    %v1658 = vpack.c.b16 %v1618, %v1616
    %v1659 = vpack.c.b16 %v1619, %v1617
    %v1660 = vpack.c.b16 %v1622, %v1620
    %v1661 = vpack.c.b16 %v1623, %v1621
    %v1662 = vpack.c.b16 %v1626, %v1624
    %v1663 = vpack.c.b16 %v1627, %v1625
    %v1664 = vpack.c.b16 %v1630, %v1628
    %v1665 = vpack.c.b16 %v1631, %v1629
    %v1666 = vpack.c.b16 %v1634, %v1632
    %v1667 = vpack.c.b16 %v1635, %v1633
    %1700 = vmatpush.bf16.msra.mxu0 %v1650
    %1701 = vmatpush.bf16.msra.mxu0 %v1648
    %1702 = vmatpush.bf16.msra.mxu0 %v1646
    %1703 = vmatpush.bf16.msra.mxu0 %v1644
    %1704 = vmatpush.bf16.msra.mxu0 %v1642
    %1705 = vmatpush.bf16.msra.mxu0 %v1640
    %1706 = vmatpush.bf16.msra.mxu0 %v1638
    %1707 = vmatpush.bf16.msra.mxu0 %v1636
    %1708 = vmatmul.bf16.gmra.mxu0 %v1527
    %v1709 = vpop.f32.mrf.mxu0
    %v1710 = vadd.f32 %v1536, %v1709
    %v1711 = vpop.f32.mrf.mxu0
    %v1712 = vadd.f32 %v1536, %v1711
    %1713 = vmatmul.bf16.gmra.mxu0 %v1529
    %v1714 = vpop.f32.mrf.mxu0
    %v1715 = vadd.f32 %v1536, %v1714
    %v1716 = vpop.f32.mrf.mxu0
    %v1717 = vadd.f32 %v1536, %v1716
    %1718 = vmatmul.bf16.gmra.mxu0 %v1531
    %v1719 = vpop.f32.mrf.mxu0
    %v1720 = vadd.f32 %v1536, %v1719
    %v1721 = vpop.f32.mrf.mxu0
    %v1722 = vadd.f32 %v1536, %v1721
    %1723 = vmatmul.bf16.gmra.mxu0 %v1533
    %v1724 = vpop.f32.mrf.mxu0
    %v1725 = vadd.f32 %v1536, %v1724
    %v1726 = vpop.f32.mrf.mxu0
    %v1727 = vadd.f32 %v1536, %v1726
    %1728 = vdwg.mxu0
    %1729 = vmatpush.bf16.msra.mxu0 %v1666
    %1730 = vmatpush.bf16.msra.mxu0 %v1664
    %1731 = vmatpush.bf16.msra.mxu0 %v1662
    %1732 = vmatpush.bf16.msra.mxu0 %v1660
    %1733 = vmatpush.bf16.msra.mxu0 %v1658
    %1734 = vmatpush.bf16.msra.mxu0 %v1656
    %1735 = vmatpush.bf16.msra.mxu0 %v1654
    %1736 = vmatpush.bf16.msra.mxu0 %v1652
    %1737 = vmatmul.bf16.gmra.mxu0 %v1528
    %v1738 = vpop.f32.mrf.mxu0
    %v1739 = vadd.f32 %v1710, %v1738
    %v1740 = vpop.f32.mrf.mxu0
    %v1741 = vadd.f32 %v1712, %v1740
    %1742 = vmatmul.bf16.gmra.mxu0 %v1530
    %v1743 = vpop.f32.mrf.mxu0
    %v1744 = vadd.f32 %v1715, %v1743
    %v1745 = vpop.f32.mrf.mxu0
    %v1746 = vadd.f32 %v1717, %v1745
    %1747 = vmatmul.bf16.gmra.mxu0 %v1532
    %v1748 = vpop.f32.mrf.mxu0
    %v1749 = vadd.f32 %v1720, %v1748
    %v1750 = vpop.f32.mrf.mxu0
    %v1751 = vadd.f32 %v1722, %v1750
    %1752 = vmatmul.bf16.gmra.mxu0 %v1534
    %v1753 = vpop.f32.mrf.mxu0
    %v1754 = vadd.f32 %v1725, %v1753
    %v1755 = vpop.f32.mrf.mxu0
    %v1756 = vadd.f32 %v1727, %v1755
    %1757 = vdwg.mxu0
    %1758 = vmatpush.bf16.msra.mxu0 %v1651
    %1759 = vmatpush.bf16.msra.mxu0 %v1649
    %1760 = vmatpush.bf16.msra.mxu0 %v1647
    %1761 = vmatpush.bf16.msra.mxu0 %v1645
    %1762 = vmatpush.bf16.msra.mxu0 %v1643
    %1763 = vmatpush.bf16.msra.mxu0 %v1641
    %1764 = vmatpush.bf16.msra.mxu0 %v1639
    %1765 = vmatpush.bf16.msra.mxu0 %v1637
    %1766 = vmatmul.bf16.gmra.mxu0 %v1527
    %v1767 = vpop.f32.mrf.mxu0
    %v1768 = vadd.f32 %v1537, %v1767
    %v1769 = vpop.f32.mrf.mxu0
    %v1770 = vadd.f32 %v1537, %v1769
    %1771 = vmatmul.bf16.gmra.mxu0 %v1529
    %v1772 = vpop.f32.mrf.mxu0
    %v1773 = vadd.f32 %v1537, %v1772
    %v1774 = vpop.f32.mrf.mxu0
    %v1775 = vadd.f32 %v1537, %v1774
    %1776 = vmatmul.bf16.gmra.mxu0 %v1531
    %v1777 = vpop.f32.mrf.mxu0
    %v1778 = vadd.f32 %v1537, %v1777
    %v1779 = vpop.f32.mrf.mxu0
    %v1780 = vadd.f32 %v1537, %v1779
    %1781 = vmatmul.bf16.gmra.mxu0 %v1533
    %v1782 = vpop.f32.mrf.mxu0
    %v1783 = vadd.f32 %v1537, %v1782
    %v1784 = vpop.f32.mrf.mxu0
    %v1785 = vadd.f32 %v1537, %v1784
    %1786 = vdwg.mxu0
    %1787 = vmatpush.bf16.msra.mxu0 %v1667
    %1788 = vmatpush.bf16.msra.mxu0 %v1665
    %1789 = vmatpush.bf16.msra.mxu0 %v1663
    %1790 = vmatpush.bf16.msra.mxu0 %v1661
    %1791 = vmatpush.bf16.msra.mxu0 %v1659
    %1792 = vmatpush.bf16.msra.mxu0 %v1657
    %1793 = vmatpush.bf16.msra.mxu0 %v1655
    %1794 = vmatpush.bf16.msra.mxu0 %v1653
    %1795 = vmatmul.bf16.gmra.mxu0 %v1528
    %v1796 = vpop.f32.mrf.mxu0
    %v1797 = vadd.f32 %v1768, %v1796
    %v1798 = vpop.f32.mrf.mxu0
    %v1799 = vadd.f32 %v1770, %v1798
    %1800 = vmatmul.bf16.gmra.mxu0 %v1530
    %v1801 = vpop.f32.mrf.mxu0
    %v1802 = vadd.f32 %v1773, %v1801
    %v1803 = vpop.f32.mrf.mxu0
    %v1804 = vadd.f32 %v1775, %v1803
    %1805 = vmatmul.bf16.gmra.mxu0 %v1532
    %v1806 = vpop.f32.mrf.mxu0
    %v1807 = vadd.f32 %v1778, %v1806
    %v1808 = vpop.f32.mrf.mxu0
    %v1809 = vadd.f32 %v1780, %v1808
    %1810 = vmatmul.bf16.gmra.mxu0 %v1534
    %v1811 = vpop.f32.mrf.mxu0
    %v1812 = vadd.f32 %v1783, %v1811
    %v1813 = vpop.f32.mrf.mxu0
    %v1814 = vadd.f32 %v1785, %v1813
    %1815 = vdwg.mxu0
    %s1816 = scalar_lea.vmem %s7, 4
    %v1817 = vld [vmem:[%s1816] sm:$0x3]
    %s1818 = scalar_lea.vmem %s8, 4
    %v1819 = vld [vmem:[%s1818] sm:$0x3]
    %v1820 = vadd.f32 %v1739, %v1741
    %v1821 = vadd.f32 %v1820, %v1744
    %v1822 = vadd.f32 %v1821, %v1746
    %v1823 = vadd.f32 %v1822, %v1749
    %v1824 = vadd.f32 %v1823, %v1751
    %v1825 = vadd.f32 %v1824, %v1754
    %v1826 = vadd.f32 %v1825, %v1756
    %v1827 = vrot.slane %v1826, 4
    %v1828 = vadd.f32 %v1826, %v1827
    %v1829 = vrot.slane %v1828, 2
    %v1830 = vadd.f32 %v1828, %v1829
    %v1831 = vrot.slane %v1830, 1
    %v1832 = vadd.f32 %v1830, %v1831
    %v1833 = vadd.f32 %v1797, %v1799
    %v1834 = vadd.f32 %v1833, %v1802
    %v1835 = vadd.f32 %v1834, %v1804
    %v1836 = vadd.f32 %v1835, %v1807
    %v1837 = vadd.f32 %v1836, %v1809
    %v1838 = vadd.f32 %v1837, %v1812
    %v1839 = vadd.f32 %v1838, %v1814
    %v1840 = vrot.slane %v1839, 4
    %v1841 = vadd.f32 %v1839, %v1840
    %v1842 = vrot.slane %v1841, 2
    %v1843 = vadd.f32 %v1841, %v1842
    %v1844 = vrot.slane %v1843, 1
    %v1845 = vadd.f32 %v1843, %v1844
    %v1846 = vmul.f32 %v1832, %v281
    %v1847 = vmul.f32 %v1845, %v281
    %v1848 = vsub.f32 %v1739, %v1846
    %v1849 = vsub.f32 %v1797, %v1847
    %v1850 = vsub.f32 %v1741, %v1846
    %v1851 = vsub.f32 %v1799, %v1847
    %v1852 = vsub.f32 %v1744, %v1846
    %v1853 = vsub.f32 %v1802, %v1847
    %v1854 = vsub.f32 %v1746, %v1846
    %v1855 = vsub.f32 %v1804, %v1847
    %v1856 = vsub.f32 %v1749, %v1846
    %v1857 = vsub.f32 %v1807, %v1847
    %v1858 = vsub.f32 %v1751, %v1846
    %v1859 = vsub.f32 %v1809, %v1847
    %v1860 = vsub.f32 %v1754, %v1846
    %v1861 = vsub.f32 %v1812, %v1847
    %v1862 = vsub.f32 %v1756, %v1846
    %v1863 = vsub.f32 %v1814, %v1847
    %v1864 = vmul.f32 %v1848, %v1848
    %v1865 = vmul.f32 %v1849, %v1849
    %v1866 = vmul.f32 %v1850, %v1850
    %v1867 = vmul.f32 %v1851, %v1851
    %v1868 = vmul.f32 %v1852, %v1852
    %v1869 = vmul.f32 %v1853, %v1853
    %v1870 = vmul.f32 %v1854, %v1854
    %v1871 = vmul.f32 %v1855, %v1855
    %v1872 = vmul.f32 %v1856, %v1856
    %v1873 = vmul.f32 %v1857, %v1857
    %v1874 = vmul.f32 %v1858, %v1858
    %v1875 = vmul.f32 %v1859, %v1859
    %v1876 = vmul.f32 %v1860, %v1860
    %v1877 = vmul.f32 %v1861, %v1861
    %v1878 = vmul.f32 %v1862, %v1862
    %v1879 = vmul.f32 %v1863, %v1863
    %v1880 = vadd.f32 %v1864, %v1866
    %v1881 = vadd.f32 %v1880, %v1868
    %v1882 = vadd.f32 %v1881, %v1870
    %v1883 = vadd.f32 %v1882, %v1872
    %v1884 = vadd.f32 %v1883, %v1874
    %v1885 = vadd.f32 %v1884, %v1876
    %v1886 = vadd.f32 %v1885, %v1878
    %v1887 = vrot.slane %v1886, 4
    %v1888 = vadd.f32 %v1886, %v1887
    %v1889 = vrot.slane %v1888, 2
    %v1890 = vadd.f32 %v1888, %v1889
    %v1891 = vrot.slane %v1890, 1
    %v1892 = vadd.f32 %v1890, %v1891
    %v1893 = vadd.f32 %v1865, %v1867
    %v1894 = vadd.f32 %v1893, %v1869
    %v1895 = vadd.f32 %v1894, %v1871
    %v1896 = vadd.f32 %v1895, %v1873
    %v1897 = vadd.f32 %v1896, %v1875
    %v1898 = vadd.f32 %v1897, %v1877
    %v1899 = vadd.f32 %v1898, %v1879
    %v1900 = vrot.slane %v1899, 4
    %v1901 = vadd.f32 %v1899, %v1900
    %v1902 = vrot.slane %v1901, 2
    %v1903 = vadd.f32 %v1901, %v1902
    %v1904 = vrot.slane %v1903, 1
    %v1905 = vadd.f32 %v1903, %v1904
    %v1906 = vmul.f32 %v1892, %v281
    %v1907 = vmul.f32 %v1905, %v281
    %v1908 = vadd.f32 %v1906, 1e-05
    %v1909 = vadd.f32 %v1907, 1e-05
    %v1910 = vrsqrt.pop %v1908
    %v1911 = vmul.f32 %v1910, %v1908
    %v1912 = vmul.f32 %v1911, %v1910
    %v1913 = vmul.f32 0.5, %v1912
    %v1914 = vsub.f32 1.5, %v1913
    %v1915 = vmul.f32 %v1910, %v1914
    %vm1916 = vweird.f32 %v1908
    %vm1917 = vweird.f32 %v1910
    %vm1918 = vmor %vm1916, %vm1917
    %v1919 = vsel %vm1918, %v1910, %v1915
    %v1920 = vrsqrt.pop %v1909
    %v1921 = vmul.f32 %v1920, %v1909
    %v1922 = vmul.f32 %v1921, %v1920
    %v1923 = vmul.f32 0.5, %v1922
    %v1924 = vsub.f32 1.5, %v1923
    %v1925 = vmul.f32 %v1920, %v1924
    %vm1926 = vweird.f32 %v1909
    %vm1927 = vweird.f32 %v1920
    %vm1928 = vmor %vm1926, %vm1927
    %v1929 = vsel %vm1928, %v1920, %v1925
    %v1930 = vmul.f32 %v1848, %v1919
    %v1931 = vmul.f32 %v1849, %v1929
    %v1932 = vmul.f32 %v1850, %v1919
    %v1933 = vmul.f32 %v1851, %v1929
    %v1934 = vmul.f32 %v1852, %v1919
    %v1935 = vmul.f32 %v1853, %v1929
    %v1936 = vmul.f32 %v1854, %v1919
    %v1937 = vmul.f32 %v1855, %v1929
    %v1938 = vmul.f32 %v1856, %v1919
    %v1939 = vmul.f32 %v1857, %v1929
    %v1940 = vmul.f32 %v1858, %v1919
    %v1941 = vmul.f32 %v1859, %v1929
    %v1942 = vmul.f32 %v1860, %v1919
    %v1943 = vmul.f32 %v1861, %v1929
    %v1944 = vmul.f32 %v1862, %v1919
    %v1945 = vmul.f32 %v1863, %v1929
    %v1947 = vperm.slane %v1817, 0
    %v1948 = vperm.slane %v1817, 1
    %v1951 = vmul.f32 %v1930, %v1947
    %v1952 = vmul.f32 %v1931, %v1948
    %v1953 = vmul.f32 %v1932, %v1947
    %v1954 = vmul.f32 %v1933, %v1948
    %v1955 = vmul.f32 %v1934, %v1947
    %v1956 = vmul.f32 %v1935, %v1948
    %v1957 = vmul.f32 %v1936, %v1947
    %v1958 = vmul.f32 %v1937, %v1948
    %v1959 = vmul.f32 %v1938, %v1947
    %v1960 = vmul.f32 %v1939, %v1948
    %v1961 = vmul.f32 %v1940, %v1947
    %v1962 = vmul.f32 %v1941, %v1948
    %v1963 = vmul.f32 %v1942, %v1947
    %v1964 = vmul.f32 %v1943, %v1948
    %v1965 = vmul.f32 %v1944, %v1947
    %v1966 = vmul.f32 %v1945, %v1948
    %v1968 = vperm.slane %v1819, 0
    %v1969 = vperm.slane %v1819, 1
    %v1972 = vadd.f32 %v1951, %v1968
    %v1973 = vadd.f32 %v1952, %v1969
    %v1974 = vadd.f32 %v1953, %v1968
    %v1975 = vadd.f32 %v1954, %v1969
    %v1976 = vadd.f32 %v1955, %v1968
    %v1977 = vadd.f32 %v1956, %v1969
    %v1978 = vadd.f32 %v1957, %v1968
    %v1979 = vadd.f32 %v1958, %v1969
    %v1980 = vadd.f32 %v1959, %v1968
    %v1981 = vadd.f32 %v1960, %v1969
    %v1982 = vadd.f32 %v1961, %v1968
    %v1983 = vadd.f32 %v1962, %v1969
    %v1984 = vadd.f32 %v1963, %v1968
    %v1985 = vadd.f32 %v1964, %v1969
    %v1986 = vadd.f32 %v1965, %v1968
    %v1987 = vadd.f32 %v1966, %v1969
    %v1988 = vadd.f32 %v1972, %v1476
    %v1989 = vadd.f32 %v1973, %v1477
    %v1990 = vadd.f32 %v1974, %v1478
    %v1991 = vadd.f32 %v1975, %v1479
    %v1992 = vadd.f32 %v1976, %v1480
    %v1993 = vadd.f32 %v1977, %v1481
    %v1994 = vadd.f32 %v1978, %v1482
    %v1995 = vadd.f32 %v1979, %v1483
    %v1996 = vadd.f32 %v1980, %v1484
    %v1997 = vadd.f32 %v1981, %v1485
    %v1998 = vadd.f32 %v1982, %v1486
    %v1999 = vadd.f32 %v1983, %v1487
    %v2000 = vadd.f32 %v1984, %v1488
    %v2001 = vadd.f32 %v1985, %v1489
    %v2002 = vadd.f32 %v1986, %v1490
    %v2003 = vadd.f32 %v1987, %v1491
    %v2004 = vmax.f32 %v1988, 0.0
    %v2005 = vmax.f32 %v1989, 0.0
    %v2006 = vmax.f32 %v1990, 0.0
    %v2007 = vmax.f32 %v1991, 0.0
    %v2008 = vmax.f32 %v1992, 0.0
    %v2009 = vmax.f32 %v1993, 0.0
    %v2010 = vmax.f32 %v1994, 0.0
    %v2011 = vmax.f32 %v1995, 0.0
    %v2012 = vmax.f32 %v1996, 0.0
    %v2013 = vmax.f32 %v1997, 0.0
    %v2014 = vmax.f32 %v1998, 0.0
    %v2015 = vmax.f32 %v1999, 0.0
    %v2016 = vmax.f32 %v2000, 0.0
    %v2017 = vmax.f32 %v2001, 0.0
    %v2018 = vmax.f32 %v2002, 0.0
    %v2019 = vmax.f32 %v2003, 0.0
    %s2020 = scalar_lea.vmem [#allocation5], 768
    %v2021 = vld [vmem:[%s2020] sm:$0xff]
    %v2022 = vld [vmem:[%s2020 + $0x8] sm:$0xff]
    %v2023 = vld [vmem:[%s2020 + $0x10] sm:$0xff]
    %v2024 = vld [vmem:[%s2020 + $0x18] sm:$0xff]
    %v2025 = vld [vmem:[%s2020 + $0x20] sm:$0xff]
    %v2026 = vld [vmem:[%s2020 + $0x28] sm:$0xff]
    %v2027 = vld [vmem:[%s2020 + $0x30] sm:$0xff]
    %v2028 = vld [vmem:[%s2020 + $0x38] sm:$0xff]
    %v2029 = vld [vmem:[%s2020 + $0x40] sm:$0xff]
    %v2030 = vld [vmem:[%s2020 + $0x48] sm:$0xff]
    %v2031 = vld [vmem:[%s2020 + $0x50] sm:$0xff]
    %v2032 = vld [vmem:[%s2020 + $0x58] sm:$0xff]
    %v2033 = vld [vmem:[%s2020 + $0x60] sm:$0xff]
    %v2034 = vld [vmem:[%s2020 + $0x68] sm:$0xff]
    %v2035 = vld [vmem:[%s2020 + $0x70] sm:$0xff]
    %v2036 = vld [vmem:[%s2020 + $0x78] sm:$0xff]
    %v2037 = vld [vmem:[%s2020 + $0x80] sm:$0xff]
    %v2038 = vld [vmem:[%s2020 + $0x88] sm:$0xff]
    %v2039 = vld [vmem:[%s2020 + $0x90] sm:$0xff]
    %v2040 = vld [vmem:[%s2020 + $0x98] sm:$0xff]
    %v2041 = vld [vmem:[%s2020 + $0xa0] sm:$0xff]
    %v2042 = vld [vmem:[%s2020 + $0xa8] sm:$0xff]
    %v2043 = vld [vmem:[%s2020 + $0xb0] sm:$0xff]
    %v2044 = vld [vmem:[%s2020 + $0xb8] sm:$0xff]
    %v2045 = vld [vmem:[%s2020 + $0xc0] sm:$0xff]
    %v2046 = vld [vmem:[%s2020 + $0xc8] sm:$0xff]
    %v2047 = vld [vmem:[%s2020 + $0xd0] sm:$0xff]
    %v2048 = vld [vmem:[%s2020 + $0xd8] sm:$0xff]
    %v2049 = vld [vmem:[%s2020 + $0xe0] sm:$0xff]
    %v2050 = vld [vmem:[%s2020 + $0xe8] sm:$0xff]
    %v2051 = vld [vmem:[%s2020 + $0xf0] sm:$0xff]
    %v2052 = vld [vmem:[%s2020 + $0xf8] sm:$0xff]
    %s2053 = scalar_lea.vmem %s6, 6
    %v2054 = vld [vmem:[%s2053] sm:$0x3]
    %v2055 = vpack.c.bf16 %v2006, %v2004
    %v2056 = vpack.c.bf16 %v2007, %v2005
    %v2057 = vpack.c.bf16 %v2010, %v2008
    %v2058 = vpack.c.bf16 %v2011, %v2009
    %v2059 = vpack.c.bf16 %v2014, %v2012
    %v2060 = vpack.c.bf16 %v2015, %v2013
    %v2061 = vpack.c.bf16 %v2018, %v2016
    %v2062 = vpack.c.bf16 %v2019, %v2017
    %v2064 = vperm.slane %v2054, 0
    %v2065 = vperm.slane %v2054, 1
    %v2100 = vunpack.c.l.b16 %v2021
    %v2101 = vunpack.c.h.b16 %v2021
    %v2102 = vunpack.c.l.b16 %v2022
    %v2103 = vunpack.c.h.b16 %v2022
    %v2104 = vunpack.c.l.b16 %v2023
    %v2105 = vunpack.c.h.b16 %v2023
    %v2106 = vunpack.c.l.b16 %v2024
    %v2107 = vunpack.c.h.b16 %v2024
    %v2108 = vunpack.c.l.b16 %v2025
    %v2109 = vunpack.c.h.b16 %v2025
    %v2110 = vunpack.c.l.b16 %v2026
    %v2111 = vunpack.c.h.b16 %v2026
    %v2112 = vunpack.c.l.b16 %v2027
    %v2113 = vunpack.c.h.b16 %v2027
    %v2114 = vunpack.c.l.b16 %v2028
    %v2115 = vunpack.c.h.b16 %v2028
    %v2116 = vunpack.c.l.b16 %v2029
    %v2117 = vunpack.c.h.b16 %v2029
    %v2118 = vunpack.c.l.b16 %v2030
    %v2119 = vunpack.c.h.b16 %v2030
    %v2120 = vunpack.c.l.b16 %v2031
    %v2121 = vunpack.c.h.b16 %v2031
    %v2122 = vunpack.c.l.b16 %v2032
    %v2123 = vunpack.c.h.b16 %v2032
    %v2124 = vunpack.c.l.b16 %v2033
    %v2125 = vunpack.c.h.b16 %v2033
    %v2126 = vunpack.c.l.b16 %v2034
    %v2127 = vunpack.c.h.b16 %v2034
    %v2128 = vunpack.c.l.b16 %v2035
    %v2129 = vunpack.c.h.b16 %v2035
    %v2130 = vunpack.c.l.b16 %v2036
    %v2131 = vunpack.c.h.b16 %v2036
    %v2132 = vunpack.c.l.b16 %v2037
    %v2133 = vunpack.c.h.b16 %v2037
    %v2134 = vunpack.c.l.b16 %v2038
    %v2135 = vunpack.c.h.b16 %v2038
    %v2136 = vunpack.c.l.b16 %v2039
    %v2137 = vunpack.c.h.b16 %v2039
    %v2138 = vunpack.c.l.b16 %v2040
    %v2139 = vunpack.c.h.b16 %v2040
    %v2140 = vunpack.c.l.b16 %v2041
    %v2141 = vunpack.c.h.b16 %v2041
    %v2142 = vunpack.c.l.b16 %v2042
    %v2143 = vunpack.c.h.b16 %v2042
    %v2144 = vunpack.c.l.b16 %v2043
    %v2145 = vunpack.c.h.b16 %v2043
    %v2146 = vunpack.c.l.b16 %v2044
    %v2147 = vunpack.c.h.b16 %v2044
    %v2148 = vunpack.c.l.b16 %v2045
    %v2149 = vunpack.c.h.b16 %v2045
    %v2150 = vunpack.c.l.b16 %v2046
    %v2151 = vunpack.c.h.b16 %v2046
    %v2152 = vunpack.c.l.b16 %v2047
    %v2153 = vunpack.c.h.b16 %v2047
    %v2154 = vunpack.c.l.b16 %v2048
    %v2155 = vunpack.c.h.b16 %v2048
    %v2156 = vunpack.c.l.b16 %v2049
    %v2157 = vunpack.c.h.b16 %v2049
    %v2158 = vunpack.c.l.b16 %v2050
    %v2159 = vunpack.c.h.b16 %v2050
    %v2160 = vunpack.c.l.b16 %v2051
    %v2161 = vunpack.c.h.b16 %v2051
    %v2162 = vunpack.c.l.b16 %v2052
    %v2163 = vunpack.c.h.b16 %v2052
    %v2164 = vpack.c.b16 %v2102, %v2100
    %v2165 = vpack.c.b16 %v2103, %v2101
    %v2166 = vpack.c.b16 %v2106, %v2104
    %v2167 = vpack.c.b16 %v2107, %v2105
    %v2168 = vpack.c.b16 %v2110, %v2108
    %v2169 = vpack.c.b16 %v2111, %v2109
    %v2170 = vpack.c.b16 %v2114, %v2112
    %v2171 = vpack.c.b16 %v2115, %v2113
    %v2172 = vpack.c.b16 %v2118, %v2116
    %v2173 = vpack.c.b16 %v2119, %v2117
    %v2174 = vpack.c.b16 %v2122, %v2120
    %v2175 = vpack.c.b16 %v2123, %v2121
    %v2176 = vpack.c.b16 %v2126, %v2124
    %v2177 = vpack.c.b16 %v2127, %v2125
    %v2178 = vpack.c.b16 %v2130, %v2128
    %v2179 = vpack.c.b16 %v2131, %v2129
    %v2180 = vpack.c.b16 %v2134, %v2132
    %v2181 = vpack.c.b16 %v2135, %v2133
    %v2182 = vpack.c.b16 %v2138, %v2136
    %v2183 = vpack.c.b16 %v2139, %v2137
    %v2184 = vpack.c.b16 %v2142, %v2140
    %v2185 = vpack.c.b16 %v2143, %v2141
    %v2186 = vpack.c.b16 %v2146, %v2144
    %v2187 = vpack.c.b16 %v2147, %v2145
    %v2188 = vpack.c.b16 %v2150, %v2148
    %v2189 = vpack.c.b16 %v2151, %v2149
    %v2190 = vpack.c.b16 %v2154, %v2152
    %v2191 = vpack.c.b16 %v2155, %v2153
    %v2192 = vpack.c.b16 %v2158, %v2156
    %v2193 = vpack.c.b16 %v2159, %v2157
    %v2194 = vpack.c.b16 %v2162, %v2160
    %v2195 = vpack.c.b16 %v2163, %v2161
    %2228 = vmatpush.bf16.msra.mxu0 %v2178
    %2229 = vmatpush.bf16.msra.mxu0 %v2176
    %2230 = vmatpush.bf16.msra.mxu0 %v2174
    %2231 = vmatpush.bf16.msra.mxu0 %v2172
    %2232 = vmatpush.bf16.msra.mxu0 %v2170
    %2233 = vmatpush.bf16.msra.mxu0 %v2168
    %2234 = vmatpush.bf16.msra.mxu0 %v2166
    %2235 = vmatpush.bf16.msra.mxu0 %v2164
    %2236 = vmatmul.bf16.gmra.mxu0 %v2055
    %v2237 = vpop.f32.mrf.mxu0
    %v2238 = vadd.f32 %v2064, %v2237
    %v2239 = vpop.f32.mrf.mxu0
    %v2240 = vadd.f32 %v2064, %v2239
    %2241 = vmatmul.bf16.gmra.mxu0 %v2057
    %v2242 = vpop.f32.mrf.mxu0
    %v2243 = vadd.f32 %v2064, %v2242
    %v2244 = vpop.f32.mrf.mxu0
    %v2245 = vadd.f32 %v2064, %v2244
    %2246 = vmatmul.bf16.gmra.mxu0 %v2059
    %v2247 = vpop.f32.mrf.mxu0
    %v2248 = vadd.f32 %v2064, %v2247
    %v2249 = vpop.f32.mrf.mxu0
    %v2250 = vadd.f32 %v2064, %v2249
    %2251 = vmatmul.bf16.gmra.mxu0 %v2061
    %v2252 = vpop.f32.mrf.mxu0
    %v2253 = vadd.f32 %v2064, %v2252
    %v2254 = vpop.f32.mrf.mxu0
    %v2255 = vadd.f32 %v2064, %v2254
    %2256 = vdwg.mxu0
    %2257 = vmatpush.bf16.msra.mxu0 %v2194
    %2258 = vmatpush.bf16.msra.mxu0 %v2192
    %2259 = vmatpush.bf16.msra.mxu0 %v2190
    %2260 = vmatpush.bf16.msra.mxu0 %v2188
    %2261 = vmatpush.bf16.msra.mxu0 %v2186
    %2262 = vmatpush.bf16.msra.mxu0 %v2184
    %2263 = vmatpush.bf16.msra.mxu0 %v2182
    %2264 = vmatpush.bf16.msra.mxu0 %v2180
    %2265 = vmatmul.bf16.gmra.mxu0 %v2056
    %v2266 = vpop.f32.mrf.mxu0
    %v2267 = vadd.f32 %v2238, %v2266
    %v2268 = vpop.f32.mrf.mxu0
    %v2269 = vadd.f32 %v2240, %v2268
    %2270 = vmatmul.bf16.gmra.mxu0 %v2058
    %v2271 = vpop.f32.mrf.mxu0
    %v2272 = vadd.f32 %v2243, %v2271
    %v2273 = vpop.f32.mrf.mxu0
    %v2274 = vadd.f32 %v2245, %v2273
    %2275 = vmatmul.bf16.gmra.mxu0 %v2060
    %v2276 = vpop.f32.mrf.mxu0
    %v2277 = vadd.f32 %v2248, %v2276
    %v2278 = vpop.f32.mrf.mxu0
    %v2279 = vadd.f32 %v2250, %v2278
    %2280 = vmatmul.bf16.gmra.mxu0 %v2062
    %v2281 = vpop.f32.mrf.mxu0
    %v2282 = vadd.f32 %v2253, %v2281
    %v2283 = vpop.f32.mrf.mxu0
    %v2284 = vadd.f32 %v2255, %v2283
    %2285 = vdwg.mxu0
    %2286 = vmatpush.bf16.msra.mxu0 %v2179
    %2287 = vmatpush.bf16.msra.mxu0 %v2177
    %2288 = vmatpush.bf16.msra.mxu0 %v2175
    %2289 = vmatpush.bf16.msra.mxu0 %v2173
    %2290 = vmatpush.bf16.msra.mxu0 %v2171
    %2291 = vmatpush.bf16.msra.mxu0 %v2169
    %2292 = vmatpush.bf16.msra.mxu0 %v2167
    %2293 = vmatpush.bf16.msra.mxu0 %v2165
    %2294 = vmatmul.bf16.gmra.mxu0 %v2055
    %v2295 = vpop.f32.mrf.mxu0
    %v2296 = vadd.f32 %v2065, %v2295
    %v2297 = vpop.f32.mrf.mxu0
    %v2298 = vadd.f32 %v2065, %v2297
    %2299 = vmatmul.bf16.gmra.mxu0 %v2057
    %v2300 = vpop.f32.mrf.mxu0
    %v2301 = vadd.f32 %v2065, %v2300
    %v2302 = vpop.f32.mrf.mxu0
    %v2303 = vadd.f32 %v2065, %v2302
    %2304 = vmatmul.bf16.gmra.mxu0 %v2059
    %v2305 = vpop.f32.mrf.mxu0
    %v2306 = vadd.f32 %v2065, %v2305
    %v2307 = vpop.f32.mrf.mxu0
    %v2308 = vadd.f32 %v2065, %v2307
    %2309 = vmatmul.bf16.gmra.mxu0 %v2061
    %v2310 = vpop.f32.mrf.mxu0
    %v2311 = vadd.f32 %v2065, %v2310
    %v2312 = vpop.f32.mrf.mxu0
    %v2313 = vadd.f32 %v2065, %v2312
    %2314 = vdwg.mxu0
    %2315 = vmatpush.bf16.msra.mxu0 %v2195
    %2316 = vmatpush.bf16.msra.mxu0 %v2193
    %2317 = vmatpush.bf16.msra.mxu0 %v2191
    %2318 = vmatpush.bf16.msra.mxu0 %v2189
    %2319 = vmatpush.bf16.msra.mxu0 %v2187
    %2320 = vmatpush.bf16.msra.mxu0 %v2185
    %2321 = vmatpush.bf16.msra.mxu0 %v2183
    %2322 = vmatpush.bf16.msra.mxu0 %v2181
    %2323 = vmatmul.bf16.gmra.mxu0 %v2056
    %v2324 = vpop.f32.mrf.mxu0
    %v2325 = vadd.f32 %v2296, %v2324
    %v2326 = vpop.f32.mrf.mxu0
    %v2327 = vadd.f32 %v2298, %v2326
    %2328 = vmatmul.bf16.gmra.mxu0 %v2058
    %v2329 = vpop.f32.mrf.mxu0
    %v2330 = vadd.f32 %v2301, %v2329
    %v2331 = vpop.f32.mrf.mxu0
    %v2332 = vadd.f32 %v2303, %v2331
    %2333 = vmatmul.bf16.gmra.mxu0 %v2060
    %v2334 = vpop.f32.mrf.mxu0
    %v2335 = vadd.f32 %v2306, %v2334
    %v2336 = vpop.f32.mrf.mxu0
    %v2337 = vadd.f32 %v2308, %v2336
    %2338 = vmatmul.bf16.gmra.mxu0 %v2062
    %v2339 = vpop.f32.mrf.mxu0
    %v2340 = vadd.f32 %v2311, %v2339
    %v2341 = vpop.f32.mrf.mxu0
    %v2342 = vadd.f32 %v2313, %v2341
    %2343 = vdwg.mxu0
    %s2344 = scalar_lea.vmem %s7, 6
    %v2345 = vld [vmem:[%s2344] sm:$0x3]
    %s2346 = scalar_lea.vmem %s8, 6
    %v2347 = vld [vmem:[%s2346] sm:$0x3]
    %v2348 = vadd.f32 %v2267, %v2269
    %v2349 = vadd.f32 %v2348, %v2272
    %v2350 = vadd.f32 %v2349, %v2274
    %v2351 = vadd.f32 %v2350, %v2277
    %v2352 = vadd.f32 %v2351, %v2279
    %v2353 = vadd.f32 %v2352, %v2282
    %v2354 = vadd.f32 %v2353, %v2284
    %v2355 = vrot.slane %v2354, 4
    %v2356 = vadd.f32 %v2354, %v2355
    %v2357 = vrot.slane %v2356, 2
    %v2358 = vadd.f32 %v2356, %v2357
    %v2359 = vrot.slane %v2358, 1
    %v2360 = vadd.f32 %v2358, %v2359
    %v2361 = vadd.f32 %v2325, %v2327
    %v2362 = vadd.f32 %v2361, %v2330
    %v2363 = vadd.f32 %v2362, %v2332
    %v2364 = vadd.f32 %v2363, %v2335
    %v2365 = vadd.f32 %v2364, %v2337
    %v2366 = vadd.f32 %v2365, %v2340
    %v2367 = vadd.f32 %v2366, %v2342
    %v2368 = vrot.slane %v2367, 4
    %v2369 = vadd.f32 %v2367, %v2368
    %v2370 = vrot.slane %v2369, 2
    %v2371 = vadd.f32 %v2369, %v2370
    %v2372 = vrot.slane %v2371, 1
    %v2373 = vadd.f32 %v2371, %v2372
    %v2374 = vmul.f32 %v2360, %v281
    %v2375 = vmul.f32 %v2373, %v281
    %v2376 = vsub.f32 %v2267, %v2374
    %v2377 = vsub.f32 %v2325, %v2375
    %v2378 = vsub.f32 %v2269, %v2374
    %v2379 = vsub.f32 %v2327, %v2375
    %v2380 = vsub.f32 %v2272, %v2374
    %v2381 = vsub.f32 %v2330, %v2375
    %v2382 = vsub.f32 %v2274, %v2374
    %v2383 = vsub.f32 %v2332, %v2375
    %v2384 = vsub.f32 %v2277, %v2374
    %v2385 = vsub.f32 %v2335, %v2375
    %v2386 = vsub.f32 %v2279, %v2374
    %v2387 = vsub.f32 %v2337, %v2375
    %v2388 = vsub.f32 %v2282, %v2374
    %v2389 = vsub.f32 %v2340, %v2375
    %v2390 = vsub.f32 %v2284, %v2374
    %v2391 = vsub.f32 %v2342, %v2375
    %v2392 = vmul.f32 %v2376, %v2376
    %v2393 = vmul.f32 %v2377, %v2377
    %v2394 = vmul.f32 %v2378, %v2378
    %v2395 = vmul.f32 %v2379, %v2379
    %v2396 = vmul.f32 %v2380, %v2380
    %v2397 = vmul.f32 %v2381, %v2381
    %v2398 = vmul.f32 %v2382, %v2382
    %v2399 = vmul.f32 %v2383, %v2383
    %v2400 = vmul.f32 %v2384, %v2384
    %v2401 = vmul.f32 %v2385, %v2385
    %v2402 = vmul.f32 %v2386, %v2386
    %v2403 = vmul.f32 %v2387, %v2387
    %v2404 = vmul.f32 %v2388, %v2388
    %v2405 = vmul.f32 %v2389, %v2389
    %v2406 = vmul.f32 %v2390, %v2390
    %v2407 = vmul.f32 %v2391, %v2391
    %v2408 = vadd.f32 %v2392, %v2394
    %v2409 = vadd.f32 %v2408, %v2396
    %v2410 = vadd.f32 %v2409, %v2398
    %v2411 = vadd.f32 %v2410, %v2400
    %v2412 = vadd.f32 %v2411, %v2402
    %v2413 = vadd.f32 %v2412, %v2404
    %v2414 = vadd.f32 %v2413, %v2406
    %v2415 = vrot.slane %v2414, 4
    %v2416 = vadd.f32 %v2414, %v2415
    %v2417 = vrot.slane %v2416, 2
    %v2418 = vadd.f32 %v2416, %v2417
    %v2419 = vrot.slane %v2418, 1
    %v2420 = vadd.f32 %v2418, %v2419
    %v2421 = vadd.f32 %v2393, %v2395
    %v2422 = vadd.f32 %v2421, %v2397
    %v2423 = vadd.f32 %v2422, %v2399
    %v2424 = vadd.f32 %v2423, %v2401
    %v2425 = vadd.f32 %v2424, %v2403
    %v2426 = vadd.f32 %v2425, %v2405
    %v2427 = vadd.f32 %v2426, %v2407
    %v2428 = vrot.slane %v2427, 4
    %v2429 = vadd.f32 %v2427, %v2428
    %v2430 = vrot.slane %v2429, 2
    %v2431 = vadd.f32 %v2429, %v2430
    %v2432 = vrot.slane %v2431, 1
    %v2433 = vadd.f32 %v2431, %v2432
    %v2434 = vmul.f32 %v2420, %v281
    %v2435 = vmul.f32 %v2433, %v281
    %v2436 = vadd.f32 %v2434, 1e-05
    %v2437 = vadd.f32 %v2435, 1e-05
    %v2438 = vrsqrt.pop %v2436
    %v2439 = vmul.f32 %v2438, %v2436
    %v2440 = vmul.f32 %v2439, %v2438
    %v2441 = vmul.f32 0.5, %v2440
    %v2442 = vsub.f32 1.5, %v2441
    %v2443 = vmul.f32 %v2438, %v2442
    %vm2444 = vweird.f32 %v2436
    %vm2445 = vweird.f32 %v2438
    %vm2446 = vmor %vm2444, %vm2445
    %v2447 = vsel %vm2446, %v2438, %v2443
    %v2448 = vrsqrt.pop %v2437
    %v2449 = vmul.f32 %v2448, %v2437
    %v2450 = vmul.f32 %v2449, %v2448
    %v2451 = vmul.f32 0.5, %v2450
    %v2452 = vsub.f32 1.5, %v2451
    %v2453 = vmul.f32 %v2448, %v2452
    %vm2454 = vweird.f32 %v2437
    %vm2455 = vweird.f32 %v2448
    %vm2456 = vmor %vm2454, %vm2455
    %v2457 = vsel %vm2456, %v2448, %v2453
    %v2458 = vmul.f32 %v2376, %v2447
    %v2459 = vmul.f32 %v2377, %v2457
    %v2460 = vmul.f32 %v2378, %v2447
    %v2461 = vmul.f32 %v2379, %v2457
    %v2462 = vmul.f32 %v2380, %v2447
    %v2463 = vmul.f32 %v2381, %v2457
    %v2464 = vmul.f32 %v2382, %v2447
    %v2465 = vmul.f32 %v2383, %v2457
    %v2466 = vmul.f32 %v2384, %v2447
    %v2467 = vmul.f32 %v2385, %v2457
    %v2468 = vmul.f32 %v2386, %v2447
    %v2469 = vmul.f32 %v2387, %v2457
    %v2470 = vmul.f32 %v2388, %v2447
    %v2471 = vmul.f32 %v2389, %v2457
    %v2472 = vmul.f32 %v2390, %v2447
    %v2473 = vmul.f32 %v2391, %v2457
    %v2475 = vperm.slane %v2345, 0
    %v2476 = vperm.slane %v2345, 1
    %v2479 = vmul.f32 %v2458, %v2475
    %v2480 = vmul.f32 %v2459, %v2476
    %v2481 = vmul.f32 %v2460, %v2475
    %v2482 = vmul.f32 %v2461, %v2476
    %v2483 = vmul.f32 %v2462, %v2475
    %v2484 = vmul.f32 %v2463, %v2476
    %v2485 = vmul.f32 %v2464, %v2475
    %v2486 = vmul.f32 %v2465, %v2476
    %v2487 = vmul.f32 %v2466, %v2475
    %v2488 = vmul.f32 %v2467, %v2476
    %v2489 = vmul.f32 %v2468, %v2475
    %v2490 = vmul.f32 %v2469, %v2476
    %v2491 = vmul.f32 %v2470, %v2475
    %v2492 = vmul.f32 %v2471, %v2476
    %v2493 = vmul.f32 %v2472, %v2475
    %v2494 = vmul.f32 %v2473, %v2476
    %v2496 = vperm.slane %v2347, 0
    %v2497 = vperm.slane %v2347, 1
    %v2500 = vadd.f32 %v2479, %v2496
    %v2501 = vadd.f32 %v2480, %v2497
    %v2502 = vadd.f32 %v2481, %v2496
    %v2503 = vadd.f32 %v2482, %v2497
    %v2504 = vadd.f32 %v2483, %v2496
    %v2505 = vadd.f32 %v2484, %v2497
    %v2506 = vadd.f32 %v2485, %v2496
    %v2507 = vadd.f32 %v2486, %v2497
    %v2508 = vadd.f32 %v2487, %v2496
    %v2509 = vadd.f32 %v2488, %v2497
    %v2510 = vadd.f32 %v2489, %v2496
    %v2511 = vadd.f32 %v2490, %v2497
    %v2512 = vadd.f32 %v2491, %v2496
    %v2513 = vadd.f32 %v2492, %v2497
    %v2514 = vadd.f32 %v2493, %v2496
    %v2515 = vadd.f32 %v2494, %v2497
    %v2516 = vadd.f32 %v2500, %v2004
    %v2517 = vadd.f32 %v2501, %v2005
    %v2518 = vadd.f32 %v2502, %v2006
    %v2519 = vadd.f32 %v2503, %v2007
    %v2520 = vadd.f32 %v2504, %v2008
    %v2521 = vadd.f32 %v2505, %v2009
    %v2522 = vadd.f32 %v2506, %v2010
    %v2523 = vadd.f32 %v2507, %v2011
    %v2524 = vadd.f32 %v2508, %v2012
    %v2525 = vadd.f32 %v2509, %v2013
    %v2526 = vadd.f32 %v2510, %v2014
    %v2527 = vadd.f32 %v2511, %v2015
    %v2528 = vadd.f32 %v2512, %v2016
    %v2529 = vadd.f32 %v2513, %v2017
    %v2530 = vadd.f32 %v2514, %v2018
    %v2531 = vadd.f32 %v2515, %v2019
    %v2532 = vmax.f32 %v2516, 0.0
    %v2533 = vmax.f32 %v2517, 0.0
    %v2534 = vmax.f32 %v2518, 0.0
    %v2535 = vmax.f32 %v2519, 0.0
    %v2536 = vmax.f32 %v2520, 0.0
    %v2537 = vmax.f32 %v2521, 0.0
    %v2538 = vmax.f32 %v2522, 0.0
    %v2539 = vmax.f32 %v2523, 0.0
    %v2540 = vmax.f32 %v2524, 0.0
    %v2541 = vmax.f32 %v2525, 0.0
    %v2542 = vmax.f32 %v2526, 0.0
    %v2543 = vmax.f32 %v2527, 0.0
    %v2544 = vmax.f32 %v2528, 0.0
    %v2545 = vmax.f32 %v2529, 0.0
    %v2546 = vmax.f32 %v2530, 0.0
    %v2547 = vmax.f32 %v2531, 0.0
    %s2548 = scalar_lea.vmem [#allocation5], 1024
    %v2549 = vld [vmem:[%s2548] sm:$0xff]
    %v2550 = vld [vmem:[%s2548 + $0x8] sm:$0xff]
    %v2551 = vld [vmem:[%s2548 + $0x10] sm:$0xff]
    %v2552 = vld [vmem:[%s2548 + $0x18] sm:$0xff]
    %v2553 = vld [vmem:[%s2548 + $0x20] sm:$0xff]
    %v2554 = vld [vmem:[%s2548 + $0x28] sm:$0xff]
    %v2555 = vld [vmem:[%s2548 + $0x30] sm:$0xff]
    %v2556 = vld [vmem:[%s2548 + $0x38] sm:$0xff]
    %v2557 = vld [vmem:[%s2548 + $0x40] sm:$0xff]
    %v2558 = vld [vmem:[%s2548 + $0x48] sm:$0xff]
    %v2559 = vld [vmem:[%s2548 + $0x50] sm:$0xff]
    %v2560 = vld [vmem:[%s2548 + $0x58] sm:$0xff]
    %v2561 = vld [vmem:[%s2548 + $0x60] sm:$0xff]
    %v2562 = vld [vmem:[%s2548 + $0x68] sm:$0xff]
    %v2563 = vld [vmem:[%s2548 + $0x70] sm:$0xff]
    %v2564 = vld [vmem:[%s2548 + $0x78] sm:$0xff]
    %v2565 = vld [vmem:[%s2548 + $0x80] sm:$0xff]
    %v2566 = vld [vmem:[%s2548 + $0x88] sm:$0xff]
    %v2567 = vld [vmem:[%s2548 + $0x90] sm:$0xff]
    %v2568 = vld [vmem:[%s2548 + $0x98] sm:$0xff]
    %v2569 = vld [vmem:[%s2548 + $0xa0] sm:$0xff]
    %v2570 = vld [vmem:[%s2548 + $0xa8] sm:$0xff]
    %v2571 = vld [vmem:[%s2548 + $0xb0] sm:$0xff]
    %v2572 = vld [vmem:[%s2548 + $0xb8] sm:$0xff]
    %v2573 = vld [vmem:[%s2548 + $0xc0] sm:$0xff]
    %v2574 = vld [vmem:[%s2548 + $0xc8] sm:$0xff]
    %v2575 = vld [vmem:[%s2548 + $0xd0] sm:$0xff]
    %v2576 = vld [vmem:[%s2548 + $0xd8] sm:$0xff]
    %v2577 = vld [vmem:[%s2548 + $0xe0] sm:$0xff]
    %v2578 = vld [vmem:[%s2548 + $0xe8] sm:$0xff]
    %v2579 = vld [vmem:[%s2548 + $0xf0] sm:$0xff]
    %v2580 = vld [vmem:[%s2548 + $0xf8] sm:$0xff]
    %s2581 = scalar_lea.vmem %s6, 8
    %v2582 = vld [vmem:[%s2581] sm:$0x3]
    %v2583 = vpack.c.bf16 %v2534, %v2532
    %v2584 = vpack.c.bf16 %v2535, %v2533
    %v2585 = vpack.c.bf16 %v2538, %v2536
    %v2586 = vpack.c.bf16 %v2539, %v2537
    %v2587 = vpack.c.bf16 %v2542, %v2540
    %v2588 = vpack.c.bf16 %v2543, %v2541
    %v2589 = vpack.c.bf16 %v2546, %v2544
    %v2590 = vpack.c.bf16 %v2547, %v2545
    %v2592 = vperm.slane %v2582, 0
    %v2593 = vperm.slane %v2582, 1
    %v2628 = vunpack.c.l.b16 %v2549
    %v2629 = vunpack.c.h.b16 %v2549
    %v2630 = vunpack.c.l.b16 %v2550
    %v2631 = vunpack.c.h.b16 %v2550
    %v2632 = vunpack.c.l.b16 %v2551
    %v2633 = vunpack.c.h.b16 %v2551
    %v2634 = vunpack.c.l.b16 %v2552
    %v2635 = vunpack.c.h.b16 %v2552
    %v2636 = vunpack.c.l.b16 %v2553
    %v2637 = vunpack.c.h.b16 %v2553
    %v2638 = vunpack.c.l.b16 %v2554
    %v2639 = vunpack.c.h.b16 %v2554
    %v2640 = vunpack.c.l.b16 %v2555
    %v2641 = vunpack.c.h.b16 %v2555
    %v2642 = vunpack.c.l.b16 %v2556
    %v2643 = vunpack.c.h.b16 %v2556
    %v2644 = vunpack.c.l.b16 %v2557
    %v2645 = vunpack.c.h.b16 %v2557
    %v2646 = vunpack.c.l.b16 %v2558
    %v2647 = vunpack.c.h.b16 %v2558
    %v2648 = vunpack.c.l.b16 %v2559
    %v2649 = vunpack.c.h.b16 %v2559
    %v2650 = vunpack.c.l.b16 %v2560
    %v2651 = vunpack.c.h.b16 %v2560
    %v2652 = vunpack.c.l.b16 %v2561
    %v2653 = vunpack.c.h.b16 %v2561
    %v2654 = vunpack.c.l.b16 %v2562
    %v2655 = vunpack.c.h.b16 %v2562
    %v2656 = vunpack.c.l.b16 %v2563
    %v2657 = vunpack.c.h.b16 %v2563
    %v2658 = vunpack.c.l.b16 %v2564
    %v2659 = vunpack.c.h.b16 %v2564
    %v2660 = vunpack.c.l.b16 %v2565
    %v2661 = vunpack.c.h.b16 %v2565
    %v2662 = vunpack.c.l.b16 %v2566
    %v2663 = vunpack.c.h.b16 %v2566
    %v2664 = vunpack.c.l.b16 %v2567
    %v2665 = vunpack.c.h.b16 %v2567
    %v2666 = vunpack.c.l.b16 %v2568
    %v2667 = vunpack.c.h.b16 %v2568
    %v2668 = vunpack.c.l.b16 %v2569
    %v2669 = vunpack.c.h.b16 %v2569
    %v2670 = vunpack.c.l.b16 %v2570
    %v2671 = vunpack.c.h.b16 %v2570
    %v2672 = vunpack.c.l.b16 %v2571
    %v2673 = vunpack.c.h.b16 %v2571
    %v2674 = vunpack.c.l.b16 %v2572
    %v2675 = vunpack.c.h.b16 %v2572
    %v2676 = vunpack.c.l.b16 %v2573
    %v2677 = vunpack.c.h.b16 %v2573
    %v2678 = vunpack.c.l.b16 %v2574
    %v2679 = vunpack.c.h.b16 %v2574
    %v2680 = vunpack.c.l.b16 %v2575
    %v2681 = vunpack.c.h.b16 %v2575
    %v2682 = vunpack.c.l.b16 %v2576
    %v2683 = vunpack.c.h.b16 %v2576
    %v2684 = vunpack.c.l.b16 %v2577
    %v2685 = vunpack.c.h.b16 %v2577
    %v2686 = vunpack.c.l.b16 %v2578
    %v2687 = vunpack.c.h.b16 %v2578
    %v2688 = vunpack.c.l.b16 %v2579
    %v2689 = vunpack.c.h.b16 %v2579
    %v2690 = vunpack.c.l.b16 %v2580
    %v2691 = vunpack.c.h.b16 %v2580
    %v2692 = vpack.c.b16 %v2630, %v2628
    %v2693 = vpack.c.b16 %v2631, %v2629
    %v2694 = vpack.c.b16 %v2634, %v2632
    %v2695 = vpack.c.b16 %v2635, %v2633
    %v2696 = vpack.c.b16 %v2638, %v2636
    %v2697 = vpack.c.b16 %v2639, %v2637
    %v2698 = vpack.c.b16 %v2642, %v2640
    %v2699 = vpack.c.b16 %v2643, %v2641
    %v2700 = vpack.c.b16 %v2646, %v2644
    %v2701 = vpack.c.b16 %v2647, %v2645
    %v2702 = vpack.c.b16 %v2650, %v2648
    %v2703 = vpack.c.b16 %v2651, %v2649
    %v2704 = vpack.c.b16 %v2654, %v2652
    %v2705 = vpack.c.b16 %v2655, %v2653
    %v2706 = vpack.c.b16 %v2658, %v2656
    %v2707 = vpack.c.b16 %v2659, %v2657
    %v2708 = vpack.c.b16 %v2662, %v2660
    %v2709 = vpack.c.b16 %v2663, %v2661
    %v2710 = vpack.c.b16 %v2666, %v2664
    %v2711 = vpack.c.b16 %v2667, %v2665
    %v2712 = vpack.c.b16 %v2670, %v2668
    %v2713 = vpack.c.b16 %v2671, %v2669
    %v2714 = vpack.c.b16 %v2674, %v2672
    %v2715 = vpack.c.b16 %v2675, %v2673
    %v2716 = vpack.c.b16 %v2678, %v2676
    %v2717 = vpack.c.b16 %v2679, %v2677
    %v2718 = vpack.c.b16 %v2682, %v2680
    %v2719 = vpack.c.b16 %v2683, %v2681
    %v2720 = vpack.c.b16 %v2686, %v2684
    %v2721 = vpack.c.b16 %v2687, %v2685
    %v2722 = vpack.c.b16 %v2690, %v2688
    %v2723 = vpack.c.b16 %v2691, %v2689
    %2756 = vmatpush.bf16.msra.mxu0 %v2706
    %2757 = vmatpush.bf16.msra.mxu0 %v2704
    %2758 = vmatpush.bf16.msra.mxu0 %v2702
    %2759 = vmatpush.bf16.msra.mxu0 %v2700
    %2760 = vmatpush.bf16.msra.mxu0 %v2698
    %2761 = vmatpush.bf16.msra.mxu0 %v2696
    %2762 = vmatpush.bf16.msra.mxu0 %v2694
    %2763 = vmatpush.bf16.msra.mxu0 %v2692
    %2764 = vmatmul.bf16.gmra.mxu0 %v2583
    %v2765 = vpop.f32.mrf.mxu0
    %v2766 = vadd.f32 %v2592, %v2765
    %v2767 = vpop.f32.mrf.mxu0
    %v2768 = vadd.f32 %v2592, %v2767
    %2769 = vmatmul.bf16.gmra.mxu0 %v2585
    %v2770 = vpop.f32.mrf.mxu0
    %v2771 = vadd.f32 %v2592, %v2770
    %v2772 = vpop.f32.mrf.mxu0
    %v2773 = vadd.f32 %v2592, %v2772
    %2774 = vmatmul.bf16.gmra.mxu0 %v2587
    %v2775 = vpop.f32.mrf.mxu0
    %v2776 = vadd.f32 %v2592, %v2775
    %v2777 = vpop.f32.mrf.mxu0
    %v2778 = vadd.f32 %v2592, %v2777
    %2779 = vmatmul.bf16.gmra.mxu0 %v2589
    %v2780 = vpop.f32.mrf.mxu0
    %v2781 = vadd.f32 %v2592, %v2780
    %v2782 = vpop.f32.mrf.mxu0
    %v2783 = vadd.f32 %v2592, %v2782
    %2784 = vdwg.mxu0
    %2785 = vmatpush.bf16.msra.mxu0 %v2722
    %2786 = vmatpush.bf16.msra.mxu0 %v2720
    %2787 = vmatpush.bf16.msra.mxu0 %v2718
    %2788 = vmatpush.bf16.msra.mxu0 %v2716
    %2789 = vmatpush.bf16.msra.mxu0 %v2714
    %2790 = vmatpush.bf16.msra.mxu0 %v2712
    %2791 = vmatpush.bf16.msra.mxu0 %v2710
    %2792 = vmatpush.bf16.msra.mxu0 %v2708
    %2793 = vmatmul.bf16.gmra.mxu0 %v2584
    %v2794 = vpop.f32.mrf.mxu0
    %v2795 = vadd.f32 %v2766, %v2794
    %v2796 = vpop.f32.mrf.mxu0
    %v2797 = vadd.f32 %v2768, %v2796
    %2798 = vmatmul.bf16.gmra.mxu0 %v2586
    %v2799 = vpop.f32.mrf.mxu0
    %v2800 = vadd.f32 %v2771, %v2799
    %v2801 = vpop.f32.mrf.mxu0
    %v2802 = vadd.f32 %v2773, %v2801
    %2803 = vmatmul.bf16.gmra.mxu0 %v2588
    %v2804 = vpop.f32.mrf.mxu0
    %v2805 = vadd.f32 %v2776, %v2804
    %v2806 = vpop.f32.mrf.mxu0
    %v2807 = vadd.f32 %v2778, %v2806
    %2808 = vmatmul.bf16.gmra.mxu0 %v2590
    %v2809 = vpop.f32.mrf.mxu0
    %v2810 = vadd.f32 %v2781, %v2809
    %v2811 = vpop.f32.mrf.mxu0
    %v2812 = vadd.f32 %v2783, %v2811
    %2813 = vdwg.mxu0
    %2814 = vmatpush.bf16.msra.mxu0 %v2707
    %2815 = vmatpush.bf16.msra.mxu0 %v2705
    %2816 = vmatpush.bf16.msra.mxu0 %v2703
    %2817 = vmatpush.bf16.msra.mxu0 %v2701
    %2818 = vmatpush.bf16.msra.mxu0 %v2699
    %2819 = vmatpush.bf16.msra.mxu0 %v2697
    %2820 = vmatpush.bf16.msra.mxu0 %v2695
    %2821 = vmatpush.bf16.msra.mxu0 %v2693
    %2822 = vmatmul.bf16.gmra.mxu0 %v2583
    %v2823 = vpop.f32.mrf.mxu0
    %v2824 = vadd.f32 %v2593, %v2823
    %v2825 = vpop.f32.mrf.mxu0
    %v2826 = vadd.f32 %v2593, %v2825
    %2827 = vmatmul.bf16.gmra.mxu0 %v2585
    %v2828 = vpop.f32.mrf.mxu0
    %v2829 = vadd.f32 %v2593, %v2828
    %v2830 = vpop.f32.mrf.mxu0
    %v2831 = vadd.f32 %v2593, %v2830
    %2832 = vmatmul.bf16.gmra.mxu0 %v2587
    %v2833 = vpop.f32.mrf.mxu0
    %v2834 = vadd.f32 %v2593, %v2833
    %v2835 = vpop.f32.mrf.mxu0
    %v2836 = vadd.f32 %v2593, %v2835
    %2837 = vmatmul.bf16.gmra.mxu0 %v2589
    %v2838 = vpop.f32.mrf.mxu0
    %v2839 = vadd.f32 %v2593, %v2838
    %v2840 = vpop.f32.mrf.mxu0
    %v2841 = vadd.f32 %v2593, %v2840
    %2842 = vdwg.mxu0
    %2843 = vmatpush.bf16.msra.mxu0 %v2723
    %2844 = vmatpush.bf16.msra.mxu0 %v2721
    %2845 = vmatpush.bf16.msra.mxu0 %v2719
    %2846 = vmatpush.bf16.msra.mxu0 %v2717
    %2847 = vmatpush.bf16.msra.mxu0 %v2715
    %2848 = vmatpush.bf16.msra.mxu0 %v2713
    %2849 = vmatpush.bf16.msra.mxu0 %v2711
    %2850 = vmatpush.bf16.msra.mxu0 %v2709
    %2851 = vmatmul.bf16.gmra.mxu0 %v2584
    %v2852 = vpop.f32.mrf.mxu0
    %v2853 = vadd.f32 %v2824, %v2852
    %v2854 = vpop.f32.mrf.mxu0
    %v2855 = vadd.f32 %v2826, %v2854
    %2856 = vmatmul.bf16.gmra.mxu0 %v2586
    %v2857 = vpop.f32.mrf.mxu0
    %v2858 = vadd.f32 %v2829, %v2857
    %v2859 = vpop.f32.mrf.mxu0
    %v2860 = vadd.f32 %v2831, %v2859
    %2861 = vmatmul.bf16.gmra.mxu0 %v2588
    %v2862 = vpop.f32.mrf.mxu0
    %v2863 = vadd.f32 %v2834, %v2862
    %v2864 = vpop.f32.mrf.mxu0
    %v2865 = vadd.f32 %v2836, %v2864
    %2866 = vmatmul.bf16.gmra.mxu0 %v2590
    %v2867 = vpop.f32.mrf.mxu0
    %v2868 = vadd.f32 %v2839, %v2867
    %v2869 = vpop.f32.mrf.mxu0
    %v2870 = vadd.f32 %v2841, %v2869
    %2871 = vdwg.mxu0
    %s2872 = scalar_lea.vmem %s7, 8
    %v2873 = vld [vmem:[%s2872] sm:$0x3]
    %s2874 = scalar_lea.vmem %s8, 8
    %v2875 = vld [vmem:[%s2874] sm:$0x3]
    %v2876 = vadd.f32 %v2795, %v2797
    %v2877 = vadd.f32 %v2876, %v2800
    %v2878 = vadd.f32 %v2877, %v2802
    %v2879 = vadd.f32 %v2878, %v2805
    %v2880 = vadd.f32 %v2879, %v2807
    %v2881 = vadd.f32 %v2880, %v2810
    %v2882 = vadd.f32 %v2881, %v2812
    %v2883 = vrot.slane %v2882, 4
    %v2884 = vadd.f32 %v2882, %v2883
    %v2885 = vrot.slane %v2884, 2
    %v2886 = vadd.f32 %v2884, %v2885
    %v2887 = vrot.slane %v2886, 1
    %v2888 = vadd.f32 %v2886, %v2887
    %v2889 = vadd.f32 %v2853, %v2855
    %v2890 = vadd.f32 %v2889, %v2858
    %v2891 = vadd.f32 %v2890, %v2860
    %v2892 = vadd.f32 %v2891, %v2863
    %v2893 = vadd.f32 %v2892, %v2865
    %v2894 = vadd.f32 %v2893, %v2868
    %v2895 = vadd.f32 %v2894, %v2870
    %v2896 = vrot.slane %v2895, 4
    %v2897 = vadd.f32 %v2895, %v2896
    %v2898 = vrot.slane %v2897, 2
    %v2899 = vadd.f32 %v2897, %v2898
    %v2900 = vrot.slane %v2899, 1
    %v2901 = vadd.f32 %v2899, %v2900
    %v2902 = vmul.f32 %v2888, %v281
    %v2903 = vmul.f32 %v2901, %v281
    %v2904 = vsub.f32 %v2795, %v2902
    %v2905 = vsub.f32 %v2853, %v2903
    %v2906 = vsub.f32 %v2797, %v2902
    %v2907 = vsub.f32 %v2855, %v2903
    %v2908 = vsub.f32 %v2800, %v2902
    %v2909 = vsub.f32 %v2858, %v2903
    %v2910 = vsub.f32 %v2802, %v2902
    %v2911 = vsub.f32 %v2860, %v2903
    %v2912 = vsub.f32 %v2805, %v2902
    %v2913 = vsub.f32 %v2863, %v2903
    %v2914 = vsub.f32 %v2807, %v2902
    %v2915 = vsub.f32 %v2865, %v2903
    %v2916 = vsub.f32 %v2810, %v2902
    %v2917 = vsub.f32 %v2868, %v2903
    %v2918 = vsub.f32 %v2812, %v2902
    %v2919 = vsub.f32 %v2870, %v2903
    %v2920 = vmul.f32 %v2904, %v2904
    %v2921 = vmul.f32 %v2905, %v2905
    %v2922 = vmul.f32 %v2906, %v2906
    %v2923 = vmul.f32 %v2907, %v2907
    %v2924 = vmul.f32 %v2908, %v2908
    %v2925 = vmul.f32 %v2909, %v2909
    %v2926 = vmul.f32 %v2910, %v2910
    %v2927 = vmul.f32 %v2911, %v2911
    %v2928 = vmul.f32 %v2912, %v2912
    %v2929 = vmul.f32 %v2913, %v2913
    %v2930 = vmul.f32 %v2914, %v2914
    %v2931 = vmul.f32 %v2915, %v2915
    %v2932 = vmul.f32 %v2916, %v2916
    %v2933 = vmul.f32 %v2917, %v2917
    %v2934 = vmul.f32 %v2918, %v2918
    %v2935 = vmul.f32 %v2919, %v2919
    %v2936 = vadd.f32 %v2920, %v2922
    %v2937 = vadd.f32 %v2936, %v2924
    %v2938 = vadd.f32 %v2937, %v2926
    %v2939 = vadd.f32 %v2938, %v2928
    %v2940 = vadd.f32 %v2939, %v2930
    %v2941 = vadd.f32 %v2940, %v2932
    %v2942 = vadd.f32 %v2941, %v2934
    %v2943 = vrot.slane %v2942, 4
    %v2944 = vadd.f32 %v2942, %v2943
    %v2945 = vrot.slane %v2944, 2
    %v2946 = vadd.f32 %v2944, %v2945
    %v2947 = vrot.slane %v2946, 1
    %v2948 = vadd.f32 %v2946, %v2947
    %v2949 = vadd.f32 %v2921, %v2923
    %v2950 = vadd.f32 %v2949, %v2925
    %v2951 = vadd.f32 %v2950, %v2927
    %v2952 = vadd.f32 %v2951, %v2929
    %v2953 = vadd.f32 %v2952, %v2931
    %v2954 = vadd.f32 %v2953, %v2933
    %v2955 = vadd.f32 %v2954, %v2935
    %v2956 = vrot.slane %v2955, 4
    %v2957 = vadd.f32 %v2955, %v2956
    %v2958 = vrot.slane %v2957, 2
    %v2959 = vadd.f32 %v2957, %v2958
    %v2960 = vrot.slane %v2959, 1
    %v2961 = vadd.f32 %v2959, %v2960
    %v2962 = vmul.f32 %v2948, %v281
    %v2963 = vmul.f32 %v2961, %v281
    %v2964 = vadd.f32 %v2962, 1e-05
    %v2965 = vadd.f32 %v2963, 1e-05
    %v2966 = vrsqrt.pop %v2964
    %v2967 = vmul.f32 %v2966, %v2964
    %v2968 = vmul.f32 %v2967, %v2966
    %v2969 = vmul.f32 0.5, %v2968
    %v2970 = vsub.f32 1.5, %v2969
    %v2971 = vmul.f32 %v2966, %v2970
    %vm2972 = vweird.f32 %v2964
    %vm2973 = vweird.f32 %v2966
    %vm2974 = vmor %vm2972, %vm2973
    %v2975 = vsel %vm2974, %v2966, %v2971
    %v2976 = vrsqrt.pop %v2965
    %v2977 = vmul.f32 %v2976, %v2965
    %v2978 = vmul.f32 %v2977, %v2976
    %v2979 = vmul.f32 0.5, %v2978
    %v2980 = vsub.f32 1.5, %v2979
    %v2981 = vmul.f32 %v2976, %v2980
    %vm2982 = vweird.f32 %v2965
    %vm2983 = vweird.f32 %v2976
    %vm2984 = vmor %vm2982, %vm2983
    %v2985 = vsel %vm2984, %v2976, %v2981
    %v2986 = vmul.f32 %v2904, %v2975
    %v2987 = vmul.f32 %v2905, %v2985
    %v2988 = vmul.f32 %v2906, %v2975
    %v2989 = vmul.f32 %v2907, %v2985
    %v2990 = vmul.f32 %v2908, %v2975
    %v2991 = vmul.f32 %v2909, %v2985
    %v2992 = vmul.f32 %v2910, %v2975
    %v2993 = vmul.f32 %v2911, %v2985
    %v2994 = vmul.f32 %v2912, %v2975
    %v2995 = vmul.f32 %v2913, %v2985
    %v2996 = vmul.f32 %v2914, %v2975
    %v2997 = vmul.f32 %v2915, %v2985
    %v2998 = vmul.f32 %v2916, %v2975
    %v2999 = vmul.f32 %v2917, %v2985
    %v3000 = vmul.f32 %v2918, %v2975
    %v3001 = vmul.f32 %v2919, %v2985
    %v3003 = vperm.slane %v2873, 0
    %v3004 = vperm.slane %v2873, 1
    %v3007 = vmul.f32 %v2986, %v3003
    %v3008 = vmul.f32 %v2987, %v3004
    %v3009 = vmul.f32 %v2988, %v3003
    %v3010 = vmul.f32 %v2989, %v3004
    %v3011 = vmul.f32 %v2990, %v3003
    %v3012 = vmul.f32 %v2991, %v3004
    %v3013 = vmul.f32 %v2992, %v3003
    %v3014 = vmul.f32 %v2993, %v3004
    %v3015 = vmul.f32 %v2994, %v3003
    %v3016 = vmul.f32 %v2995, %v3004
    %v3017 = vmul.f32 %v2996, %v3003
    %v3018 = vmul.f32 %v2997, %v3004
    %v3019 = vmul.f32 %v2998, %v3003
    %v3020 = vmul.f32 %v2999, %v3004
    %v3021 = vmul.f32 %v3000, %v3003
    %v3022 = vmul.f32 %v3001, %v3004
    %v3024 = vperm.slane %v2875, 0
    %v3025 = vperm.slane %v2875, 1
    %v3028 = vadd.f32 %v3007, %v3024
    %v3029 = vadd.f32 %v3008, %v3025
    %v3030 = vadd.f32 %v3009, %v3024
    %v3031 = vadd.f32 %v3010, %v3025
    %v3032 = vadd.f32 %v3011, %v3024
    %v3033 = vadd.f32 %v3012, %v3025
    %v3034 = vadd.f32 %v3013, %v3024
    %v3035 = vadd.f32 %v3014, %v3025
    %v3036 = vadd.f32 %v3015, %v3024
    %v3037 = vadd.f32 %v3016, %v3025
    %v3038 = vadd.f32 %v3017, %v3024
    %v3039 = vadd.f32 %v3018, %v3025
    %v3040 = vadd.f32 %v3019, %v3024
    %v3041 = vadd.f32 %v3020, %v3025
    %v3042 = vadd.f32 %v3021, %v3024
    %v3043 = vadd.f32 %v3022, %v3025
    %v3044 = vadd.f32 %v3028, %v2532
    %v3045 = vadd.f32 %v3029, %v2533
    %v3046 = vadd.f32 %v3030, %v2534
    %v3047 = vadd.f32 %v3031, %v2535
    %v3048 = vadd.f32 %v3032, %v2536
    %v3049 = vadd.f32 %v3033, %v2537
    %v3050 = vadd.f32 %v3034, %v2538
    %v3051 = vadd.f32 %v3035, %v2539
    %v3052 = vadd.f32 %v3036, %v2540
    %v3053 = vadd.f32 %v3037, %v2541
    %v3054 = vadd.f32 %v3038, %v2542
    %v3055 = vadd.f32 %v3039, %v2543
    %v3056 = vadd.f32 %v3040, %v2544
    %v3057 = vadd.f32 %v3041, %v2545
    %v3058 = vadd.f32 %v3042, %v2546
    %v3059 = vadd.f32 %v3043, %v2547
    %v3060 = vmax.f32 %v3044, 0.0
    %v3061 = vmax.f32 %v3045, 0.0
    %v3062 = vmax.f32 %v3046, 0.0
    %v3063 = vmax.f32 %v3047, 0.0
    %v3064 = vmax.f32 %v3048, 0.0
    %v3065 = vmax.f32 %v3049, 0.0
    %v3066 = vmax.f32 %v3050, 0.0
    %v3067 = vmax.f32 %v3051, 0.0
    %v3068 = vmax.f32 %v3052, 0.0
    %v3069 = vmax.f32 %v3053, 0.0
    %v3070 = vmax.f32 %v3054, 0.0
    %v3071 = vmax.f32 %v3055, 0.0
    %v3072 = vmax.f32 %v3056, 0.0
    %v3073 = vmax.f32 %v3057, 0.0
    %v3074 = vmax.f32 %v3058, 0.0
    %v3075 = vmax.f32 %v3059, 0.0
    %v3076 = vld [vmem:[%s9] sm:$0xf]
    %v3077 = vld [vmem:[%s9 + $0x4] sm:$0xf]
    %v3078 = vld [vmem:[%s9 + $0x8] sm:$0xf]
    %v3079 = vld [vmem:[%s9 + $0xc] sm:$0xf]
    %v3080 = vld [vmem:[%s9 + $0x10] sm:$0xf]
    %v3081 = vld [vmem:[%s9 + $0x14] sm:$0xf]
    %v3082 = vld [vmem:[%s9 + $0x18] sm:$0xf]
    %v3083 = vld [vmem:[%s9 + $0x1c] sm:$0xf]
    %v3084 = vld [vmem:[%s9 + $0x20] sm:$0xf]
    %v3085 = vld [vmem:[%s9 + $0x24] sm:$0xf]
    %v3086 = vld [vmem:[%s9 + $0x28] sm:$0xf]
    %v3087 = vld [vmem:[%s9 + $0x2c] sm:$0xf]
    %v3088 = vld [vmem:[%s9 + $0x30] sm:$0xf]
    %v3089 = vld [vmem:[%s9 + $0x34] sm:$0xf]
    %v3090 = vld [vmem:[%s9 + $0x38] sm:$0xf]
    %v3091 = vld [vmem:[%s9 + $0x3c] sm:$0xf]
    %v3092 = vld [vmem:[%s9 + $0x40] sm:$0xf]
    %v3093 = vld [vmem:[%s9 + $0x44] sm:$0xf]
    %v3094 = vld [vmem:[%s9 + $0x48] sm:$0xf]
    %v3095 = vld [vmem:[%s9 + $0x4c] sm:$0xf]
    %v3096 = vld [vmem:[%s9 + $0x50] sm:$0xf]
    %v3097 = vld [vmem:[%s9 + $0x54] sm:$0xf]
    %v3098 = vld [vmem:[%s9 + $0x58] sm:$0xf]
    %v3099 = vld [vmem:[%s9 + $0x5c] sm:$0xf]
    %v3100 = vld [vmem:[%s9 + $0x60] sm:$0xf]
    %v3101 = vld [vmem:[%s9 + $0x64] sm:$0xf]
    %v3102 = vld [vmem:[%s9 + $0x68] sm:$0xf]
    %v3103 = vld [vmem:[%s9 + $0x6c] sm:$0xf]
    %v3104 = vld [vmem:[%s9 + $0x70] sm:$0xf]
    %v3105 = vld [vmem:[%s9 + $0x74] sm:$0xf]
    %v3106 = vld [vmem:[%s9 + $0x78] sm:$0xf]
    %v3107 = vld [vmem:[%s9 + $0x7c] sm:$0xf]
    %v3108 = vld [vmem:[#allocation7] sm:$0x1]
    %v3109 = vpack.c.bf16 %v3062, %v3060
    %v3110 = vpack.c.bf16 %v3063, %v3061
    %v3111 = vpack.c.bf16 %v3066, %v3064
    %v3112 = vpack.c.bf16 %v3067, %v3065
    %v3113 = vpack.c.bf16 %v3070, %v3068
    %v3114 = vpack.c.bf16 %v3071, %v3069
    %v3115 = vpack.c.bf16 %v3074, %v3072
    %v3116 = vpack.c.bf16 %v3075, %v3073
    %v3118 = vperm.slane %v3108, 0
    %v3152 = vunpack.c.l.b16 %v3076
    %v3153 = vunpack.c.l.b16 %v3077
    %v3154 = vunpack.c.l.b16 %v3078
    %v3155 = vunpack.c.l.b16 %v3079
    %v3156 = vunpack.c.l.b16 %v3080
    %v3157 = vunpack.c.l.b16 %v3081
    %v3158 = vunpack.c.l.b16 %v3082
    %v3159 = vunpack.c.l.b16 %v3083
    %v3160 = vunpack.c.l.b16 %v3084
    %v3161 = vunpack.c.l.b16 %v3085
    %v3162 = vunpack.c.l.b16 %v3086
    %v3163 = vunpack.c.l.b16 %v3087
    %v3164 = vunpack.c.l.b16 %v3088
    %v3165 = vunpack.c.l.b16 %v3089
    %v3166 = vunpack.c.l.b16 %v3090
    %v3167 = vunpack.c.l.b16 %v3091
    %v3168 = vunpack.c.l.b16 %v3092
    %v3169 = vunpack.c.l.b16 %v3093
    %v3170 = vunpack.c.l.b16 %v3094
    %v3171 = vunpack.c.l.b16 %v3095
    %v3172 = vunpack.c.l.b16 %v3096
    %v3173 = vunpack.c.l.b16 %v3097
    %v3174 = vunpack.c.l.b16 %v3098
    %v3175 = vunpack.c.l.b16 %v3099
    %v3176 = vunpack.c.l.b16 %v3100
    %v3177 = vunpack.c.l.b16 %v3101
    %v3178 = vunpack.c.l.b16 %v3102
    %v3179 = vunpack.c.l.b16 %v3103
    %v3180 = vunpack.c.l.b16 %v3104
    %v3181 = vunpack.c.l.b16 %v3105
    %v3182 = vunpack.c.l.b16 %v3106
    %v3183 = vunpack.c.l.b16 %v3107
    %v3184 = vpack.c.b16 %v3153, %v3152
    %v3185 = vpack.c.b16 %v3155, %v3154
    %v3186 = vpack.c.b16 %v3157, %v3156
    %v3187 = vpack.c.b16 %v3159, %v3158
    %v3188 = vpack.c.b16 %v3161, %v3160
    %v3189 = vpack.c.b16 %v3163, %v3162
    %v3190 = vpack.c.b16 %v3165, %v3164
    %v3191 = vpack.c.b16 %v3167, %v3166
    %v3192 = vpack.c.b16 %v3169, %v3168
    %v3193 = vpack.c.b16 %v3171, %v3170
    %v3194 = vpack.c.b16 %v3173, %v3172
    %v3195 = vpack.c.b16 %v3175, %v3174
    %v3196 = vpack.c.b16 %v3177, %v3176
    %v3197 = vpack.c.b16 %v3179, %v3178
    %v3198 = vpack.c.b16 %v3181, %v3180
    %v3199 = vpack.c.b16 %v3183, %v3182
    %3216 = vmatpush.bf16.msra.mxu0 %v3191
    %3217 = vmatpush.bf16.msra.mxu0 %v3190
    %3218 = vmatpush.bf16.msra.mxu0 %v3189
    %3219 = vmatpush.bf16.msra.mxu0 %v3188
    %3220 = vmatpush.bf16.msra.mxu0 %v3187
    %3221 = vmatpush.bf16.msra.mxu0 %v3186
    %3222 = vmatpush.bf16.msra.mxu0 %v3185
    %3223 = vmatpush.bf16.msra.mxu0 %v3184
    %3224 = vmatmul.bf16.gmra.mxu0 %v3109
    %v3225 = vpop.f32.mrf.mxu0
    %v3226 = vadd.f32 %v3118, %v3225
    %v3227 = vpop.f32.mrf.mxu0
    %v3228 = vadd.f32 %v3118, %v3227
    %3229 = vmatmul.bf16.gmra.mxu0 %v3111
    %v3230 = vpop.f32.mrf.mxu0
    %v3231 = vadd.f32 %v3118, %v3230
    %v3232 = vpop.f32.mrf.mxu0
    %v3233 = vadd.f32 %v3118, %v3232
    %3234 = vmatmul.bf16.gmra.mxu0 %v3113
    %v3235 = vpop.f32.mrf.mxu0
    %v3236 = vadd.f32 %v3118, %v3235
    %v3237 = vpop.f32.mrf.mxu0
    %v3238 = vadd.f32 %v3118, %v3237
    %3239 = vmatmul.bf16.gmra.mxu0 %v3115
    %v3240 = vpop.f32.mrf.mxu0
    %v3241 = vadd.f32 %v3118, %v3240
    %v3242 = vpop.f32.mrf.mxu0
    %v3243 = vadd.f32 %v3118, %v3242
    %3244 = vdwg.mxu0
    %3245 = vmatpush.bf16.msra.mxu0 %v3199
    %3246 = vmatpush.bf16.msra.mxu0 %v3198
    %3247 = vmatpush.bf16.msra.mxu0 %v3197
    %3248 = vmatpush.bf16.msra.mxu0 %v3196
    %3249 = vmatpush.bf16.msra.mxu0 %v3195
    %3250 = vmatpush.bf16.msra.mxu0 %v3194
    %3251 = vmatpush.bf16.msra.mxu0 %v3193
    %3252 = vmatpush.bf16.msra.mxu0 %v3192
    %3253 = vmatmul.bf16.gmra.mxu0 %v3110
    %v3254 = vpop.f32.mrf.mxu0
    %v3255 = vadd.f32 %v3226, %v3254
    %v3256 = vpop.f32.mrf.mxu0
    %v3257 = vadd.f32 %v3228, %v3256
    %3258 = vmatmul.bf16.gmra.mxu0 %v3112
    %v3259 = vpop.f32.mrf.mxu0
    %v3260 = vadd.f32 %v3231, %v3259
    %v3261 = vpop.f32.mrf.mxu0
    %v3262 = vadd.f32 %v3233, %v3261
    %3263 = vmatmul.bf16.gmra.mxu0 %v3114
    %v3264 = vpop.f32.mrf.mxu0
    %v3265 = vadd.f32 %v3236, %v3264
    %v3266 = vpop.f32.mrf.mxu0
    %v3267 = vadd.f32 %v3238, %v3266
    %3268 = vmatmul.bf16.gmra.mxu0 %v3116
    %v3269 = vpop.f32.mrf.mxu0
    %v3270 = vadd.f32 %v3241, %v3269
    %v3271 = vpop.f32.mrf.mxu0
    %v3272 = vadd.f32 %v3243, %v3271
    %3273 = vdwg.mxu0
    %v3274 = vld [vmem:[%s11] sm:$0x1]
    %v3275 = vld [vmem:[#allocation8] sm:$0x1]
    %vm3276 = vcmask 261120
    %v3277 = vsel %vm3276, %v3255, 0.0
    %v3278 = vsel %vm3276, %v3257, 0.0
    %v3279 = vadd.f32 %v3277, %v3278
    %v3280 = vsel %vm3276, %v3260, 0.0
    %v3281 = vadd.f32 %v3279, %v3280
    %v3282 = vsel %vm3276, %v3262, 0.0
    %v3283 = vadd.f32 %v3281, %v3282
    %v3284 = vsel %vm3276, %v3265, 0.0
    %v3285 = vadd.f32 %v3283, %v3284
    %v3286 = vsel %vm3276, %v3267, 0.0
    %v3287 = vadd.f32 %v3285, %v3286
    %v3288 = vsel %vm3276, %v3270, 0.0
    %v3289 = vadd.f32 %v3287, %v3288
    %v3290 = vsel %vm3276, %v3272, 0.0
    %v3291 = vadd.f32 %v3289, %v3290
    %v3292 = vrot.slane %v3291, 4
    %v3293 = vadd.f32 %v3291, %v3292
    %v3294 = vrot.slane %v3293, 2
    %v3295 = vadd.f32 %v3293, %v3294
    %v3296 = vrot.slane %v3295, 1
    %v3297 = vadd.f32 %v3295, %v3296
    %v3298 = vmul.f32 %v3297, %v281
    %v3299 = vsub.f32 %v3255, %v3298
    %v3300 = vsub.f32 %v3257, %v3298
    %v3301 = vsub.f32 %v3260, %v3298
    %v3302 = vsub.f32 %v3262, %v3298
    %v3303 = vsub.f32 %v3265, %v3298
    %v3304 = vsub.f32 %v3267, %v3298
    %v3305 = vsub.f32 %v3270, %v3298
    %v3306 = vsub.f32 %v3272, %v3298
    %v3307 = vmul.f32 %v3299, %v3299
    %v3308 = vmul.f32 %v3300, %v3300
    %v3309 = vmul.f32 %v3301, %v3301
    %v3310 = vmul.f32 %v3302, %v3302
    %v3311 = vmul.f32 %v3303, %v3303
    %v3312 = vmul.f32 %v3304, %v3304
    %v3313 = vmul.f32 %v3305, %v3305
    %v3314 = vmul.f32 %v3306, %v3306
    %v3315 = vsel %vm3276, %v3307, 0.0
    %v3316 = vsel %vm3276, %v3308, 0.0
    %v3317 = vadd.f32 %v3315, %v3316
    %v3318 = vsel %vm3276, %v3309, 0.0
    %v3319 = vadd.f32 %v3317, %v3318
    %v3320 = vsel %vm3276, %v3310, 0.0
    %v3321 = vadd.f32 %v3319, %v3320
    %v3322 = vsel %vm3276, %v3311, 0.0
    %v3323 = vadd.f32 %v3321, %v3322
    %v3324 = vsel %vm3276, %v3312, 0.0
    %v3325 = vadd.f32 %v3323, %v3324
    %v3326 = vsel %vm3276, %v3313, 0.0
    %v3327 = vadd.f32 %v3325, %v3326
    %v3328 = vsel %vm3276, %v3314, 0.0
    %v3329 = vadd.f32 %v3327, %v3328
    %v3330 = vrot.slane %v3329, 4
    %v3331 = vadd.f32 %v3329, %v3330
    %v3332 = vrot.slane %v3331, 2
    %v3333 = vadd.f32 %v3331, %v3332
    %v3334 = vrot.slane %v3333, 1
    %v3335 = vadd.f32 %v3333, %v3334
    %v3336 = vmul.f32 %v3335, %v281
    %v3337 = vadd.f32 %v3336, 1e-05
    %v3338 = vrsqrt.pop %v3337
    %v3339 = vmul.f32 %v3338, %v3337
    %v3340 = vmul.f32 %v3339, %v3338
    %v3341 = vmul.f32 0.5, %v3340
    %v3342 = vsub.f32 1.5, %v3341
    %v3343 = vmul.f32 %v3338, %v3342
    %vm3344 = vweird.f32 %v3337
    %vm3345 = vweird.f32 %v3338
    %vm3346 = vmor %vm3344, %vm3345
    %v3347 = vsel %vm3346, %v3338, %v3343
    %v3348 = vmul.f32 %v3299, %v3347
    %v3349 = vmul.f32 %v3300, %v3347
    %v3350 = vmul.f32 %v3301, %v3347
    %v3351 = vmul.f32 %v3302, %v3347
    %v3352 = vmul.f32 %v3303, %v3347
    %v3353 = vmul.f32 %v3304, %v3347
    %v3354 = vmul.f32 %v3305, %v3347
    %v3355 = vmul.f32 %v3306, %v3347
    %v3357 = vperm.slane %v3274, 0
    %v3359 = vmul.f32 %v3348, %v3357
    %v3360 = vmul.f32 %v3349, %v3357
    %v3361 = vmul.f32 %v3350, %v3357
    %v3362 = vmul.f32 %v3351, %v3357
    %v3363 = vmul.f32 %v3352, %v3357
    %v3364 = vmul.f32 %v3353, %v3357
    %v3365 = vmul.f32 %v3354, %v3357
    %v3366 = vmul.f32 %v3355, %v3357
    %v3368 = vperm.slane %v3275, 0
    %v3370 = vadd.f32 %v3359, %v3368
    %v3371 = vadd.f32 %v3360, %v3368
    %v3372 = vadd.f32 %v3361, %v3368
    %v3373 = vadd.f32 %v3362, %v3368
    %v3374 = vadd.f32 %v3363, %v3368
    %v3375 = vadd.f32 %v3364, %v3368
    %v3376 = vadd.f32 %v3365, %v3368
    %v3377 = vadd.f32 %v3366, %v3368
    %v3378 = vmax.f32 %v3370, 0.0
    %v3379 = vmax.f32 %v3371, 0.0
    %v3380 = vmax.f32 %v3372, 0.0
    %v3381 = vmax.f32 %v3373, 0.0
    %v3382 = vmax.f32 %v3374, 0.0
    %v3383 = vmax.f32 %v3375, 0.0
    %v3384 = vmax.f32 %v3376, 0.0
    %v3385 = vmax.f32 %v3377, 0.0
    %v3386 = vld [vmem:[%s13] sm:$0x1]
    %v3388 = vperm.slane %v3386, 0
    %v3390 = vmul.f32 %v3378, %v3388
    %v3391 = vmul.f32 %v3379, %v3388
    %v3392 = vmul.f32 %v3380, %v3388
    %v3393 = vmul.f32 %v3381, %v3388
    %v3394 = vmul.f32 %v3382, %v3388
    %v3395 = vmul.f32 %v3383, %v3388
    %v3396 = vmul.f32 %v3384, %v3388
    %v3397 = vmul.f32 %v3385, %v3388
    %v3398 = vsel %vm3276, %v3390, 0.0
    %3399 = vadd.xlane.f32.xlu0 %v3398
    %v3400 = vpop.xlane.xlu0 %3399
    %v3401 = vsel %vm3276, %v3391, 0.0
    %3402 = vadd.xlane.f32.xlu0 %v3401
    %v3403 = vpop.xlane.xlu0 %3402
    %v3404 = vsel %vm3276, %v3392, 0.0
    %3405 = vadd.xlane.f32.xlu0 %v3404
    %v3406 = vpop.xlane.xlu0 %3405
    %v3407 = vsel %vm3276, %v3393, 0.0
    %3408 = vadd.xlane.f32.xlu0 %v3407
    %v3409 = vpop.xlane.xlu0 %3408
    %v3410 = vsel %vm3276, %v3394, 0.0
    %3411 = vadd.xlane.f32.xlu0 %v3410
    %v3412 = vpop.xlane.xlu0 %3411
    %v3413 = vsel %vm3276, %v3395, 0.0
    %3414 = vadd.xlane.f32.xlu0 %v3413
    %v3415 = vpop.xlane.xlu0 %3414
    %v3416 = vsel %vm3276, %v3396, 0.0
    %3417 = vadd.xlane.f32.xlu0 %v3416
    %v3418 = vpop.xlane.xlu0 %3417
    %v3419 = vsel %vm3276, %v3397, 0.0
    %3420 = vadd.xlane.f32.xlu0 %v3419
    %v3421 = vpop.xlane.xlu0 %3420
    %v3422 = vld [vmem:[#allocation2] sm:$0x1]
    %v3424 = vperm.slane %v3422, 0
    %v3426 = vadd.f32 %v3400, %v3424
    %v3427 = vadd.f32 %v3403, %v3424
    %v3428 = vadd.f32 %v3406, %v3424
    %v3429 = vadd.f32 %v3409, %v3424
    %v3430 = vadd.f32 %v3412, %v3424
    %v3431 = vadd.f32 %v3415, %v3424
    %v3432 = vadd.f32 %v3418, %v3424
    %v3433 = vadd.f32 %v3421, %v3424
    %v3434 = vmax.f32 %v3426, 0.0
    %v3435 = vmax.f32 %v3427, 0.0
    %v3436 = vmax.f32 %v3428, 0.0
    %v3437 = vmax.f32 %v3429, 0.0
    %v3438 = vmax.f32 %v3430, 0.0
    %v3439 = vmax.f32 %v3431, 0.0
    %v3440 = vmax.f32 %v3432, 0.0
    %v3441 = vmax.f32 %v3433, 0.0
    %vm3442 = vcmask 7168
    %3443 = vst.msk [vmem:[%s15] sm:$0xff] %vm3442, %v3434
    %3444 = vst.msk [vmem:[%s15 + $0x8] sm:$0xff] %vm3442, %v3435
    %3445 = vst.msk [vmem:[%s15 + $0x10] sm:$0xff] %vm3442, %v3436
    %3446 = vst.msk [vmem:[%s15 + $0x18] sm:$0xff] %vm3442, %v3437
    %3447 = vst.msk [vmem:[%s15 + $0x20] sm:$0xff] %vm3442, %v3438
    %3448 = vst.msk [vmem:[%s15 + $0x28] sm:$0xff] %vm3442, %v3439
    %3449 = vst.msk [vmem:[%s15 + $0x30] sm:$0xff] %vm3442, %v3440
    %3450 = vst.msk [vmem:[%s15 + $0x38] sm:$0xff] %vm3442, %v3441
    // Predicated region
    $region78: #{respair_distance2.1} parent=1 // pred_check
      _
    $region79: #{respair_distance2.1} parent=1 // pred_check_branch
      %3452 = sbr.rel (0) target = $region81
    $region80: #{respair_distance2.1} parent=1 // pred_region
      _
    $region81: #{respair_distance2.1} parent=1 // pred_fallthru
      _
    // Predicated region
    $region82: #{respair_distance2.1} parent=1 // pred_check
      _
    $region83: #{respair_distance2.1} parent=1 // pred_check_branch
      %3454 = sbr.rel (0) target = $region85
    $region84: #{respair_distance2.1} parent=1 // pred_region
      _
    $region85: #{respair_distance2.1} parent=1 // pred_fallthru
      _
    %3455 = vsyncpa [#allocation4], 1
    %3456 = vsyncpa [#allocation6], 1
    %3457 = vsyncpa [#allocation9], 1

</llo_original>
